<compile_context>
chip_gen: v7x
topology: tpu7x:2x2x1
jax: 0.10.0
libtpu: 0.0.40
codegen_flags: <defaults>
</compile_context>

<pallas_src>
import functools

import numpy as np
import jax
import jax.numpy as jnp
from jax import lax
from jax.experimental import pallas as pl
from jax.experimental.pallas import tpu as pltpu

K = 5  # Conv1d kernel width (padding = K // 2)


# ----------------------------------------------------------------------------
# Fused Pallas kernel (one grid step == one batch element)
# ----------------------------------------------------------------------------

def _fused_forward_kernel(
    # scalar prefetch
    len_ref,                       # (N,) int32 in SMEM
    # inputs
    emb_ref,                       # (1, T+K-1, C)   zero-padded embedded tokens
    w1_ref, w2_ref, w3_ref,        # (K*C, H), (K*H, H), (K*H, H)  BN scale folded in
    shift_ref,                     # (3, H)          BN shifts (incl. conv bias)
    spkrb_ref,                     # (1, 2, H)       speaker bias for conv blocks 2 & 3
    extra_ref,                     # (1, 1, H)       style_vec + speed_proj bias
    lstm_wih_ref,                  # (H, 8*Hh)       [fwd gates | bwd gates] input proj
    lstm_b_ref,                    # (1, 8*Hh)
    whh_f_ref, whh_b_ref,          # (Hh, 4*Hh) each
    gru_wte_ref,                   # (H, 3*E)        text-encoding block of GRU W_ih
    gru_bih_ref,                   # (1, 3*E)
    gru_whcat_ref,                 # (E, 6*E)        [proj_w @ W_ih_prev | W_hh]
    gru_bcat_ref,                  # (1, 6*E)        [proj_b @ W_ih_prev | b_hh]
    proj_w_ref, proj_b_ref,        # (E, P), (1, P)
    # outputs
    te_ref,                        # (1, T, H)       text encoding
    pred_ref,                      # (1, max_len, P) prosody prediction
    # scratch
    xfb_s,                         # (T, 8*Hh)       hoisted LSTM input projections
    te_s,                          # (T, H)          LSTM output accumulator
    teproj_s,                      # (T, 3*E)        hoisted GRU text projections
    hh_s,                          # (max_len, E)    GRU hidden history
):
    n = pl.program_id(0)
    L = len_ref[n]                                   # int32 sequence length

    T = te_ref.shape[1]
    H = te_ref.shape[2]
    Hh = whh_f_ref.shape[0]
    G = 4 * Hh
    E = gru_whcat_ref.shape[0]
    max_len = pred_ref.shape[1]
    f32 = jnp.float32

    # ---- conv stack: im2col -> single MXU matmul per layer (eval-mode BN folded)
    def im2col(x_pad):                               # (T+K-1, Cin) -> (T, K*Cin)
        return jnp.concatenate([x_pad[k:k + T, :] for k in range(K)], axis=1)

    x_pad = emb_ref[0].astype(f32)                   # (T+K-1, C)
    h = jnp.maximum(
        jnp.dot(im2col(x_pad), w1_ref[...], preferred_element_type=f32)
        + shift_ref[0:1, :], 0.0)                    # conv_1st: no speaker bias
    for li, w_ref in ((1, w2_ref), (2, w3_ref)):
        x_pad = jnp.pad(h, ((K // 2, K // 2), (0, 0)))
        h = jnp.maximum(
            jnp.dot(im2col(x_pad), w_ref[...], preferred_element_type=f32)
            + shift_ref[li:li + 1, :], 0.0)
        h = h + spkrb_ref[0, li - 1:li, :]           # speaker bias added AFTER ReLU
    # h: (T, H) conv-stack output

    # ---- bidirectional LSTM: input projection hoisted out of the recurrence
    xfb_s[...] = (jnp.dot(h, lstm_wih_ref[...], preferred_element_type=f32)
                  + lstm_b_ref[...])                 # (T, 8*Hh), 128 output lanes

    whh_f = whh_f_ref[...]
    whh_b = whh_b_ref[...]

    def lstm_cell(gx, h_prev, c_prev, whh):
        g = gx + jnp.dot(h_prev, whh, preferred_element_type=f32)
        i = jax.nn.sigmoid(g[:, 0 * Hh:1 * Hh])
        f = jax.nn.sigmoid(g[:, 1 * Hh:2 * Hh])
        gg = jnp.tanh(g[:, 2 * Hh:3 * Hh])
        o = jax.nn.sigmoid(g[:, 3 * Hh:4 * Hh])
        c_new = f * c_prev + i * gg
        h_new = o * jnp.tanh(c_new)
        return h_new, c_new

    def fwd_step(t, carry):
        h_p, c_p = carry
        h_new, c_new = lstm_cell(xfb_s[pl.ds(t, 1), 0:G], h_p, c_p, whh_f)
        valid = t < L                                # packed-seq: freeze past length
        te_s[pl.ds(t, 1), 0:Hh] = jnp.where(valid, h_new, 0.0)
        return (jnp.where(valid, h_new, h_p), jnp.where(valid, c_new, c_p))

    def bwd_step(i, carry):
        t = T - 1 - i                                # reverse dir starts at len-1
        h_p, c_p = carry
        h_new, c_new = lstm_cell(xfb_s[pl.ds(t, 1), G:2 * G], h_p, c_p, whh_b)
        valid = t < L
        te_s[pl.ds(t, 1), Hh:H] = jnp.where(valid, h_new, 0.0)
        return (jnp.where(valid, h_new, h_p), jnp.where(valid, c_new, c_p))

    zero_hc = (jnp.zeros((1, Hh), f32), jnp.zeros((1, Hh), f32))
    lax.fori_loop(0, T, fwd_step, zero_hc, unroll=True)
    lax.fori_loop(0, T, bwd_step, zero_hc, unroll=True)

    # ---- wrapper add: + style_vec + speed_proj(speed), broadcast over T
    te = te_s[...] + extra_ref[0]                    # (T, H) + (1, H)
    te_ref[0] = te.astype(te_ref.dtype)              # single bulk store

    # ---- autoregressive GRU (eval branch), projection feedback folded in
    teproj_s[...] = (jnp.dot(te, gru_wte_ref[...], preferred_element_type=f32)
                     + gru_bih_ref[...])             # (T, 3*E), includes b_ih

    whcat = gru_whcat_ref[...]                       # (E, 6*E)
    bcat = gru_bcat_ref[...]                         # (1, 6*E)

    def gru_step(t, carry):
        h_p, fb, gh = carry
        # fb = prev_prosody @ W_ih_prev  (zero at t=0), gh = h_{t-1} @ W_hh + b_hh
        gi = teproj_s[pl.ds(t, 1), :] + fb
        r = jax.nn.sigmoid(gi[:, 0:E] + gh[:, 0:E])
        z = jax.nn.sigmoid(gi[:, E:2 * E] + gh[:, E:2 * E])
        c = jnp.tanh(gi[:, 2 * E:3 * E] + r * gh[:, 2 * E:3 * E])
        h_new = (1.0 - z) * c + z * h_p
        hh_s[pl.ds(t, 1), :] = h_new                 # stream hidden into scratch
        hb = jnp.dot(h_new, whcat, preferred_element_type=f32) + bcat
        return (h_new, hb[:, 0:3 * E], hb[:, 3 * E:6 * E])

    init = (jnp.zeros((1, E), f32),                  # h_0 = 0
            jnp.zeros((1, 3 * E), f32),              # prev prosody vec = 0 ("padding")
            bcat[:, 3 * E:6 * E])                    # gh_0 = b_hh
    lax.fori_loop(0, max_len, gru_step, init, unroll=True)

    # prosody projection off the critical path: one (max_len, E) x (E, P) matmul
    pred = (jnp.dot(hh_s[...], proj_w_ref[...], preferred_element_type=f32)
            + proj_b_ref[...])
    pred_ref[0] = pred.astype(pred_ref.dtype)        # single bulk store


# ----------------------------------------------------------------------------
# pallas_call wrapper
# ----------------------------------------------------------------------------

def _full(shape):
    return pl.BlockSpec(shape, lambda n, *_: (0,) * len(shape))


def _batched(shape):
    nd = len(shape)
    return pl.BlockSpec(shape, lambda n, *_: (n,) + (0,) * (nd - 1))


def fused_forward_call(lengths, emb_pad, w1f, w2f, w3f, shifts, spkr_bias, extra,
                       lstm_wih, lstm_b, whh_f, whh_b,
                       gru_wte, gru_bih, gru_whcat, gru_bcat, proj_w, proj_b,
                       *, max_len):
    N, Tp, C = emb_pad.shape
    T = Tp - (K - 1)
    H = w1f.shape[1]
    Hh = whh_f.shape[0]
    E = gru_whcat.shape[0]
    P = proj_w.shape[1]

    grid_spec = pltpu.PrefetchScalarGridSpec(
        num_scalar_prefetch=1,
        grid=(N,),
        in_specs=[
            _batched((1, Tp, C)),
            _full(w1f.shape), _full(w2f.shape), _full(w3f.shape),
            _full(shifts.shape),
            _batched((1, 2, H)),
            _batched((1, 1, H)),
            _full(lstm_wih.shape), _full(lstm_b.shape),
            _full(whh_f.shape), _full(whh_b.shape),
            _full(gru_wte.shape), _full(gru_bih.shape),
            _full(gru_whcat.shape), _full(gru_bcat.shape),
            _full(proj_w.shape), _full(proj_b.shape),
        ],
        out_specs=[
            _batched((1, T, H)),
            _batched((1, max_len, P)),
        ],
        scratch_shapes=[
            pltpu.VMEM((T, 8 * Hh), jnp.float32),
            pltpu.VMEM((T, H), jnp.float32),
            pltpu.VMEM((T, 3 * E), jnp.float32),
            pltpu.VMEM((max_len, E), jnp.float32),
        ],
    )
    return pl.pallas_call(
        _fused_forward_kernel,
        out_shape=(jax.ShapeDtypeStruct((N, T, H), jnp.float32),
                   jax.ShapeDtypeStruct((N, max_len, P), jnp.float32)),
        grid_spec=grid_spec,
        compiler_params=pltpu.CompilerParams(
            dimension_semantics=("parallel",),        # v7x: batch across both TCs
            vmem_limit_bytes=32 * 1024 * 1024),
    )(lengths, emb_pad, w1f, w2f, w3f, shifts, spkr_bias, extra,
      lstm_wih, lstm_b, whh_f, whh_b,
      gru_wte, gru_bih, gru_whcat, gru_bcat, proj_w, proj_b)


# ----------------------------------------------------------------------------
# Parameters (deterministic synthetic init) and JAX glue
# ----------------------------------------------------------------------------

def init_params(key, vocab, C, H, S, E, P, k=K):
    Hh = H // 2
    keys = iter(jax.random.split(key, 64))

    def nrm(shape, scale=0.1):
        return (scale * jax.random.normal(next(keys), shape)).astype(jnp.float32)

    def bn_fold(conv_b, eps=1e-5):
        gamma = 1.0 + nrm((conv_b.shape[0],))
        beta = nrm((conv_b.shape[0],))
        mean = nrm((conv_b.shape[0],))
        var = 1.0 + 0.5 * jax.random.uniform(next(keys), (conv_b.shape[0],),
                                             dtype=jnp.float32)
        scale = gamma / jnp.sqrt(var + eps)
        shift = beta + (conv_b - mean) * scale
        return scale.reshape(1, -1), shift.reshape(1, -1)

    p = {}
    p['emb'] = nrm((vocab, C), 0.5)

    conv1_b = nrm((H,)); p['conv1_w'] = nrm((k, C, H))
    p['bn1_scale'], p['bn1_shift'] = bn_fold(conv1_b)
    conv2_b = nrm((H,)); p['conv2_w'] = nrm((k, H, H))
    p['bn2_scale'], p['bn2_shift'] = bn_fold(conv2_b)
    conv3_b = nrm((H,)); p['conv3_w'] = nrm((k, H, H))
    p['bn3_scale'], p['bn3_shift'] = bn_fold(conv3_b)

    # speaker projection: Linear(S, 2H) + Softsign
    p['spkr_w'] = nrm((S, 2 * H)); p['spkr_b'] = nrm((2 * H,))

    # bidirectional LSTM (gate order i, f, g, o; b = b_ih + b_hh)
    p['lstm_wih_f'] = nrm((H, 4 * Hh)); p['lstm_whh_f'] = nrm((Hh, 4 * Hh))
    p['lstm_b_f'] = nrm((1, 4 * Hh))
    p['lstm_wih_b'] = nrm((H, 4 * Hh)); p['lstm_whh_b'] = nrm((Hh, 4 * Hh))
    p['lstm_b_b'] = nrm((1, 4 * Hh))

    # speed_proj: Linear(1,E)+ReLU+Linear(E,H)+Tanh
    p['spd_w1'] = nrm((1, E)); p['spd_b1'] = nrm((E,))
    p['spd_w2'] = nrm((E, H)); p['spd_b2'] = nrm((H,))

    # ProsodyPredictor: GRU(H+P -> E) (gate order r, z, n) + Linear(E, P)
    p['gru_wih'] = nrm((H + P, 3 * E)); p['gru_whh'] = nrm((E, 3 * E))
    p['gru_bih'] = nrm((1, 3 * E)); p['gru_bhh'] = nrm((1, 3 * E))
    p['proj_w'] = nrm((E, P)); p['proj_b'] = nrm((1, P))
    return p


@functools.partial(jax.jit, static_argnames=("max_len",))
def prosody_predictor_wrapper_forward(params, tokens, lengths, spkr_vec,
                                      style_vec, speed, max_len):
    N, T = tokens.shape
    C = params['conv1_w'].shape[1]
    H = params['conv1_w'].shape[-1]
    pad = K // 2

    # embedding + conv zero-padding (gather stays in XLA; T-independent folds below
    # are tiny per-batch / per-weight ops fused by XLA — only the big T-dependent
    # pipeline runs in the single Pallas kernel)
    emb = params['emb'][tokens]                                  # (N, T, C)
    emb_pad = jnp.pad(emb, ((0, 0), (pad, pad), (0, 0)))

    # fold eval-mode BatchNorm scale into im2col-layout conv weights
    w1f = params['conv1_w'].reshape(K * C, H) * params['bn1_scale']
    w2f = params['conv2_w'].reshape(K * H, H) * params['bn2_scale']
    w3f = params['conv3_w'].reshape(K * H, H) * params['bn3_scale']
    shifts = jnp.concatenate([params['bn1_shift'], params['bn2_shift'],
                              params['bn3_shift']], axis=0)      # (3, H)

    # speaker bias: Linear + Softsign, one bias per conv block 2/3
    sb = spkr_vec[:, 0, :] @ params['spkr_w'] + params['spkr_b']
    sb = sb / (1.0 + jnp.abs(sb))                                # Softsign
    spkr_bias = jnp.stack([sb[:, :H], sb[:, H:]], axis=1)        # (N, 2, H)

    # style + speed_proj additive bias (broadcast over T inside the kernel)
    s = speed.reshape(-1, 1)
    s1 = jax.nn.relu(s @ params['spd_w1'] + params['spd_b1'])
    s2 = jnp.tanh(s1 @ params['spd_w2'] + params['spd_b2'])      # (N, H)
    extra = (style_vec[:, 0, :] + s2)[:, None, :]                # (N, 1, H)

    # LSTM: concat fwd/bwd input projections -> one lane-dense (H, 8*Hh) matmul
    lstm_wih = jnp.concatenate([params['lstm_wih_f'], params['lstm_wih_b']], axis=1)
    lstm_b = jnp.concatenate([params['lstm_b_f'], params['lstm_b_b']], axis=1)

    # GRU: split W_ih into text / prev-prosody blocks and fold the projection
    # feedback (prev = h @ proj_w + proj_b) into the recurrence matrices.
    wih_te = params['gru_wih'][:H, :]
    wih_prev = params['gru_wih'][H:, :]
    gru_whcat = jnp.concatenate([params['proj_w'] @ wih_prev,
                                 params['gru_whh']], axis=1)     # (E, 6*E)
    gru_bcat = jnp.concatenate([params['proj_b'] @ wih_prev,
                                params['gru_bhh']], axis=1)      # (1, 6*E)

    text_encoding, style_vec_prediction = fused_forward_call(
        lengths.astype(jnp.int32), emb_pad, w1f, w2f, w3f, shifts, spkr_bias,
        extra, lstm_wih, lstm_b, params['lstm_whh_f'], params['lstm_whh_b'],
        wih_te, params['gru_bih'], gru_whcat, gru_bcat,
        params['proj_w'], params['proj_b'], max_len=max_len)
    return text_encoding, style_vec_prediction


if __name__ == "__main__":
    # module hyper-parameters (small, consistent with the PyTorch __init__)
    vocab_size, charvec_dim, hidden_size = 40, 16, 32
    spkr_embed_size, seq_prosody_dim, embed_hidden = 8, 8, 16
    N, T = 2, 8

    key = jax.random.PRNGKey(0)
    kp, kt, ks, ksty, kspd = jax.random.split(key, 5)
    params = init_params(kp, vocab_size, charvec_dim, hidden_size,
                         spkr_embed_size, embed_hidden, seq_prosody_dim)

    tokens = jax.random.randint(kt, (N, T), 0, vocab_size)           # N x T
    lengths = jnp.array([T, T - 3], dtype=jnp.int32)
    spkr_vec = 0.5 * jax.random.normal(ks, (N, 1, spkr_embed_size),
                                       dtype=jnp.float32)
    style_vec = 0.1 * jax.random.normal(ksty, (N, 1, hidden_size),
                                        dtype=jnp.float32)
    speed = 0.5 + jnp.abs(jax.random.normal(kspd, (N,), dtype=jnp.float32))
    max_len = int(np.asarray(lengths).max())

    text_encoding, style_vec_prediction = prosody_predictor_wrapper_forward(
        params, tokens, lengths, spkr_vec, style_vec, speed, max_len)
    jax.block_until_ready((text_encoding, style_vec_prediction))

    assert text_encoding.shape == (N, T, hidden_size)
    assert style_vec_prediction.shape == (N, max_len, seq_prosody_dim)
    assert bool(jnp.all(jnp.isfinite(text_encoding)))
    assert bool(jnp.all(jnp.isfinite(style_vec_prediction)))
    print("KERNEL_OK")
</pallas_src>

<mosaic_0001>
module attributes {stable_mosaic.version = 11 : i64} {
  func.func @_fused_forward_kernel(%arg0: i32, %arg1: memref<2xi32, #tpu.memory_space<smem>>, %arg2: memref<1x12x16xf32, #tpu.memory_space<vmem>>, %arg3: memref<80x32xf32, #tpu.memory_space<vmem>>, %arg4: memref<160x32xf32, #tpu.memory_space<vmem>>, %arg5: memref<160x32xf32, #tpu.memory_space<vmem>>, %arg6: memref<3x32xf32, #tpu.memory_space<vmem>>, %arg7: memref<1x2x32xf32, #tpu.memory_space<vmem>>, %arg8: memref<1x1x32xf32, #tpu.memory_space<vmem>>, %arg9: memref<32x128xf32, #tpu.memory_space<vmem>>, %arg10: memref<1x128xf32, #tpu.memory_space<vmem>>, %arg11: memref<16x64xf32, #tpu.memory_space<vmem>>, %arg12: memref<16x64xf32, #tpu.memory_space<vmem>>, %arg13: memref<32x48xf32, #tpu.memory_space<vmem>>, %arg14: memref<1x48xf32, #tpu.memory_space<vmem>>, %arg15: memref<16x96xf32, #tpu.memory_space<vmem>>, %arg16: memref<1x96xf32, #tpu.memory_space<vmem>>, %arg17: memref<16x8xf32, #tpu.memory_space<vmem>>, %arg18: memref<1x8xf32, #tpu.memory_space<vmem>>, %arg19: memref<1x8x32xf32, #tpu.memory_space<vmem>>, %arg20: memref<1x8x8xf32, #tpu.memory_space<vmem>>, %arg21: memref<8x128xf32, #tpu.memory_space<vmem>>, %arg22: memref<8x32xf32, #tpu.memory_space<vmem>>, %arg23: memref<8x48xf32, #tpu.memory_space<vmem>>, %arg24: memref<8x16xf32, #tpu.memory_space<vmem>>) attributes {dimension_semantics = [#tpu.dimension_semantics<parallel>], iteration_bounds = array<i64: 2>, scalar_prefetch = 1 : i64, scratch_operands = 4 : i64, tpu.core_type = #tpu.core_type<tc>, window_params = [{transform_indices = @transform_0, window_bounds = array<i64: 1, 12, 16>}, {pipeline_mode = #tpu.pipeline_mode<synchronous>, transform_indices = @transform_1, window_bounds = array<i64: 80, 32>}, {pipeline_mode = #tpu.pipeline_mode<synchronous>, transform_indices = @transform_2, window_bounds = array<i64: 160, 32>}, {pipeline_mode = #tpu.pipeline_mode<synchronous>, transform_indices = @transform_3, window_bounds = array<i64: 160, 32>}, {pipeline_mode = #tpu.pipeline_mode<synchronous>, transform_indices = @transform_4, window_bounds = array<i64: 3, 32>}, {transform_indices = @transform_5, window_bounds = array<i64: 1, 2, 32>}, {transform_indices = @transform_6, window_bounds = array<i64: 1, 1, 32>}, {pipeline_mode = #tpu.pipeline_mode<synchronous>, transform_indices = @transform_7, window_bounds = array<i64: 32, 128>}, {pipeline_mode = #tpu.pipeline_mode<synchronous>, transform_indices = @transform_8, window_bounds = array<i64: 1, 128>}, {pipeline_mode = #tpu.pipeline_mode<synchronous>, transform_indices = @transform_9, window_bounds = array<i64: 16, 64>}, {pipeline_mode = #tpu.pipeline_mode<synchronous>, transform_indices = @transform_10, window_bounds = array<i64: 16, 64>}, {pipeline_mode = #tpu.pipeline_mode<synchronous>, transform_indices = @transform_11, window_bounds = array<i64: 32, 48>}, {pipeline_mode = #tpu.pipeline_mode<synchronous>, transform_indices = @transform_12, window_bounds = array<i64: 1, 48>}, {pipeline_mode = #tpu.pipeline_mode<synchronous>, transform_indices = @transform_13, window_bounds = array<i64: 16, 96>}, {pipeline_mode = #tpu.pipeline_mode<synchronous>, transform_indices = @transform_14, window_bounds = array<i64: 1, 96>}, {pipeline_mode = #tpu.pipeline_mode<synchronous>, transform_indices = @transform_15, window_bounds = array<i64: 16, 8>}, {pipeline_mode = #tpu.pipeline_mode<synchronous>, transform_indices = @transform_16, window_bounds = array<i64: 1, 8>}, {transform_indices = @transform_17, window_bounds = array<i64: 1, 8, 32>}, {transform_indices = @transform_18, window_bounds = array<i64: 1, 8, 8>}]} {
    %0 = arith.index_cast %arg0 : i32 to index
    %1 = memref.load %arg1[%0] : memref<2xi32, #tpu.memory_space<smem>>
    %c0 = arith.constant 0 : index
    %c0_0 = arith.constant 0 : index
    %c0_1 = arith.constant 0 : index
    %2 = vector.load %arg2[%c0, %c0_0, %c0_1] : memref<1x12x16xf32, #tpu.memory_space<vmem>>, vector<1x12x16xf32>
    %3 = vector.shape_cast %2 : vector<1x12x16xf32> to vector<12x16xf32>
    %4 = vector.extract_strided_slice %3 {offsets = [0, 0], sizes = [8, 16], strides = [1, 1]} : vector<12x16xf32> to vector<8x16xf32>
    %5 = vector.extract_strided_slice %3 {offsets = [1, 0], sizes = [8, 16], strides = [1, 1]} : vector<12x16xf32> to vector<8x16xf32>
    %6 = vector.extract_strided_slice %3 {offsets = [2, 0], sizes = [8, 16], strides = [1, 1]} : vector<12x16xf32> to vector<8x16xf32>
    %7 = vector.extract_strided_slice %3 {offsets = [3, 0], sizes = [8, 16], strides = [1, 1]} : vector<12x16xf32> to vector<8x16xf32>
    %8 = vector.extract_strided_slice %3 {offsets = [4, 0], sizes = [8, 16], strides = [1, 1]} : vector<12x16xf32> to vector<8x16xf32>
    %9 = tpu.concatenate %4, %5, %6, %7, %8 in 1 : vector<8x16xf32>, vector<8x16xf32>, vector<8x16xf32>, vector<8x16xf32>, vector<8x16xf32> -> vector<8x80xf32>
    %c0_2 = arith.constant 0 : index
    %c0_3 = arith.constant 0 : index
    %10 = vector.load %arg3[%c0_2, %c0_3] : memref<80x32xf32, #tpu.memory_space<vmem>>, vector<80x32xf32>
    %cst = arith.constant dense<0.000000e+00> : vector<8x32xf32>
    %11 = tpu.matmul %9, %10, %cst {dimension_numbers = #tpu.dot_dimension_numbers<[1], [0], [0], [1], [0, 0, 1, 1], [], []>} : vector<8x80xf32>, vector<80x32xf32>, vector<8x32xf32> -> vector<8x32xf32>
    %c0_4 = arith.constant 0 : index
    %c0_5 = arith.constant 0 : index
    %12 = vector.load %arg6[%c0_4, %c0_5] : memref<3x32xf32, #tpu.memory_space<vmem>>, vector<1x32xf32>
    %13 = vector.broadcast %12 : vector<1x32xf32> to vector<8x32xf32>
    %14 = arith.addf %11, %13 : vector<8x32xf32>
    %cst_6 = arith.constant 0.000000e+00 : f32
    %15 = vector.broadcast %cst_6 : f32 to vector<8x32xf32>
    %16 = arith.maximumf %14, %15 : vector<8x32xf32>
    %c0_i32 = arith.constant 0 : i32
    %17 = arith.sitofp %c0_i32 : i32 to f32
    %18 = vector.broadcast %17 : f32 to vector<2x32xf32>
    %19 = tpu.concatenate %18, %16 in 0 : vector<2x32xf32>, vector<8x32xf32> -> vector<10x32xf32>
    %20 = vector.broadcast %17 : f32 to vector<2x32xf32>
    %21 = tpu.concatenate %19, %20 in 0 : vector<10x32xf32>, vector<2x32xf32> -> vector<12x32xf32>
    %22 = vector.extract_strided_slice %21 {offsets = [0, 0], sizes = [8, 32], strides = [1, 1]} : vector<12x32xf32> to vector<8x32xf32>
    %23 = vector.extract_strided_slice %21 {offsets = [1, 0], sizes = [8, 32], strides = [1, 1]} : vector<12x32xf32> to vector<8x32xf32>
    %24 = vector.extract_strided_slice %21 {offsets = [2, 0], sizes = [8, 32], strides = [1, 1]} : vector<12x32xf32> to vector<8x32xf32>
    %25 = vector.extract_strided_slice %21 {offsets = [3, 0], sizes = [8, 32], strides = [1, 1]} : vector<12x32xf32> to vector<8x32xf32>
    %26 = vector.extract_strided_slice %21 {offsets = [4, 0], sizes = [8, 32], strides = [1, 1]} : vector<12x32xf32> to vector<8x32xf32>
    %27 = tpu.concatenate %22, %23, %24, %25, %26 in 1 : vector<8x32xf32>, vector<8x32xf32>, vector<8x32xf32>, vector<8x32xf32>, vector<8x32xf32> -> vector<8x160xf32>
    %c0_7 = arith.constant 0 : index
    %c0_8 = arith.constant 0 : index
    %28 = vector.load %arg4[%c0_7, %c0_8] : memref<160x32xf32, #tpu.memory_space<vmem>>, vector<160x32xf32>
    %cst_9 = arith.constant dense<0.000000e+00> : vector<8x32xf32>
    %29 = tpu.matmul %27, %28, %cst_9 {dimension_numbers = #tpu.dot_dimension_numbers<[1], [0], [0], [1], [0, 0, 1, 1], [], []>} : vector<8x160xf32>, vector<160x32xf32>, vector<8x32xf32> -> vector<8x32xf32>
    %c1 = arith.constant 1 : index
    %c0_10 = arith.constant 0 : index
    %30 = vector.load %arg6[%c1, %c0_10] : memref<3x32xf32, #tpu.memory_space<vmem>>, vector<1x32xf32>
    %31 = vector.broadcast %30 : vector<1x32xf32> to vector<8x32xf32>
    %32 = arith.addf %29, %31 : vector<8x32xf32>
    %cst_11 = arith.constant 0.000000e+00 : f32
    %33 = vector.broadcast %cst_11 : f32 to vector<8x32xf32>
    %34 = arith.maximumf %32, %33 : vector<8x32xf32>
    %c0_12 = arith.constant 0 : index
    %c0_13 = arith.constant 0 : index
    %c0_14 = arith.constant 0 : index
    %35 = vector.load %arg7[%c0_12, %c0_13, %c0_14] : memref<1x2x32xf32, #tpu.memory_space<vmem>>, vector<1x1x32xf32>
    %36 = vector.shape_cast %35 : vector<1x1x32xf32> to vector<1x32xf32>
    %37 = vector.broadcast %36 : vector<1x32xf32> to vector<8x32xf32>
    %38 = arith.addf %34, %37 : vector<8x32xf32>
    %c0_i32_15 = arith.constant 0 : i32
    %39 = arith.sitofp %c0_i32_15 : i32 to f32
    %40 = vector.broadcast %39 : f32 to vector<2x32xf32>
    %41 = tpu.concatenate %40, %38 in 0 : vector<2x32xf32>, vector<8x32xf32> -> vector<10x32xf32>
    %42 = vector.broadcast %39 : f32 to vector<2x32xf32>
    %43 = tpu.concatenate %41, %42 in 0 : vector<10x32xf32>, vector<2x32xf32> -> vector<12x32xf32>
    %44 = vector.extract_strided_slice %43 {offsets = [0, 0], sizes = [8, 32], strides = [1, 1]} : vector<12x32xf32> to vector<8x32xf32>
    %45 = vector.extract_strided_slice %43 {offsets = [1, 0], sizes = [8, 32], strides = [1, 1]} : vector<12x32xf32> to vector<8x32xf32>
    %46 = vector.extract_strided_slice %43 {offsets = [2, 0], sizes = [8, 32], strides = [1, 1]} : vector<12x32xf32> to vector<8x32xf32>
    %47 = vector.extract_strided_slice %43 {offsets = [3, 0], sizes = [8, 32], strides = [1, 1]} : vector<12x32xf32> to vector<8x32xf32>
    %48 = vector.extract_strided_slice %43 {offsets = [4, 0], sizes = [8, 32], strides = [1, 1]} : vector<12x32xf32> to vector<8x32xf32>
    %49 = tpu.concatenate %44, %45, %46, %47, %48 in 1 : vector<8x32xf32>, vector<8x32xf32>, vector<8x32xf32>, vector<8x32xf32>, vector<8x32xf32> -> vector<8x160xf32>
    %c0_16 = arith.constant 0 : index
    %c0_17 = arith.constant 0 : index
    %50 = vector.load %arg5[%c0_16, %c0_17] : memref<160x32xf32, #tpu.memory_space<vmem>>, vector<160x32xf32>
    %cst_18 = arith.constant dense<0.000000e+00> : vector<8x32xf32>
    %51 = tpu.matmul %49, %50, %cst_18 {dimension_numbers = #tpu.dot_dimension_numbers<[1], [0], [0], [1], [0, 0, 1, 1], [], []>} : vector<8x160xf32>, vector<160x32xf32>, vector<8x32xf32> -> vector<8x32xf32>
    %c2 = arith.constant 2 : index
    %c0_19 = arith.constant 0 : index
    %52 = vector.load %arg6[%c2, %c0_19] : memref<3x32xf32, #tpu.memory_space<vmem>>, vector<1x32xf32>
    %53 = vector.broadcast %52 : vector<1x32xf32> to vector<8x32xf32>
    %54 = arith.addf %51, %53 : vector<8x32xf32>
    %cst_20 = arith.constant 0.000000e+00 : f32
    %55 = vector.broadcast %cst_20 : f32 to vector<8x32xf32>
    %56 = arith.maximumf %54, %55 : vector<8x32xf32>
    %c0_21 = arith.constant 0 : index
    %c1_22 = arith.constant 1 : index
    %c0_23 = arith.constant 0 : index
    %57 = vector.load %arg7[%c0_21, %c1_22, %c0_23] : memref<1x2x32xf32, #tpu.memory_space<vmem>>, vector<1x1x32xf32>
    %58 = vector.shape_cast %57 : vector<1x1x32xf32> to vector<1x32xf32>
    %59 = vector.broadcast %58 : vector<1x32xf32> to vector<8x32xf32>
    %60 = arith.addf %56, %59 : vector<8x32xf32>
    %c0_24 = arith.constant 0 : index
    %c0_25 = arith.constant 0 : index
    %61 = vector.load %arg9[%c0_24, %c0_25] : memref<32x128xf32, #tpu.memory_space<vmem>>, vector<32x128xf32>
    %cst_26 = arith.constant dense<0.000000e+00> : vector<8x128xf32>
    %62 = tpu.matmul %60, %61, %cst_26 {dimension_numbers = #tpu.dot_dimension_numbers<[1], [0], [0], [1], [0, 0, 1, 1], [], []>} : vector<8x32xf32>, vector<32x128xf32>, vector<8x128xf32> -> vector<8x128xf32>
    %c0_27 = arith.constant 0 : index
    %c0_28 = arith.constant 0 : index
    %63 = vector.load %arg10[%c0_27, %c0_28] : memref<1x128xf32, #tpu.memory_space<vmem>>, vector<1x128xf32>
    %64 = vector.broadcast %63 : vector<1x128xf32> to vector<8x128xf32>
    %65 = arith.addf %62, %64 : vector<8x128xf32>
    %c0_29 = arith.constant 0 : index
    %c0_30 = arith.constant 0 : index
    %66 = vector.load %arg21[%c0_29, %c0_30] : memref<8x128xf32, #tpu.memory_space<vmem>>, vector<8x128xf32>
    tpu.vector_store %arg21[%c0_29, %c0_30], %65 {strides = array<i32>} : memref<8x128xf32, #tpu.memory_space<vmem>>, vector<8x128xf32>,
    %c0_31 = arith.constant 0 : index
    %c0_32 = arith.constant 0 : index
    %67 = vector.load %arg11[%c0_31, %c0_32] : memref<16x64xf32, #tpu.memory_space<vmem>>, vector<16x64xf32>
    %c0_33 = arith.constant 0 : index
    %c0_34 = arith.constant 0 : index
    %68 = vector.load %arg12[%c0_33, %c0_34] : memref<16x64xf32, #tpu.memory_space<vmem>>, vector<16x64xf32>
    %cst_35 = arith.constant 0.000000e+00 : f32
    %69 = vector.broadcast %cst_35 : f32 to vector<1x16xf32>
    %cst_36 = arith.constant 0.000000e+00 : f32
    %70 = vector.broadcast %cst_36 : f32 to vector<1x16xf32>
    %c0_i32_37 = arith.constant 0 : i32
    %71 = arith.index_cast %c0_i32_37 : i32 to index
    %c0_38 = arith.constant 0 : index
    %72 = vector.load %arg21[%71, %c0_38] : memref<8x128xf32, #tpu.memory_space<vmem>>, vector<1x64xf32>
    %cst_39 = arith.constant dense<0.000000e+00> : vector<1x64xf32>
    %73 = tpu.matmul %69, %67, %cst_39 {dimension_numbers = #tpu.dot_dimension_numbers<[1], [0], [0], [1], [0, 0, 1, 1], [], []>} : vector<1x16xf32>, vector<16x64xf32>, vector<1x64xf32> -> vector<1x64xf32>
    %74 = arith.addf %72, %73 : vector<1x64xf32>
    %75 = vector.extract_strided_slice %74 {offsets = [0, 0], sizes = [1, 16], strides = [1, 1]} : vector<1x64xf32> to vector<1x16xf32>
    %76 = arith.negf %75 : vector<1x16xf32>
    %77 = math.exp %76 : vector<1x16xf32>
    %cst_40 = arith.constant 1.000000e+00 : f32
    %78 = vector.broadcast %cst_40 : f32 to vector<1x16xf32>
    %79 = arith.addf %78, %77 : vector<1x16xf32>
    %80 = arith.divf %78, %79 : vector<1x16xf32>
    %81 = vector.extract_strided_slice %74 {offsets = [0, 16], sizes = [1, 16], strides = [1, 1]} : vector<1x64xf32> to vector<1x16xf32>
    %82 = arith.negf %81 : vector<1x16xf32>
    %83 = math.exp %82 : vector<1x16xf32>
    %cst_41 = arith.constant 1.000000e+00 : f32
    %84 = vector.broadcast %cst_41 : f32 to vector<1x16xf32>
    %85 = arith.addf %84, %83 : vector<1x16xf32>
    %86 = arith.divf %84, %85 : vector<1x16xf32>
    %87 = vector.extract_strided_slice %74 {offsets = [0, 32], sizes = [1, 16], strides = [1, 1]} : vector<1x64xf32> to vector<1x16xf32>
    %88 = math.tanh %87 : vector<1x16xf32>
    %89 = vector.extract_strided_slice %74 {offsets = [0, 48], sizes = [1, 16], strides = [1, 1]} : vector<1x64xf32> to vector<1x16xf32>
    %90 = arith.negf %89 : vector<1x16xf32>
    %91 = math.exp %90 : vector<1x16xf32>
    %cst_42 = arith.constant 1.000000e+00 : f32
    %92 = vector.broadcast %cst_42 : f32 to vector<1x16xf32>
    %93 = arith.addf %92, %91 : vector<1x16xf32>
    %94 = arith.divf %92, %93 : vector<1x16xf32>
    %95 = arith.mulf %86, %70 : vector<1x16xf32>
    %96 = arith.mulf %80, %88 : vector<1x16xf32>
    %97 = arith.addf %95, %96 : vector<1x16xf32>
    %98 = math.tanh %97 : vector<1x16xf32>
    %99 = arith.mulf %94, %98 : vector<1x16xf32>
    %100 = arith.cmpi slt, %c0_i32_37, %1 : i32
    %cst_43 = arith.constant 0.000000e+00 : f32
    %101 = vector.broadcast %cst_43 : f32 to vector<1x16xf32>
    %102 = arith.select %100, %99, %101 : vector<1x16xf32>
    %103 = arith.index_cast %c0_i32_37 : i32 to index
    %c0_44 = arith.constant 0 : index
    %104 = vector.load %arg22[%103, %c0_44] : memref<8x32xf32, #tpu.memory_space<vmem>>, vector<1x16xf32>
    tpu.vector_store %arg22[%103, %c0_44], %102 {strides = array<i32>} : memref<8x32xf32, #tpu.memory_space<vmem>>, vector<1x16xf32>,
    %105 = arith.select %100, %99, %69 : vector<1x16xf32>
    %106 = arith.select %100, %97, %70 : vector<1x16xf32>
    %c1_i32 = arith.constant 1 : i32
    %107 = arith.index_cast %c1_i32 : i32 to index
    %c0_45 = arith.constant 0 : index
    %108 = vector.load %arg21[%107, %c0_45] : memref<8x128xf32, #tpu.memory_space<vmem>>, vector<1x64xf32>
    %cst_46 = arith.constant dense<0.000000e+00> : vector<1x64xf32>
    %109 = tpu.matmul %105, %67, %cst_46 {dimension_numbers = #tpu.dot_dimension_numbers<[1], [0], [0], [1], [0, 0, 1, 1], [], []>} : vector<1x16xf32>, vector<16x64xf32>, vector<1x64xf32> -> vector<1x64xf32>
    %110 = arith.addf %108, %109 : vector<1x64xf32>
    %111 = vector.extract_strided_slice %110 {offsets = [0, 0], sizes = [1, 16], strides = [1, 1]} : vector<1x64xf32> to vector<1x16xf32>
    %112 = arith.negf %111 : vector<1x16xf32>
    %113 = math.exp %112 : vector<1x16xf32>
    %cst_47 = arith.constant 1.000000e+00 : f32
    %114 = vector.broadcast %cst_47 : f32 to vector<1x16xf32>
    %115 = arith.addf %114, %113 : vector<1x16xf32>
    %116 = arith.divf %114, %115 : vector<1x16xf32>
    %117 = vector.extract_strided_slice %110 {offsets = [0, 16], sizes = [1, 16], strides = [1, 1]} : vector<1x64xf32> to vector<1x16xf32>
    %118 = arith.negf %117 : vector<1x16xf32>
    %119 = math.exp %118 : vector<1x16xf32>
    %cst_48 = arith.constant 1.000000e+00 : f32
    %120 = vector.broadcast %cst_48 : f32 to vector<1x16xf32>
    %121 = arith.addf %120, %119 : vector<1x16xf32>
    %122 = arith.divf %120, %121 : vector<1x16xf32>
    %123 = vector.extract_strided_slice %110 {offsets = [0, 32], sizes = [1, 16], strides = [1, 1]} : vector<1x64xf32> to vector<1x16xf32>
    %124 = math.tanh %123 : vector<1x16xf32>
    %125 = vector.extract_strided_slice %110 {offsets = [0, 48], sizes = [1, 16], strides = [1, 1]} : vector<1x64xf32> to vector<1x16xf32>
    %126 = arith.negf %125 : vector<1x16xf32>
    %127 = math.exp %126 : vector<1x16xf32>
    %cst_49 = arith.constant 1.000000e+00 : f32
    %128 = vector.broadcast %cst_49 : f32 to vector<1x16xf32>
    %129 = arith.addf %128, %127 : vector<1x16xf32>
    %130 = arith.divf %128, %129 : vector<1x16xf32>
    %131 = arith.mulf %122, %106 : vector<1x16xf32>
    %132 = arith.mulf %116, %124 : vector<1x16xf32>
    %133 = arith.addf %131, %132 : vector<1x16xf32>
    %134 = math.tanh %133 : vector<1x16xf32>
    %135 = arith.mulf %130, %134 : vector<1x16xf32>
    %136 = arith.cmpi slt, %c1_i32, %1 : i32
    %cst_50 = arith.constant 0.000000e+00 : f32
    %137 = vector.broadcast %cst_50 : f32 to vector<1x16xf32>
    %138 = arith.select %136, %135, %137 : vector<1x16xf32>
    %139 = arith.index_cast %c1_i32 : i32 to index
    %c0_51 = arith.constant 0 : index
    %140 = vector.load %arg22[%139, %c0_51] : memref<8x32xf32, #tpu.memory_space<vmem>>, vector<1x16xf32>
    tpu.vector_store %arg22[%139, %c0_51], %138 {strides = array<i32>} : memref<8x32xf32, #tpu.memory_space<vmem>>, vector<1x16xf32>,
    %141 = arith.select %136, %135, %105 : vector<1x16xf32>
    %142 = arith.select %136, %133, %106 : vector<1x16xf32>
    %c2_i32 = arith.constant 2 : i32
    %143 = arith.index_cast %c2_i32 : i32 to index
    %c0_52 = arith.constant 0 : index
    %144 = vector.load %arg21[%143, %c0_52] : memref<8x128xf32, #tpu.memory_space<vmem>>, vector<1x64xf32>
    %cst_53 = arith.constant dense<0.000000e+00> : vector<1x64xf32>
    %145 = tpu.matmul %141, %67, %cst_53 {dimension_numbers = #tpu.dot_dimension_numbers<[1], [0], [0], [1], [0, 0, 1, 1], [], []>} : vector<1x16xf32>, vector<16x64xf32>, vector<1x64xf32> -> vector<1x64xf32>
    %146 = arith.addf %144, %145 : vector<1x64xf32>
    %147 = vector.extract_strided_slice %146 {offsets = [0, 0], sizes = [1, 16], strides = [1, 1]} : vector<1x64xf32> to vector<1x16xf32>
    %148 = arith.negf %147 : vector<1x16xf32>
    %149 = math.exp %148 : vector<1x16xf32>
    %cst_54 = arith.constant 1.000000e+00 : f32
    %150 = vector.broadcast %cst_54 : f32 to vector<1x16xf32>
    %151 = arith.addf %150, %149 : vector<1x16xf32>
    %152 = arith.divf %150, %151 : vector<1x16xf32>
    %153 = vector.extract_strided_slice %146 {offsets = [0, 16], sizes = [1, 16], strides = [1, 1]} : vector<1x64xf32> to vector<1x16xf32>
    %154 = arith.negf %153 : vector<1x16xf32>
    %155 = math.exp %154 : vector<1x16xf32>
    %cst_55 = arith.constant 1.000000e+00 : f32
    %156 = vector.broadcast %cst_55 : f32 to vector<1x16xf32>
    %157 = arith.addf %156, %155 : vector<1x16xf32>
    %158 = arith.divf %156, %157 : vector<1x16xf32>
    %159 = vector.extract_strided_slice %146 {offsets = [0, 32], sizes = [1, 16], strides = [1, 1]} : vector<1x64xf32> to vector<1x16xf32>
    %160 = math.tanh %159 : vector<1x16xf32>
    %161 = vector.extract_strided_slice %146 {offsets = [0, 48], sizes = [1, 16], strides = [1, 1]} : vector<1x64xf32> to vector<1x16xf32>
    %162 = arith.negf %161 : vector<1x16xf32>
    %163 = math.exp %162 : vector<1x16xf32>
    %cst_56 = arith.constant 1.000000e+00 : f32
    %164 = vector.broadcast %cst_56 : f32 to vector<1x16xf32>
    %165 = arith.addf %164, %163 : vector<1x16xf32>
    %166 = arith.divf %164, %165 : vector<1x16xf32>
    %167 = arith.mulf %158, %142 : vector<1x16xf32>
    %168 = arith.mulf %152, %160 : vector<1x16xf32>
    %169 = arith.addf %167, %168 : vector<1x16xf32>
    %170 = math.tanh %169 : vector<1x16xf32>
    %171 = arith.mulf %166, %170 : vector<1x16xf32>
    %172 = arith.cmpi slt, %c2_i32, %1 : i32
    %cst_57 = arith.constant 0.000000e+00 : f32
    %173 = vector.broadcast %cst_57 : f32 to vector<1x16xf32>
    %174 = arith.select %172, %171, %173 : vector<1x16xf32>
    %175 = arith.index_cast %c2_i32 : i32 to index
    %c0_58 = arith.constant 0 : index
    %176 = vector.load %arg22[%175, %c0_58] : memref<8x32xf32, #tpu.memory_space<vmem>>, vector<1x16xf32>
    tpu.vector_store %arg22[%175, %c0_58], %174 {strides = array<i32>} : memref<8x32xf32, #tpu.memory_space<vmem>>, vector<1x16xf32>,
    %177 = arith.select %172, %171, %141 : vector<1x16xf32>
    %178 = arith.select %172, %169, %142 : vector<1x16xf32>
    %c3_i32 = arith.constant 3 : i32
    %179 = arith.index_cast %c3_i32 : i32 to index
    %c0_59 = arith.constant 0 : index
    %180 = vector.load %arg21[%179, %c0_59] : memref<8x128xf32, #tpu.memory_space<vmem>>, vector<1x64xf32>
    %cst_60 = arith.constant dense<0.000000e+00> : vector<1x64xf32>
    %181 = tpu.matmul %177, %67, %cst_60 {dimension_numbers = #tpu.dot_dimension_numbers<[1], [0], [0], [1], [0, 0, 1, 1], [], []>} : vector<1x16xf32>, vector<16x64xf32>, vector<1x64xf32> -> vector<1x64xf32>
    %182 = arith.addf %180, %181 : vector<1x64xf32>
    %183 = vector.extract_strided_slice %182 {offsets = [0, 0], sizes = [1, 16], strides = [1, 1]} : vector<1x64xf32> to vector<1x16xf32>
    %184 = arith.negf %183 : vector<1x16xf32>
    %185 = math.exp %184 : vector<1x16xf32>
    %cst_61 = arith.constant 1.000000e+00 : f32
    %186 = vector.broadcast %cst_61 : f32 to vector<1x16xf32>
    %187 = arith.addf %186, %185 : vector<1x16xf32>
    %188 = arith.divf %186, %187 : vector<1x16xf32>
    %189 = vector.extract_strided_slice %182 {offsets = [0, 16], sizes = [1, 16], strides = [1, 1]} : vector<1x64xf32> to vector<1x16xf32>
    %190 = arith.negf %189 : vector<1x16xf32>
    %191 = math.exp %190 : vector<1x16xf32>
    %cst_62 = arith.constant 1.000000e+00 : f32
    %192 = vector.broadcast %cst_62 : f32 to vector<1x16xf32>
    %193 = arith.addf %192, %191 : vector<1x16xf32>
    %194 = arith.divf %192, %193 : vector<1x16xf32>
    %195 = vector.extract_strided_slice %182 {offsets = [0, 32], sizes = [1, 16], strides = [1, 1]} : vector<1x64xf32> to vector<1x16xf32>
    %196 = math.tanh %195 : vector<1x16xf32>
    %197 = vector.extract_strided_slice %182 {offsets = [0, 48], sizes = [1, 16], strides = [1, 1]} : vector<1x64xf32> to vector<1x16xf32>
    %198 = arith.negf %197 : vector<1x16xf32>
    %199 = math.exp %198 : vector<1x16xf32>
    %cst_63 = arith.constant 1.000000e+00 : f32
    %200 = vector.broadcast %cst_63 : f32 to vector<1x16xf32>
    %201 = arith.addf %200, %199 : vector<1x16xf32>
    %202 = arith.divf %200, %201 : vector<1x16xf32>
    %203 = arith.mulf %194, %178 : vector<1x16xf32>
    %204 = arith.mulf %188, %196 : vector<1x16xf32>
    %205 = arith.addf %203, %204 : vector<1x16xf32>
    %206 = math.tanh %205 : vector<1x16xf32>
    %207 = arith.mulf %202, %206 : vector<1x16xf32>
    %208 = arith.cmpi slt, %c3_i32, %1 : i32
    %cst_64 = arith.constant 0.000000e+00 : f32
    %209 = vector.broadcast %cst_64 : f32 to vector<1x16xf32>
    %210 = arith.select %208, %207, %209 : vector<1x16xf32>
    %211 = arith.index_cast %c3_i32 : i32 to index
    %c0_65 = arith.constant 0 : index
    %212 = vector.load %arg22[%211, %c0_65] : memref<8x32xf32, #tpu.memory_space<vmem>>, vector<1x16xf32>
    tpu.vector_store %arg22[%211, %c0_65], %210 {strides = array<i32>} : memref<8x32xf32, #tpu.memory_space<vmem>>, vector<1x16xf32>,
    %213 = arith.select %208, %207, %177 : vector<1x16xf32>
    %214 = arith.select %208, %205, %178 : vector<1x16xf32>
    %c4_i32 = arith.constant 4 : i32
    %215 = arith.index_cast %c4_i32 : i32 to index
    %c0_66 = arith.constant 0 : index
    %216 = vector.load %arg21[%215, %c0_66] : memref<8x128xf32, #tpu.memory_space<vmem>>, vector<1x64xf32>
    %cst_67 = arith.constant dense<0.000000e+00> : vector<1x64xf32>
    %217 = tpu.matmul %213, %67, %cst_67 {dimension_numbers = #tpu.dot_dimension_numbers<[1], [0], [0], [1], [0, 0, 1, 1], [], []>} : vector<1x16xf32>, vector<16x64xf32>, vector<1x64xf32> -> vector<1x64xf32>
    %218 = arith.addf %216, %217 : vector<1x64xf32>
    %219 = vector.extract_strided_slice %218 {offsets = [0, 0], sizes = [1, 16], strides = [1, 1]} : vector<1x64xf32> to vector<1x16xf32>
    %220 = arith.negf %219 : vector<1x16xf32>
    %221 = math.exp %220 : vector<1x16xf32>
    %cst_68 = arith.constant 1.000000e+00 : f32
    %222 = vector.broadcast %cst_68 : f32 to vector<1x16xf32>
    %223 = arith.addf %222, %221 : vector<1x16xf32>
    %224 = arith.divf %222, %223 : vector<1x16xf32>
    %225 = vector.extract_strided_slice %218 {offsets = [0, 16], sizes = [1, 16], strides = [1, 1]} : vector<1x64xf32> to vector<1x16xf32>
    %226 = arith.negf %225 : vector<1x16xf32>
    %227 = math.exp %226 : vector<1x16xf32>
    %cst_69 = arith.constant 1.000000e+00 : f32
    %228 = vector.broadcast %cst_69 : f32 to vector<1x16xf32>
    %229 = arith.addf %228, %227 : vector<1x16xf32>
    %230 = arith.divf %228, %229 : vector<1x16xf32>
    %231 = vector.extract_strided_slice %218 {offsets = [0, 32], sizes = [1, 16], strides = [1, 1]} : vector<1x64xf32> to vector<1x16xf32>
    %232 = math.tanh %231 : vector<1x16xf32>
    %233 = vector.extract_strided_slice %218 {offsets = [0, 48], sizes = [1, 16], strides = [1, 1]} : vector<1x64xf32> to vector<1x16xf32>
    %234 = arith.negf %233 : vector<1x16xf32>
    %235 = math.exp %234 : vector<1x16xf32>
    %cst_70 = arith.constant 1.000000e+00 : f32
    %236 = vector.broadcast %cst_70 : f32 to vector<1x16xf32>
    %237 = arith.addf %236, %235 : vector<1x16xf32>
    %238 = arith.divf %236, %237 : vector<1x16xf32>
    %239 = arith.mulf %230, %214 : vector<1x16xf32>
    %240 = arith.mulf %224, %232 : vector<1x16xf32>
    %241 = arith.addf %239, %240 : vector<1x16xf32>
    %242 = math.tanh %241 : vector<1x16xf32>
    %243 = arith.mulf %238, %242 : vector<1x16xf32>
    %244 = arith.cmpi slt, %c4_i32, %1 : i32
    %cst_71 = arith.constant 0.000000e+00 : f32
    %245 = vector.broadcast %cst_71 : f32 to vector<1x16xf32>
    %246 = arith.select %244, %243, %245 : vector<1x16xf32>
    %247 = arith.index_cast %c4_i32 : i32 to index
    %c0_72 = arith.constant 0 : index
    %248 = vector.load %arg22[%247, %c0_72] : memref<8x32xf32, #tpu.memory_space<vmem>>, vector<1x16xf32>
    tpu.vector_store %arg22[%247, %c0_72], %246 {strides = array<i32>} : memref<8x32xf32, #tpu.memory_space<vmem>>, vector<1x16xf32>,
    %249 = arith.select %244, %243, %213 : vector<1x16xf32>
    %250 = arith.select %244, %241, %214 : vector<1x16xf32>
    %c5_i32 = arith.constant 5 : i32
    %251 = arith.index_cast %c5_i32 : i32 to index
    %c0_73 = arith.constant 0 : index
    %252 = vector.load %arg21[%251, %c0_73] : memref<8x128xf32, #tpu.memory_space<vmem>>, vector<1x64xf32>
    %cst_74 = arith.constant dense<0.000000e+00> : vector<1x64xf32>
    %253 = tpu.matmul %249, %67, %cst_74 {dimension_numbers = #tpu.dot_dimension_numbers<[1], [0], [0], [1], [0, 0, 1, 1], [], []>} : vector<1x16xf32>, vector<16x64xf32>, vector<1x64xf32> -> vector<1x64xf32>
    %254 = arith.addf %252, %253 : vector<1x64xf32>
    %255 = vector.extract_strided_slice %254 {offsets = [0, 0], sizes = [1, 16], strides = [1, 1]} : vector<1x64xf32> to vector<1x16xf32>
    %256 = arith.negf %255 : vector<1x16xf32>
    %257 = math.exp %256 : vector<1x16xf32>
    %cst_75 = arith.constant 1.000000e+00 : f32
    %258 = vector.broadcast %cst_75 : f32 to vector<1x16xf32>
    %259 = arith.addf %258, %257 : vector<1x16xf32>
    %260 = arith.divf %258, %259 : vector<1x16xf32>
    %261 = vector.extract_strided_slice %254 {offsets = [0, 16], sizes = [1, 16], strides = [1, 1]} : vector<1x64xf32> to vector<1x16xf32>
    %262 = arith.negf %261 : vector<1x16xf32>
    %263 = math.exp %262 : vector<1x16xf32>
    %cst_76 = arith.constant 1.000000e+00 : f32
    %264 = vector.broadcast %cst_76 : f32 to vector<1x16xf32>
    %265 = arith.addf %264, %263 : vector<1x16xf32>
    %266 = arith.divf %264, %265 : vector<1x16xf32>
    %267 = vector.extract_strided_slice %254 {offsets = [0, 32], sizes = [1, 16], strides = [1, 1]} : vector<1x64xf32> to vector<1x16xf32>
    %268 = math.tanh %267 : vector<1x16xf32>
    %269 = vector.extract_strided_slice %254 {offsets = [0, 48], sizes = [1, 16], strides = [1, 1]} : vector<1x64xf32> to vector<1x16xf32>
    %270 = arith.negf %269 : vector<1x16xf32>
    %271 = math.exp %270 : vector<1x16xf32>
    %cst_77 = arith.constant 1.000000e+00 : f32
    %272 = vector.broadcast %cst_77 : f32 to vector<1x16xf32>
    %273 = arith.addf %272, %271 : vector<1x16xf32>
    %274 = arith.divf %272, %273 : vector<1x16xf32>
    %275 = arith.mulf %266, %250 : vector<1x16xf32>
    %276 = arith.mulf %260, %268 : vector<1x16xf32>
    %277 = arith.addf %275, %276 : vector<1x16xf32>
    %278 = math.tanh %277 : vector<1x16xf32>
    %279 = arith.mulf %274, %278 : vector<1x16xf32>
    %280 = arith.cmpi slt, %c5_i32, %1 : i32
    %cst_78 = arith.constant 0.000000e+00 : f32
    %281 = vector.broadcast %cst_78 : f32 to vector<1x16xf32>
    %282 = arith.select %280, %279, %281 : vector<1x16xf32>
    %283 = arith.index_cast %c5_i32 : i32 to index
    %c0_79 = arith.constant 0 : index
    %284 = vector.load %arg22[%283, %c0_79] : memref<8x32xf32, #tpu.memory_space<vmem>>, vector<1x16xf32>
    tpu.vector_store %arg22[%283, %c0_79], %282 {strides = array<i32>} : memref<8x32xf32, #tpu.memory_space<vmem>>, vector<1x16xf32>,
    %285 = arith.select %280, %279, %249 : vector<1x16xf32>
    %286 = arith.select %280, %277, %250 : vector<1x16xf32>
    %c6_i32 = arith.constant 6 : i32
    %287 = arith.index_cast %c6_i32 : i32 to index
    %c0_80 = arith.constant 0 : index
    %288 = vector.load %arg21[%287, %c0_80] : memref<8x128xf32, #tpu.memory_space<vmem>>, vector<1x64xf32>
    %cst_81 = arith.constant dense<0.000000e+00> : vector<1x64xf32>
    %289 = tpu.matmul %285, %67, %cst_81 {dimension_numbers = #tpu.dot_dimension_numbers<[1], [0], [0], [1], [0, 0, 1, 1], [], []>} : vector<1x16xf32>, vector<16x64xf32>, vector<1x64xf32> -> vector<1x64xf32>
    %290 = arith.addf %288, %289 : vector<1x64xf32>
    %291 = vector.extract_strided_slice %290 {offsets = [0, 0], sizes = [1, 16], strides = [1, 1]} : vector<1x64xf32> to vector<1x16xf32>
    %292 = arith.negf %291 : vector<1x16xf32>
    %293 = math.exp %292 : vector<1x16xf32>
    %cst_82 = arith.constant 1.000000e+00 : f32
    %294 = vector.broadcast %cst_82 : f32 to vector<1x16xf32>
    %295 = arith.addf %294, %293 : vector<1x16xf32>
    %296 = arith.divf %294, %295 : vector<1x16xf32>
    %297 = vector.extract_strided_slice %290 {offsets = [0, 16], sizes = [1, 16], strides = [1, 1]} : vector<1x64xf32> to vector<1x16xf32>
    %298 = arith.negf %297 : vector<1x16xf32>
    %299 = math.exp %298 : vector<1x16xf32>
    %cst_83 = arith.constant 1.000000e+00 : f32
    %300 = vector.broadcast %cst_83 : f32 to vector<1x16xf32>
    %301 = arith.addf %300, %299 : vector<1x16xf32>
    %302 = arith.divf %300, %301 : vector<1x16xf32>
    %303 = vector.extract_strided_slice %290 {offsets = [0, 32], sizes = [1, 16], strides = [1, 1]} : vector<1x64xf32> to vector<1x16xf32>
    %304 = math.tanh %303 : vector<1x16xf32>
    %305 = vector.extract_strided_slice %290 {offsets = [0, 48], sizes = [1, 16], strides = [1, 1]} : vector<1x64xf32> to vector<1x16xf32>
    %306 = arith.negf %305 : vector<1x16xf32>
    %307 = math.exp %306 : vector<1x16xf32>
    %cst_84 = arith.constant 1.000000e+00 : f32
    %308 = vector.broadcast %cst_84 : f32 to vector<1x16xf32>
    %309 = arith.addf %308, %307 : vector<1x16xf32>
    %310 = arith.divf %308, %309 : vector<1x16xf32>
    %311 = arith.mulf %302, %286 : vector<1x16xf32>
    %312 = arith.mulf %296, %304 : vector<1x16xf32>
    %313 = arith.addf %311, %312 : vector<1x16xf32>
    %314 = math.tanh %313 : vector<1x16xf32>
    %315 = arith.mulf %310, %314 : vector<1x16xf32>
    %316 = arith.cmpi slt, %c6_i32, %1 : i32
    %cst_85 = arith.constant 0.000000e+00 : f32
    %317 = vector.broadcast %cst_85 : f32 to vector<1x16xf32>
    %318 = arith.select %316, %315, %317 : vector<1x16xf32>
    %319 = arith.index_cast %c6_i32 : i32 to index
    %c0_86 = arith.constant 0 : index
    %320 = vector.load %arg22[%319, %c0_86] : memref<8x32xf32, #tpu.memory_space<vmem>>, vector<1x16xf32>
    tpu.vector_store %arg22[%319, %c0_86], %318 {strides = array<i32>} : memref<8x32xf32, #tpu.memory_space<vmem>>, vector<1x16xf32>,
    %321 = arith.select %316, %315, %285 : vector<1x16xf32>
    %322 = arith.select %316, %313, %286 : vector<1x16xf32>
    %c7_i32 = arith.constant 7 : i32
    %323 = arith.index_cast %c7_i32 : i32 to index
    %c0_87 = arith.constant 0 : index
    %324 = vector.load %arg21[%323, %c0_87] : memref<8x128xf32, #tpu.memory_space<vmem>>, vector<1x64xf32>
    %cst_88 = arith.constant dense<0.000000e+00> : vector<1x64xf32>
    %325 = tpu.matmul %321, %67, %cst_88 {dimension_numbers = #tpu.dot_dimension_numbers<[1], [0], [0], [1], [0, 0, 1, 1], [], []>} : vector<1x16xf32>, vector<16x64xf32>, vector<1x64xf32> -> vector<1x64xf32>
    %326 = arith.addf %324, %325 : vector<1x64xf32>
    %327 = vector.extract_strided_slice %326 {offsets = [0, 0], sizes = [1, 16], strides = [1, 1]} : vector<1x64xf32> to vector<1x16xf32>
    %328 = arith.negf %327 : vector<1x16xf32>
    %329 = math.exp %328 : vector<1x16xf32>
    %cst_89 = arith.constant 1.000000e+00 : f32
    %330 = vector.broadcast %cst_89 : f32 to vector<1x16xf32>
    %331 = arith.addf %330, %329 : vector<1x16xf32>
    %332 = arith.divf %330, %331 : vector<1x16xf32>
    %333 = vector.extract_strided_slice %326 {offsets = [0, 16], sizes = [1, 16], strides = [1, 1]} : vector<1x64xf32> to vector<1x16xf32>
    %334 = arith.negf %333 : vector<1x16xf32>
    %335 = math.exp %334 : vector<1x16xf32>
    %cst_90 = arith.constant 1.000000e+00 : f32
    %336 = vector.broadcast %cst_90 : f32 to vector<1x16xf32>
    %337 = arith.addf %336, %335 : vector<1x16xf32>
    %338 = arith.divf %336, %337 : vector<1x16xf32>
    %339 = vector.extract_strided_slice %326 {offsets = [0, 32], sizes = [1, 16], strides = [1, 1]} : vector<1x64xf32> to vector<1x16xf32>
    %340 = math.tanh %339 : vector<1x16xf32>
    %341 = vector.extract_strided_slice %326 {offsets = [0, 48], sizes = [1, 16], strides = [1, 1]} : vector<1x64xf32> to vector<1x16xf32>
    %342 = arith.negf %341 : vector<1x16xf32>
    %343 = math.exp %342 : vector<1x16xf32>
    %cst_91 = arith.constant 1.000000e+00 : f32
    %344 = vector.broadcast %cst_91 : f32 to vector<1x16xf32>
    %345 = arith.addf %344, %343 : vector<1x16xf32>
    %346 = arith.divf %344, %345 : vector<1x16xf32>
    %347 = arith.mulf %338, %322 : vector<1x16xf32>
    %348 = arith.mulf %332, %340 : vector<1x16xf32>
    %349 = arith.addf %347, %348 : vector<1x16xf32>
    %350 = math.tanh %349 : vector<1x16xf32>
    %351 = arith.mulf %346, %350 : vector<1x16xf32>
    %352 = arith.cmpi slt, %c7_i32, %1 : i32
    %cst_92 = arith.constant 0.000000e+00 : f32
    %353 = vector.broadcast %cst_92 : f32 to vector<1x16xf32>
    %354 = arith.select %352, %351, %353 : vector<1x16xf32>
    %355 = arith.index_cast %c7_i32 : i32 to index
    %c0_93 = arith.constant 0 : index
    %356 = vector.load %arg22[%355, %c0_93] : memref<8x32xf32, #tpu.memory_space<vmem>>, vector<1x16xf32>
    tpu.vector_store %arg22[%355, %c0_93], %354 {strides = array<i32>} : memref<8x32xf32, #tpu.memory_space<vmem>>, vector<1x16xf32>,
    %357 = arith.select %352, %351, %321 : vector<1x16xf32>
    %358 = arith.select %352, %349, %322 : vector<1x16xf32>
    %c8_i32 = arith.constant 8 : i32
    %c0_i32_94 = arith.constant 0 : i32
    %c7_i32_95 = arith.constant 7 : i32
    %359 = arith.subi %c7_i32_95, %c0_i32_94 : i32
    %360 = arith.index_cast %359 : i32 to index
    %c64 = arith.constant 64 : index
    %361 = vector.load %arg21[%360, %c64] : memref<8x128xf32, #tpu.memory_space<vmem>>, vector<1x64xf32>
    %cst_96 = arith.constant dense<0.000000e+00> : vector<1x64xf32>
    %362 = tpu.matmul %69, %68, %cst_96 {dimension_numbers = #tpu.dot_dimension_numbers<[1], [0], [0], [1], [0, 0, 1, 1], [], []>} : vector<1x16xf32>, vector<16x64xf32>, vector<1x64xf32> -> vector<1x64xf32>
    %363 = arith.addf %361, %362 : vector<1x64xf32>
    %364 = vector.extract_strided_slice %363 {offsets = [0, 0], sizes = [1, 16], strides = [1, 1]} : vector<1x64xf32> to vector<1x16xf32>
    %365 = arith.negf %364 : vector<1x16xf32>
    %366 = math.exp %365 : vector<1x16xf32>
    %cst_97 = arith.constant 1.000000e+00 : f32
    %367 = vector.broadcast %cst_97 : f32 to vector<1x16xf32>
    %368 = arith.addf %367, %366 : vector<1x16xf32>
    %369 = arith.divf %367, %368 : vector<1x16xf32>
    %370 = vector.extract_strided_slice %363 {offsets = [0, 16], sizes = [1, 16], strides = [1, 1]} : vector<1x64xf32> to vector<1x16xf32>
    %371 = arith.negf %370 : vector<1x16xf32>
    %372 = math.exp %371 : vector<1x16xf32>
    %cst_98 = arith.constant 1.000000e+00 : f32
    %373 = vector.broadcast %cst_98 : f32 to vector<1x16xf32>
    %374 = arith.addf %373, %372 : vector<1x16xf32>
    %375 = arith.divf %373, %374 : vector<1x16xf32>
    %376 = vector.extract_strided_slice %363 {offsets = [0, 32], sizes = [1, 16], strides = [1, 1]} : vector<1x64xf32> to vector<1x16xf32>
    %377 = math.tanh %376 : vector<1x16xf32>
    %378 = vector.extract_strided_slice %363 {offsets = [0, 48], sizes = [1, 16], strides = [1, 1]} : vector<1x64xf32> to vector<1x16xf32>
    %379 = arith.negf %378 : vector<1x16xf32>
    %380 = math.exp %379 : vector<1x16xf32>
    %cst_99 = arith.constant 1.000000e+00 : f32
    %381 = vector.broadcast %cst_99 : f32 to vector<1x16xf32>
    %382 = arith.addf %381, %380 : vector<1x16xf32>
    %383 = arith.divf %381, %382 : vector<1x16xf32>
    %384 = arith.mulf %375, %70 : vector<1x16xf32>
    %385 = arith.mulf %369, %377 : vector<1x16xf32>
    %386 = arith.addf %384, %385 : vector<1x16xf32>
    %387 = math.tanh %386 : vector<1x16xf32>
    %388 = arith.mulf %383, %387 : vector<1x16xf32>
    %389 = arith.cmpi slt, %359, %1 : i32
    %cst_100 = arith.constant 0.000000e+00 : f32
    %390 = vector.broadcast %cst_100 : f32 to vector<1x16xf32>
    %391 = arith.select %389, %388, %390 : vector<1x16xf32>
    %392 = arith.index_cast %359 : i32 to index
    %c16 = arith.constant 16 : index
    %393 = vector.load %arg22[%392, %c16] : memref<8x32xf32, #tpu.memory_space<vmem>>, vector<1x16xf32>
    tpu.vector_store %arg22[%392, %c16], %391 {strides = array<i32>} : memref<8x32xf32, #tpu.memory_space<vmem>>, vector<1x16xf32>,
    %394 = arith.select %389, %388, %69 : vector<1x16xf32>
    %395 = arith.select %389, %386, %70 : vector<1x16xf32>
    %c1_i32_101 = arith.constant 1 : i32
    %c7_i32_102 = arith.constant 7 : i32
    %396 = arith.subi %c7_i32_102, %c1_i32_101 : i32
    %397 = arith.index_cast %396 : i32 to index
    %c64_103 = arith.constant 64 : index
    %398 = vector.load %arg21[%397, %c64_103] : memref<8x128xf32, #tpu.memory_space<vmem>>, vector<1x64xf32>
    %cst_104 = arith.constant dense<0.000000e+00> : vector<1x64xf32>
    %399 = tpu.matmul %394, %68, %cst_104 {dimension_numbers = #tpu.dot_dimension_numbers<[1], [0], [0], [1], [0, 0, 1, 1], [], []>} : vector<1x16xf32>, vector<16x64xf32>, vector<1x64xf32> -> vector<1x64xf32>
    %400 = arith.addf %398, %399 : vector<1x64xf32>
    %401 = vector.extract_strided_slice %400 {offsets = [0, 0], sizes = [1, 16], strides = [1, 1]} : vector<1x64xf32> to vector<1x16xf32>
    %402 = arith.negf %401 : vector<1x16xf32>
    %403 = math.exp %402 : vector<1x16xf32>
    %cst_105 = arith.constant 1.000000e+00 : f32
    %404 = vector.broadcast %cst_105 : f32 to vector<1x16xf32>
    %405 = arith.addf %404, %403 : vector<1x16xf32>
    %406 = arith.divf %404, %405 : vector<1x16xf32>
    %407 = vector.extract_strided_slice %400 {offsets = [0, 16], sizes = [1, 16], strides = [1, 1]} : vector<1x64xf32> to vector<1x16xf32>
    %408 = arith.negf %407 : vector<1x16xf32>
    %409 = math.exp %408 : vector<1x16xf32>
    %cst_106 = arith.constant 1.000000e+00 : f32
    %410 = vector.broadcast %cst_106 : f32 to vector<1x16xf32>
    %411 = arith.addf %410, %409 : vector<1x16xf32>
    %412 = arith.divf %410, %411 : vector<1x16xf32>
    %413 = vector.extract_strided_slice %400 {offsets = [0, 32], sizes = [1, 16], strides = [1, 1]} : vector<1x64xf32> to vector<1x16xf32>
    %414 = math.tanh %413 : vector<1x16xf32>
    %415 = vector.extract_strided_slice %400 {offsets = [0, 48], sizes = [1, 16], strides = [1, 1]} : vector<1x64xf32> to vector<1x16xf32>
    %416 = arith.negf %415 : vector<1x16xf32>
    %417 = math.exp %416 : vector<1x16xf32>
    %cst_107 = arith.constant 1.000000e+00 : f32
    %418 = vector.broadcast %cst_107 : f32 to vector<1x16xf32>
    %419 = arith.addf %418, %417 : vector<1x16xf32>
    %420 = arith.divf %418, %419 : vector<1x16xf32>
    %421 = arith.mulf %412, %395 : vector<1x16xf32>
    %422 = arith.mulf %406, %414 : vector<1x16xf32>
    %423 = arith.addf %421, %422 : vector<1x16xf32>
    %424 = math.tanh %423 : vector<1x16xf32>
    %425 = arith.mulf %420, %424 : vector<1x16xf32>
    %426 = arith.cmpi slt, %396, %1 : i32
    %cst_108 = arith.constant 0.000000e+00 : f32
    %427 = vector.broadcast %cst_108 : f32 to vector<1x16xf32>
    %428 = arith.select %426, %425, %427 : vector<1x16xf32>
    %429 = arith.index_cast %396 : i32 to index
    %c16_109 = arith.constant 16 : index
    %430 = vector.load %arg22[%429, %c16_109] : memref<8x32xf32, #tpu.memory_space<vmem>>, vector<1x16xf32>
    tpu.vector_store %arg22[%429, %c16_109], %428 {strides = array<i32>} : memref<8x32xf32, #tpu.memory_space<vmem>>, vector<1x16xf32>,
    %431 = arith.select %426, %425, %394 : vector<1x16xf32>
    %432 = arith.select %426, %423, %395 : vector<1x16xf32>
    %c2_i32_110 = arith.constant 2 : i32
    %c7_i32_111 = arith.constant 7 : i32
    %433 = arith.subi %c7_i32_111, %c2_i32_110 : i32
    %434 = arith.index_cast %433 : i32 to index
    %c64_112 = arith.constant 64 : index
    %435 = vector.load %arg21[%434, %c64_112] : memref<8x128xf32, #tpu.memory_space<vmem>>, vector<1x64xf32>
    %cst_113 = arith.constant dense<0.000000e+00> : vector<1x64xf32>
    %436 = tpu.matmul %431, %68, %cst_113 {dimension_numbers = #tpu.dot_dimension_numbers<[1], [0], [0], [1], [0, 0, 1, 1], [], []>} : vector<1x16xf32>, vector<16x64xf32>, vector<1x64xf32> -> vector<1x64xf32>
    %437 = arith.addf %435, %436 : vector<1x64xf32>
    %438 = vector.extract_strided_slice %437 {offsets = [0, 0], sizes = [1, 16], strides = [1, 1]} : vector<1x64xf32> to vector<1x16xf32>
    %439 = arith.negf %438 : vector<1x16xf32>
    %440 = math.exp %439 : vector<1x16xf32>
    %cst_114 = arith.constant 1.000000e+00 : f32
    %441 = vector.broadcast %cst_114 : f32 to vector<1x16xf32>
    %442 = arith.addf %441, %440 : vector<1x16xf32>
    %443 = arith.divf %441, %442 : vector<1x16xf32>
    %444 = vector.extract_strided_slice %437 {offsets = [0, 16], sizes = [1, 16], strides = [1, 1]} : vector<1x64xf32> to vector<1x16xf32>
    %445 = arith.negf %444 : vector<1x16xf32>
    %446 = math.exp %445 : vector<1x16xf32>
    %cst_115 = arith.constant 1.000000e+00 : f32
    %447 = vector.broadcast %cst_115 : f32 to vector<1x16xf32>
    %448 = arith.addf %447, %446 : vector<1x16xf32>
    %449 = arith.divf %447, %448 : vector<1x16xf32>
    %450 = vector.extract_strided_slice %437 {offsets = [0, 32], sizes = [1, 16], strides = [1, 1]} : vector<1x64xf32> to vector<1x16xf32>
    %451 = math.tanh %450 : vector<1x16xf32>
    %452 = vector.extract_strided_slice %437 {offsets = [0, 48], sizes = [1, 16], strides = [1, 1]} : vector<1x64xf32> to vector<1x16xf32>
    %453 = arith.negf %452 : vector<1x16xf32>
    %454 = math.exp %453 : vector<1x16xf32>
    %cst_116 = arith.constant 1.000000e+00 : f32
    %455 = vector.broadcast %cst_116 : f32 to vector<1x16xf32>
    %456 = arith.addf %455, %454 : vector<1x16xf32>
    %457 = arith.divf %455, %456 : vector<1x16xf32>
    %458 = arith.mulf %449, %432 : vector<1x16xf32>
    %459 = arith.mulf %443, %451 : vector<1x16xf32>
    %460 = arith.addf %458, %459 : vector<1x16xf32>
    %461 = math.tanh %460 : vector<1x16xf32>
    %462 = arith.mulf %457, %461 : vector<1x16xf32>
    %463 = arith.cmpi slt, %433, %1 : i32
    %cst_117 = arith.constant 0.000000e+00 : f32
    %464 = vector.broadcast %cst_117 : f32 to vector<1x16xf32>
    %465 = arith.select %463, %462, %464 : vector<1x16xf32>
    %466 = arith.index_cast %433 : i32 to index
    %c16_118 = arith.constant 16 : index
    %467 = vector.load %arg22[%466, %c16_118] : memref<8x32xf32, #tpu.memory_space<vmem>>, vector<1x16xf32>
    tpu.vector_store %arg22[%466, %c16_118], %465 {strides = array<i32>} : memref<8x32xf32, #tpu.memory_space<vmem>>, vector<1x16xf32>,
    %468 = arith.select %463, %462, %431 : vector<1x16xf32>
    %469 = arith.select %463, %460, %432 : vector<1x16xf32>
    %c3_i32_119 = arith.constant 3 : i32
    %c7_i32_120 = arith.constant 7 : i32
    %470 = arith.subi %c7_i32_120, %c3_i32_119 : i32
    %471 = arith.index_cast %470 : i32 to index
    %c64_121 = arith.constant 64 : index
    %472 = vector.load %arg21[%471, %c64_121] : memref<8x128xf32, #tpu.memory_space<vmem>>, vector<1x64xf32>
    %cst_122 = arith.constant dense<0.000000e+00> : vector<1x64xf32>
    %473 = tpu.matmul %468, %68, %cst_122 {dimension_numbers = #tpu.dot_dimension_numbers<[1], [0], [0], [1], [0, 0, 1, 1], [], []>} : vector<1x16xf32>, vector<16x64xf32>, vector<1x64xf32> -> vector<1x64xf32>
    %474 = arith.addf %472, %473 : vector<1x64xf32>
    %475 = vector.extract_strided_slice %474 {offsets = [0, 0], sizes = [1, 16], strides = [1, 1]} : vector<1x64xf32> to vector<1x16xf32>
    %476 = arith.negf %475 : vector<1x16xf32>
    %477 = math.exp %476 : vector<1x16xf32>
    %cst_123 = arith.constant 1.000000e+00 : f32
    %478 = vector.broadcast %cst_123 : f32 to vector<1x16xf32>
    %479 = arith.addf %478, %477 : vector<1x16xf32>
    %480 = arith.divf %478, %479 : vector<1x16xf32>
    %481 = vector.extract_strided_slice %474 {offsets = [0, 16], sizes = [1, 16], strides = [1, 1]} : vector<1x64xf32> to vector<1x16xf32>
    %482 = arith.negf %481 : vector<1x16xf32>
    %483 = math.exp %482 : vector<1x16xf32>
    %cst_124 = arith.constant 1.000000e+00 : f32
    %484 = vector.broadcast %cst_124 : f32 to vector<1x16xf32>
    %485 = arith.addf %484, %483 : vector<1x16xf32>
    %486 = arith.divf %484, %485 : vector<1x16xf32>
    %487 = vector.extract_strided_slice %474 {offsets = [0, 32], sizes = [1, 16], strides = [1, 1]} : vector<1x64xf32> to vector<1x16xf32>
    %488 = math.tanh %487 : vector<1x16xf32>
    %489 = vector.extract_strided_slice %474 {offsets = [0, 48], sizes = [1, 16], strides = [1, 1]} : vector<1x64xf32> to vector<1x16xf32>
    %490 = arith.negf %489 : vector<1x16xf32>
    %491 = math.exp %490 : vector<1x16xf32>
    %cst_125 = arith.constant 1.000000e+00 : f32
    %492 = vector.broadcast %cst_125 : f32 to vector<1x16xf32>
    %493 = arith.addf %492, %491 : vector<1x16xf32>
    %494 = arith.divf %492, %493 : vector<1x16xf32>
    %495 = arith.mulf %486, %469 : vector<1x16xf32>
    %496 = arith.mulf %480, %488 : vector<1x16xf32>
    %497 = arith.addf %495, %496 : vector<1x16xf32>
    %498 = math.tanh %497 : vector<1x16xf32>
    %499 = arith.mulf %494, %498 : vector<1x16xf32>
    %500 = arith.cmpi slt, %470, %1 : i32
    %cst_126 = arith.constant 0.000000e+00 : f32
    %501 = vector.broadcast %cst_126 : f32 to vector<1x16xf32>
    %502 = arith.select %500, %499, %501 : vector<1x16xf32>
    %503 = arith.index_cast %470 : i32 to index
    %c16_127 = arith.constant 16 : index
    %504 = vector.load %arg22[%503, %c16_127] : memref<8x32xf32, #tpu.memory_space<vmem>>, vector<1x16xf32>
    tpu.vector_store %arg22[%503, %c16_127], %502 {strides = array<i32>} : memref<8x32xf32, #tpu.memory_space<vmem>>, vector<1x16xf32>,
    %505 = arith.select %500, %499, %468 : vector<1x16xf32>
    %506 = arith.select %500, %497, %469 : vector<1x16xf32>
    %c4_i32_128 = arith.constant 4 : i32
    %c7_i32_129 = arith.constant 7 : i32
    %507 = arith.subi %c7_i32_129, %c4_i32_128 : i32
    %508 = arith.index_cast %507 : i32 to index
    %c64_130 = arith.constant 64 : index
    %509 = vector.load %arg21[%508, %c64_130] : memref<8x128xf32, #tpu.memory_space<vmem>>, vector<1x64xf32>
    %cst_131 = arith.constant dense<0.000000e+00> : vector<1x64xf32>
    %510 = tpu.matmul %505, %68, %cst_131 {dimension_numbers = #tpu.dot_dimension_numbers<[1], [0], [0], [1], [0, 0, 1, 1], [], []>} : vector<1x16xf32>, vector<16x64xf32>, vector<1x64xf32> -> vector<1x64xf32>
    %511 = arith.addf %509, %510 : vector<1x64xf32>
    %512 = vector.extract_strided_slice %511 {offsets = [0, 0], sizes = [1, 16], strides = [1, 1]} : vector<1x64xf32> to vector<1x16xf32>
    %513 = arith.negf %512 : vector<1x16xf32>
    %514 = math.exp %513 : vector<1x16xf32>
    %cst_132 = arith.constant 1.000000e+00 : f32
    %515 = vector.broadcast %cst_132 : f32 to vector<1x16xf32>
    %516 = arith.addf %515, %514 : vector<1x16xf32>
    %517 = arith.divf %515, %516 : vector<1x16xf32>
    %518 = vector.extract_strided_slice %511 {offsets = [0, 16], sizes = [1, 16], strides = [1, 1]} : vector<1x64xf32> to vector<1x16xf32>
    %519 = arith.negf %518 : vector<1x16xf32>
    %520 = math.exp %519 : vector<1x16xf32>
    %cst_133 = arith.constant 1.000000e+00 : f32
    %521 = vector.broadcast %cst_133 : f32 to vector<1x16xf32>
    %522 = arith.addf %521, %520 : vector<1x16xf32>
    %523 = arith.divf %521, %522 : vector<1x16xf32>
    %524 = vector.extract_strided_slice %511 {offsets = [0, 32], sizes = [1, 16], strides = [1, 1]} : vector<1x64xf32> to vector<1x16xf32>
    %525 = math.tanh %524 : vector<1x16xf32>
    %526 = vector.extract_strided_slice %511 {offsets = [0, 48], sizes = [1, 16], strides = [1, 1]} : vector<1x64xf32> to vector<1x16xf32>
    %527 = arith.negf %526 : vector<1x16xf32>
    %528 = math.exp %527 : vector<1x16xf32>
    %cst_134 = arith.constant 1.000000e+00 : f32
    %529 = vector.broadcast %cst_134 : f32 to vector<1x16xf32>
    %530 = arith.addf %529, %528 : vector<1x16xf32>
    %531 = arith.divf %529, %530 : vector<1x16xf32>
    %532 = arith.mulf %523, %506 : vector<1x16xf32>
    %533 = arith.mulf %517, %525 : vector<1x16xf32>
    %534 = arith.addf %532, %533 : vector<1x16xf32>
    %535 = math.tanh %534 : vector<1x16xf32>
    %536 = arith.mulf %531, %535 : vector<1x16xf32>
    %537 = arith.cmpi slt, %507, %1 : i32
    %cst_135 = arith.constant 0.000000e+00 : f32
    %538 = vector.broadcast %cst_135 : f32 to vector<1x16xf32>
    %539 = arith.select %537, %536, %538 : vector<1x16xf32>
    %540 = arith.index_cast %507 : i32 to index
    %c16_136 = arith.constant 16 : index
    %541 = vector.load %arg22[%540, %c16_136] : memref<8x32xf32, #tpu.memory_space<vmem>>, vector<1x16xf32>
    tpu.vector_store %arg22[%540, %c16_136], %539 {strides = array<i32>} : memref<8x32xf32, #tpu.memory_space<vmem>>, vector<1x16xf32>,
    %542 = arith.select %537, %536, %505 : vector<1x16xf32>
    %543 = arith.select %537, %534, %506 : vector<1x16xf32>
    %c5_i32_137 = arith.constant 5 : i32
    %c7_i32_138 = arith.constant 7 : i32
    %544 = arith.subi %c7_i32_138, %c5_i32_137 : i32
    %545 = arith.index_cast %544 : i32 to index
    %c64_139 = arith.constant 64 : index
    %546 = vector.load %arg21[%545, %c64_139] : memref<8x128xf32, #tpu.memory_space<vmem>>, vector<1x64xf32>
    %cst_140 = arith.constant dense<0.000000e+00> : vector<1x64xf32>
    %547 = tpu.matmul %542, %68, %cst_140 {dimension_numbers = #tpu.dot_dimension_numbers<[1], [0], [0], [1], [0, 0, 1, 1], [], []>} : vector<1x16xf32>, vector<16x64xf32>, vector<1x64xf32> -> vector<1x64xf32>
    %548 = arith.addf %546, %547 : vector<1x64xf32>
    %549 = vector.extract_strided_slice %548 {offsets = [0, 0], sizes = [1, 16], strides = [1, 1]} : vector<1x64xf32> to vector<1x16xf32>
    %550 = arith.negf %549 : vector<1x16xf32>
    %551 = math.exp %550 : vector<1x16xf32>
    %cst_141 = arith.constant 1.000000e+00 : f32
    %552 = vector.broadcast %cst_141 : f32 to vector<1x16xf32>
    %553 = arith.addf %552, %551 : vector<1x16xf32>
    %554 = arith.divf %552, %553 : vector<1x16xf32>
    %555 = vector.extract_strided_slice %548 {offsets = [0, 16], sizes = [1, 16], strides = [1, 1]} : vector<1x64xf32> to vector<1x16xf32>
    %556 = arith.negf %555 : vector<1x16xf32>
    %557 = math.exp %556 : vector<1x16xf32>
    %cst_142 = arith.constant 1.000000e+00 : f32
    %558 = vector.broadcast %cst_142 : f32 to vector<1x16xf32>
    %559 = arith.addf %558, %557 : vector<1x16xf32>
    %560 = arith.divf %558, %559 : vector<1x16xf32>
    %561 = vector.extract_strided_slice %548 {offsets = [0, 32], sizes = [1, 16], strides = [1, 1]} : vector<1x64xf32> to vector<1x16xf32>
    %562 = math.tanh %561 : vector<1x16xf32>
    %563 = vector.extract_strided_slice %548 {offsets = [0, 48], sizes = [1, 16], strides = [1, 1]} : vector<1x64xf32> to vector<1x16xf32>
    %564 = arith.negf %563 : vector<1x16xf32>
    %565 = math.exp %564 : vector<1x16xf32>
    %cst_143 = arith.constant 1.000000e+00 : f32
    %566 = vector.broadcast %cst_143 : f32 to vector<1x16xf32>
    %567 = arith.addf %566, %565 : vector<1x16xf32>
    %568 = arith.divf %566, %567 : vector<1x16xf32>
    %569 = arith.mulf %560, %543 : vector<1x16xf32>
    %570 = arith.mulf %554, %562 : vector<1x16xf32>
    %571 = arith.addf %569, %570 : vector<1x16xf32>
    %572 = math.tanh %571 : vector<1x16xf32>
    %573 = arith.mulf %568, %572 : vector<1x16xf32>
    %574 = arith.cmpi slt, %544, %1 : i32
    %cst_144 = arith.constant 0.000000e+00 : f32
    %575 = vector.broadcast %cst_144 : f32 to vector<1x16xf32>
    %576 = arith.select %574, %573, %575 : vector<1x16xf32>
    %577 = arith.index_cast %544 : i32 to index
    %c16_145 = arith.constant 16 : index
    %578 = vector.load %arg22[%577, %c16_145] : memref<8x32xf32, #tpu.memory_space<vmem>>, vector<1x16xf32>
    tpu.vector_store %arg22[%577, %c16_145], %576 {strides = array<i32>} : memref<8x32xf32, #tpu.memory_space<vmem>>, vector<1x16xf32>,
    %579 = arith.select %574, %573, %542 : vector<1x16xf32>
    %580 = arith.select %574, %571, %543 : vector<1x16xf32>
    %c6_i32_146 = arith.constant 6 : i32
    %c7_i32_147 = arith.constant 7 : i32
    %581 = arith.subi %c7_i32_147, %c6_i32_146 : i32
    %582 = arith.index_cast %581 : i32 to index
    %c64_148 = arith.constant 64 : index
    %583 = vector.load %arg21[%582, %c64_148] : memref<8x128xf32, #tpu.memory_space<vmem>>, vector<1x64xf32>
    %cst_149 = arith.constant dense<0.000000e+00> : vector<1x64xf32>
    %584 = tpu.matmul %579, %68, %cst_149 {dimension_numbers = #tpu.dot_dimension_numbers<[1], [0], [0], [1], [0, 0, 1, 1], [], []>} : vector<1x16xf32>, vector<16x64xf32>, vector<1x64xf32> -> vector<1x64xf32>
    %585 = arith.addf %583, %584 : vector<1x64xf32>
    %586 = vector.extract_strided_slice %585 {offsets = [0, 0], sizes = [1, 16], strides = [1, 1]} : vector<1x64xf32> to vector<1x16xf32>
    %587 = arith.negf %586 : vector<1x16xf32>
    %588 = math.exp %587 : vector<1x16xf32>
    %cst_150 = arith.constant 1.000000e+00 : f32
    %589 = vector.broadcast %cst_150 : f32 to vector<1x16xf32>
    %590 = arith.addf %589, %588 : vector<1x16xf32>
    %591 = arith.divf %589, %590 : vector<1x16xf32>
    %592 = vector.extract_strided_slice %585 {offsets = [0, 16], sizes = [1, 16], strides = [1, 1]} : vector<1x64xf32> to vector<1x16xf32>
    %593 = arith.negf %592 : vector<1x16xf32>
    %594 = math.exp %593 : vector<1x16xf32>
    %cst_151 = arith.constant 1.000000e+00 : f32
    %595 = vector.broadcast %cst_151 : f32 to vector<1x16xf32>
    %596 = arith.addf %595, %594 : vector<1x16xf32>
    %597 = arith.divf %595, %596 : vector<1x16xf32>
    %598 = vector.extract_strided_slice %585 {offsets = [0, 32], sizes = [1, 16], strides = [1, 1]} : vector<1x64xf32> to vector<1x16xf32>
    %599 = math.tanh %598 : vector<1x16xf32>
    %600 = vector.extract_strided_slice %585 {offsets = [0, 48], sizes = [1, 16], strides = [1, 1]} : vector<1x64xf32> to vector<1x16xf32>
    %601 = arith.negf %600 : vector<1x16xf32>
    %602 = math.exp %601 : vector<1x16xf32>
    %cst_152 = arith.constant 1.000000e+00 : f32
    %603 = vector.broadcast %cst_152 : f32 to vector<1x16xf32>
    %604 = arith.addf %603, %602 : vector<1x16xf32>
    %605 = arith.divf %603, %604 : vector<1x16xf32>
    %606 = arith.mulf %597, %580 : vector<1x16xf32>
    %607 = arith.mulf %591, %599 : vector<1x16xf32>
    %608 = arith.addf %606, %607 : vector<1x16xf32>
    %609 = math.tanh %608 : vector<1x16xf32>
    %610 = arith.mulf %605, %609 : vector<1x16xf32>
    %611 = arith.cmpi slt, %581, %1 : i32
    %cst_153 = arith.constant 0.000000e+00 : f32
    %612 = vector.broadcast %cst_153 : f32 to vector<1x16xf32>
    %613 = arith.select %611, %610, %612 : vector<1x16xf32>
    %614 = arith.index_cast %581 : i32 to index
    %c16_154 = arith.constant 16 : index
    %615 = vector.load %arg22[%614, %c16_154] : memref<8x32xf32, #tpu.memory_space<vmem>>, vector<1x16xf32>
    tpu.vector_store %arg22[%614, %c16_154], %613 {strides = array<i32>} : memref<8x32xf32, #tpu.memory_space<vmem>>, vector<1x16xf32>,
    %616 = arith.select %611, %610, %579 : vector<1x16xf32>
    %617 = arith.select %611, %608, %580 : vector<1x16xf32>
    %c7_i32_155 = arith.constant 7 : i32
    %c7_i32_156 = arith.constant 7 : i32
    %618 = arith.subi %c7_i32_156, %c7_i32_155 : i32
    %619 = arith.index_cast %618 : i32 to index
    %c64_157 = arith.constant 64 : index
    %620 = vector.load %arg21[%619, %c64_157] : memref<8x128xf32, #tpu.memory_space<vmem>>, vector<1x64xf32>
    %cst_158 = arith.constant dense<0.000000e+00> : vector<1x64xf32>
    %621 = tpu.matmul %616, %68, %cst_158 {dimension_numbers = #tpu.dot_dimension_numbers<[1], [0], [0], [1], [0, 0, 1, 1], [], []>} : vector<1x16xf32>, vector<16x64xf32>, vector<1x64xf32> -> vector<1x64xf32>
    %622 = arith.addf %620, %621 : vector<1x64xf32>
    %623 = vector.extract_strided_slice %622 {offsets = [0, 0], sizes = [1, 16], strides = [1, 1]} : vector<1x64xf32> to vector<1x16xf32>
    %624 = arith.negf %623 : vector<1x16xf32>
    %625 = math.exp %624 : vector<1x16xf32>
    %cst_159 = arith.constant 1.000000e+00 : f32
    %626 = vector.broadcast %cst_159 : f32 to vector<1x16xf32>
    %627 = arith.addf %626, %625 : vector<1x16xf32>
    %628 = arith.divf %626, %627 : vector<1x16xf32>
    %629 = vector.extract_strided_slice %622 {offsets = [0, 16], sizes = [1, 16], strides = [1, 1]} : vector<1x64xf32> to vector<1x16xf32>
    %630 = arith.negf %629 : vector<1x16xf32>
    %631 = math.exp %630 : vector<1x16xf32>
    %cst_160 = arith.constant 1.000000e+00 : f32
    %632 = vector.broadcast %cst_160 : f32 to vector<1x16xf32>
    %633 = arith.addf %632, %631 : vector<1x16xf32>
    %634 = arith.divf %632, %633 : vector<1x16xf32>
    %635 = vector.extract_strided_slice %622 {offsets = [0, 32], sizes = [1, 16], strides = [1, 1]} : vector<1x64xf32> to vector<1x16xf32>
    %636 = math.tanh %635 : vector<1x16xf32>
    %637 = vector.extract_strided_slice %622 {offsets = [0, 48], sizes = [1, 16], strides = [1, 1]} : vector<1x64xf32> to vector<1x16xf32>
    %638 = arith.negf %637 : vector<1x16xf32>
    %639 = math.exp %638 : vector<1x16xf32>
    %cst_161 = arith.constant 1.000000e+00 : f32
    %640 = vector.broadcast %cst_161 : f32 to vector<1x16xf32>
    %641 = arith.addf %640, %639 : vector<1x16xf32>
    %642 = arith.divf %640, %641 : vector<1x16xf32>
    %643 = arith.mulf %634, %617 : vector<1x16xf32>
    %644 = arith.mulf %628, %636 : vector<1x16xf32>
    %645 = arith.addf %643, %644 : vector<1x16xf32>
    %646 = math.tanh %645 : vector<1x16xf32>
    %647 = arith.mulf %642, %646 : vector<1x16xf32>
    %648 = arith.cmpi slt, %618, %1 : i32
    %cst_162 = arith.constant 0.000000e+00 : f32
    %649 = vector.broadcast %cst_162 : f32 to vector<1x16xf32>
    %650 = arith.select %648, %647, %649 : vector<1x16xf32>
    %651 = arith.index_cast %618 : i32 to index
    %c16_163 = arith.constant 16 : index
    %652 = vector.load %arg22[%651, %c16_163] : memref<8x32xf32, #tpu.memory_space<vmem>>, vector<1x16xf32>
    tpu.vector_store %arg22[%651, %c16_163], %650 {strides = array<i32>} : memref<8x32xf32, #tpu.memory_space<vmem>>, vector<1x16xf32>,
    %653 = arith.select %648, %647, %616 : vector<1x16xf32>
    %654 = arith.select %648, %645, %617 : vector<1x16xf32>
    %c8_i32_164 = arith.constant 8 : i32
    %c0_165 = arith.constant 0 : index
    %c0_166 = arith.constant 0 : index
    %655 = vector.load %arg22[%c0_165, %c0_166] : memref<8x32xf32, #tpu.memory_space<vmem>>, vector<8x32xf32>
    %c0_167 = arith.constant 0 : index
    %c0_168 = arith.constant 0 : index
    %c0_169 = arith.constant 0 : index
    %656 = vector.load %arg8[%c0_167, %c0_168, %c0_169] : memref<1x1x32xf32, #tpu.memory_space<vmem>>, vector<1x1x32xf32>
    %657 = vector.shape_cast %656 : vector<1x1x32xf32> to vector<1x32xf32>
    %658 = vector.broadcast %657 : vector<1x32xf32> to vector<8x32xf32>
    %659 = arith.addf %655, %658 : vector<8x32xf32>
    %c0_170 = arith.constant 0 : index
    %c0_171 = arith.constant 0 : index
    %c0_172 = arith.constant 0 : index
    %660 = vector.load %arg19[%c0_170, %c0_171, %c0_172] : memref<1x8x32xf32, #tpu.memory_space<vmem>>, vector<1x8x32xf32>
    %661 = vector.shape_cast %660 : vector<1x8x32xf32> to vector<8x32xf32>
    %662 = vector.shape_cast %659 : vector<8x32xf32> to vector<1x8x32xf32>
    tpu.vector_store %arg19[%c0_170, %c0_171, %c0_172], %662 {strides = array<i32>} : memref<1x8x32xf32, #tpu.memory_space<vmem>>, vector<1x8x32xf32>,
    %c0_173 = arith.constant 0 : index
    %c0_174 = arith.constant 0 : index
    %663 = vector.load %arg13[%c0_173, %c0_174] : memref<32x48xf32, #tpu.memory_space<vmem>>, vector<32x48xf32>
    %cst_175 = arith.constant dense<0.000000e+00> : vector<8x48xf32>
    %664 = tpu.matmul %659, %663, %cst_175 {dimension_numbers = #tpu.dot_dimension_numbers<[1], [0], [0], [1], [0, 0, 1, 1], [], []>} : vector<8x32xf32>, vector<32x48xf32>, vector<8x48xf32> -> vector<8x48xf32>
    %c0_176 = arith.constant 0 : index
    %c0_177 = arith.constant 0 : index
    %665 = vector.load %arg14[%c0_176, %c0_177] : memref<1x48xf32, #tpu.memory_space<vmem>>, vector<1x48xf32>
    %666 = vector.broadcast %665 : vector<1x48xf32> to vector<8x48xf32>
    %667 = arith.addf %664, %666 : vector<8x48xf32>
    %c0_178 = arith.constant 0 : index
    %c0_179 = arith.constant 0 : index
    %668 = vector.load %arg23[%c0_178, %c0_179] : memref<8x48xf32, #tpu.memory_space<vmem>>, vector<8x48xf32>
    tpu.vector_store %arg23[%c0_178, %c0_179], %667 {strides = array<i32>} : memref<8x48xf32, #tpu.memory_space<vmem>>, vector<8x48xf32>,
    %c0_180 = arith.constant 0 : index
    %c0_181 = arith.constant 0 : index
    %669 = vector.load %arg15[%c0_180, %c0_181] : memref<16x96xf32, #tpu.memory_space<vmem>>, vector<16x96xf32>
    %c0_182 = arith.constant 0 : index
    %c0_183 = arith.constant 0 : index
    %670 = vector.load %arg16[%c0_182, %c0_183] : memref<1x96xf32, #tpu.memory_space<vmem>>, vector<1x96xf32>
    %cst_184 = arith.constant 0.000000e+00 : f32
    %671 = vector.broadcast %cst_184 : f32 to vector<1x16xf32>
    %cst_185 = arith.constant 0.000000e+00 : f32
    %672 = vector.broadcast %cst_185 : f32 to vector<1x48xf32>
    %673 = vector.extract_strided_slice %670 {offsets = [0, 48], sizes = [1, 48], strides = [1, 1]} : vector<1x96xf32> to vector<1x48xf32>
    %c0_i32_186 = arith.constant 0 : i32
    %674 = arith.index_cast %c0_i32_186 : i32 to index
    %c0_187 = arith.constant 0 : index
    %675 = vector.load %arg23[%674, %c0_187] : memref<8x48xf32, #tpu.memory_space<vmem>>, vector<1x48xf32>
    %676 = arith.addf %675, %672 : vector<1x48xf32>
    %677 = vector.extract_strided_slice %676 {offsets = [0, 0], sizes = [1, 16], strides = [1, 1]} : vector<1x48xf32> to vector<1x16xf32>
    %678 = vector.extract_strided_slice %673 {offsets = [0, 0], sizes = [1, 16], strides = [1, 1]} : vector<1x48xf32> to vector<1x16xf32>
    %679 = arith.addf %677, %678 : vector<1x16xf32>
    %680 = arith.negf %679 : vector<1x16xf32>
    %681 = math.exp %680 : vector<1x16xf32>
    %cst_188 = arith.constant 1.000000e+00 : f32
    %682 = vector.broadcast %cst_188 : f32 to vector<1x16xf32>
    %683 = arith.addf %682, %681 : vector<1x16xf32>
    %684 = arith.divf %682, %683 : vector<1x16xf32>
    %685 = vector.extract_strided_slice %676 {offsets = [0, 16], sizes = [1, 16], strides = [1, 1]} : vector<1x48xf32> to vector<1x16xf32>
    %686 = vector.extract_strided_slice %673 {offsets = [0, 16], sizes = [1, 16], strides = [1, 1]} : vector<1x48xf32> to vector<1x16xf32>
    %687 = arith.addf %685, %686 : vector<1x16xf32>
    %688 = arith.negf %687 : vector<1x16xf32>
    %689 = math.exp %688 : vector<1x16xf32>
    %cst_189 = arith.constant 1.000000e+00 : f32
    %690 = vector.broadcast %cst_189 : f32 to vector<1x16xf32>
    %691 = arith.addf %690, %689 : vector<1x16xf32>
    %692 = arith.divf %690, %691 : vector<1x16xf32>
    %693 = vector.extract_strided_slice %676 {offsets = [0, 32], sizes = [1, 16], strides = [1, 1]} : vector<1x48xf32> to vector<1x16xf32>
    %694 = vector.extract_strided_slice %673 {offsets = [0, 32], sizes = [1, 16], strides = [1, 1]} : vector<1x48xf32> to vector<1x16xf32>
    %695 = arith.mulf %684, %694 : vector<1x16xf32>
    %696 = arith.addf %693, %695 : vector<1x16xf32>
    %697 = math.tanh %696 : vector<1x16xf32>
    %cst_190 = arith.constant 1.000000e+00 : f32
    %698 = vector.broadcast %cst_190 : f32 to vector<1x16xf32>
    %699 = arith.subf %698, %692 : vector<1x16xf32>
    %700 = arith.mulf %699, %697 : vector<1x16xf32>
    %701 = arith.mulf %692, %671 : vector<1x16xf32>
    %702 = arith.addf %700, %701 : vector<1x16xf32>
    %703 = arith.index_cast %c0_i32_186 : i32 to index
    %c0_191 = arith.constant 0 : index
    %704 = vector.load %arg24[%703, %c0_191] : memref<8x16xf32, #tpu.memory_space<vmem>>, vector<1x16xf32>
    tpu.vector_store %arg24[%703, %c0_191], %702 {strides = array<i32>} : memref<8x16xf32, #tpu.memory_space<vmem>>, vector<1x16xf32>,
    %cst_192 = arith.constant dense<0.000000e+00> : vector<1x96xf32>
    %705 = tpu.matmul %702, %669, %cst_192 {dimension_numbers = #tpu.dot_dimension_numbers<[1], [0], [0], [1], [0, 0, 1, 1], [], []>} : vector<1x16xf32>, vector<16x96xf32>, vector<1x96xf32> -> vector<1x96xf32>
    %706 = arith.addf %705, %670 : vector<1x96xf32>
    %707 = vector.extract_strided_slice %706 {offsets = [0, 0], sizes = [1, 48], strides = [1, 1]} : vector<1x96xf32> to vector<1x48xf32>
    %708 = vector.extract_strided_slice %706 {offsets = [0, 48], sizes = [1, 48], strides = [1, 1]} : vector<1x96xf32> to vector<1x48xf32>
    %c1_i32_193 = arith.constant 1 : i32
    %709 = arith.index_cast %c1_i32_193 : i32 to index
    %c0_194 = arith.constant 0 : index
    %710 = vector.load %arg23[%709, %c0_194] : memref<8x48xf32, #tpu.memory_space<vmem>>, vector<1x48xf32>
    %711 = arith.addf %710, %707 : vector<1x48xf32>
    %712 = vector.extract_strided_slice %711 {offsets = [0, 0], sizes = [1, 16], strides = [1, 1]} : vector<1x48xf32> to vector<1x16xf32>
    %713 = vector.extract_strided_slice %708 {offsets = [0, 0], sizes = [1, 16], strides = [1, 1]} : vector<1x48xf32> to vector<1x16xf32>
    %714 = arith.addf %712, %713 : vector<1x16xf32>
    %715 = arith.negf %714 : vector<1x16xf32>
    %716 = math.exp %715 : vector<1x16xf32>
    %cst_195 = arith.constant 1.000000e+00 : f32
    %717 = vector.broadcast %cst_195 : f32 to vector<1x16xf32>
    %718 = arith.addf %717, %716 : vector<1x16xf32>
    %719 = arith.divf %717, %718 : vector<1x16xf32>
    %720 = vector.extract_strided_slice %711 {offsets = [0, 16], sizes = [1, 16], strides = [1, 1]} : vector<1x48xf32> to vector<1x16xf32>
    %721 = vector.extract_strided_slice %708 {offsets = [0, 16], sizes = [1, 16], strides = [1, 1]} : vector<1x48xf32> to vector<1x16xf32>
    %722 = arith.addf %720, %721 : vector<1x16xf32>
    %723 = arith.negf %722 : vector<1x16xf32>
    %724 = math.exp %723 : vector<1x16xf32>
    %cst_196 = arith.constant 1.000000e+00 : f32
    %725 = vector.broadcast %cst_196 : f32 to vector<1x16xf32>
    %726 = arith.addf %725, %724 : vector<1x16xf32>
    %727 = arith.divf %725, %726 : vector<1x16xf32>
    %728 = vector.extract_strided_slice %711 {offsets = [0, 32], sizes = [1, 16], strides = [1, 1]} : vector<1x48xf32> to vector<1x16xf32>
    %729 = vector.extract_strided_slice %708 {offsets = [0, 32], sizes = [1, 16], strides = [1, 1]} : vector<1x48xf32> to vector<1x16xf32>
    %730 = arith.mulf %719, %729 : vector<1x16xf32>
    %731 = arith.addf %728, %730 : vector<1x16xf32>
    %732 = math.tanh %731 : vector<1x16xf32>
    %cst_197 = arith.constant 1.000000e+00 : f32
    %733 = vector.broadcast %cst_197 : f32 to vector<1x16xf32>
    %734 = arith.subf %733, %727 : vector<1x16xf32>
    %735 = arith.mulf %734, %732 : vector<1x16xf32>
    %736 = arith.mulf %727, %702 : vector<1x16xf32>
    %737 = arith.addf %735, %736 : vector<1x16xf32>
    %738 = arith.index_cast %c1_i32_193 : i32 to index
    %c0_198 = arith.constant 0 : index
    %739 = vector.load %arg24[%738, %c0_198] : memref<8x16xf32, #tpu.memory_space<vmem>>, vector<1x16xf32>
    tpu.vector_store %arg24[%738, %c0_198], %737 {strides = array<i32>} : memref<8x16xf32, #tpu.memory_space<vmem>>, vector<1x16xf32>,
    %cst_199 = arith.constant dense<0.000000e+00> : vector<1x96xf32>
    %740 = tpu.matmul %737, %669, %cst_199 {dimension_numbers = #tpu.dot_dimension_numbers<[1], [0], [0], [1], [0, 0, 1, 1], [], []>} : vector<1x16xf32>, vector<16x96xf32>, vector<1x96xf32> -> vector<1x96xf32>
    %741 = arith.addf %740, %670 : vector<1x96xf32>
    %742 = vector.extract_strided_slice %741 {offsets = [0, 0], sizes = [1, 48], strides = [1, 1]} : vector<1x96xf32> to vector<1x48xf32>
    %743 = vector.extract_strided_slice %741 {offsets = [0, 48], sizes = [1, 48], strides = [1, 1]} : vector<1x96xf32> to vector<1x48xf32>
    %c2_i32_200 = arith.constant 2 : i32
    %744 = arith.index_cast %c2_i32_200 : i32 to index
    %c0_201 = arith.constant 0 : index
    %745 = vector.load %arg23[%744, %c0_201] : memref<8x48xf32, #tpu.memory_space<vmem>>, vector<1x48xf32>
    %746 = arith.addf %745, %742 : vector<1x48xf32>
    %747 = vector.extract_strided_slice %746 {offsets = [0, 0], sizes = [1, 16], strides = [1, 1]} : vector<1x48xf32> to vector<1x16xf32>
    %748 = vector.extract_strided_slice %743 {offsets = [0, 0], sizes = [1, 16], strides = [1, 1]} : vector<1x48xf32> to vector<1x16xf32>
    %749 = arith.addf %747, %748 : vector<1x16xf32>
    %750 = arith.negf %749 : vector<1x16xf32>
    %751 = math.exp %750 : vector<1x16xf32>
    %cst_202 = arith.constant 1.000000e+00 : f32
    %752 = vector.broadcast %cst_202 : f32 to vector<1x16xf32>
    %753 = arith.addf %752, %751 : vector<1x16xf32>
    %754 = arith.divf %752, %753 : vector<1x16xf32>
    %755 = vector.extract_strided_slice %746 {offsets = [0, 16], sizes = [1, 16], strides = [1, 1]} : vector<1x48xf32> to vector<1x16xf32>
    %756 = vector.extract_strided_slice %743 {offsets = [0, 16], sizes = [1, 16], strides = [1, 1]} : vector<1x48xf32> to vector<1x16xf32>
    %757 = arith.addf %755, %756 : vector<1x16xf32>
    %758 = arith.negf %757 : vector<1x16xf32>
    %759 = math.exp %758 : vector<1x16xf32>
    %cst_203 = arith.constant 1.000000e+00 : f32
    %760 = vector.broadcast %cst_203 : f32 to vector<1x16xf32>
    %761 = arith.addf %760, %759 : vector<1x16xf32>
    %762 = arith.divf %760, %761 : vector<1x16xf32>
    %763 = vector.extract_strided_slice %746 {offsets = [0, 32], sizes = [1, 16], strides = [1, 1]} : vector<1x48xf32> to vector<1x16xf32>
    %764 = vector.extract_strided_slice %743 {offsets = [0, 32], sizes = [1, 16], strides = [1, 1]} : vector<1x48xf32> to vector<1x16xf32>
    %765 = arith.mulf %754, %764 : vector<1x16xf32>
    %766 = arith.addf %763, %765 : vector<1x16xf32>
    %767 = math.tanh %766 : vector<1x16xf32>
    %cst_204 = arith.constant 1.000000e+00 : f32
    %768 = vector.broadcast %cst_204 : f32 to vector<1x16xf32>
    %769 = arith.subf %768, %762 : vector<1x16xf32>
    %770 = arith.mulf %769, %767 : vector<1x16xf32>
    %771 = arith.mulf %762, %737 : vector<1x16xf32>
    %772 = arith.addf %770, %771 : vector<1x16xf32>
    %773 = arith.index_cast %c2_i32_200 : i32 to index
    %c0_205 = arith.constant 0 : index
    %774 = vector.load %arg24[%773, %c0_205] : memref<8x16xf32, #tpu.memory_space<vmem>>, vector<1x16xf32>
    tpu.vector_store %arg24[%773, %c0_205], %772 {strides = array<i32>} : memref<8x16xf32, #tpu.memory_space<vmem>>, vector<1x16xf32>,
    %cst_206 = arith.constant dense<0.000000e+00> : vector<1x96xf32>
    %775 = tpu.matmul %772, %669, %cst_206 {dimension_numbers = #tpu.dot_dimension_numbers<[1], [0], [0], [1], [0, 0, 1, 1], [], []>} : vector<1x16xf32>, vector<16x96xf32>, vector<1x96xf32> -> vector<1x96xf32>
    %776 = arith.addf %775, %670 : vector<1x96xf32>
    %777 = vector.extract_strided_slice %776 {offsets = [0, 0], sizes = [1, 48], strides = [1, 1]} : vector<1x96xf32> to vector<1x48xf32>
    %778 = vector.extract_strided_slice %776 {offsets = [0, 48], sizes = [1, 48], strides = [1, 1]} : vector<1x96xf32> to vector<1x48xf32>
    %c3_i32_207 = arith.constant 3 : i32
    %779 = arith.index_cast %c3_i32_207 : i32 to index
    %c0_208 = arith.constant 0 : index
    %780 = vector.load %arg23[%779, %c0_208] : memref<8x48xf32, #tpu.memory_space<vmem>>, vector<1x48xf32>
    %781 = arith.addf %780, %777 : vector<1x48xf32>
    %782 = vector.extract_strided_slice %781 {offsets = [0, 0], sizes = [1, 16], strides = [1, 1]} : vector<1x48xf32> to vector<1x16xf32>
    %783 = vector.extract_strided_slice %778 {offsets = [0, 0], sizes = [1, 16], strides = [1, 1]} : vector<1x48xf32> to vector<1x16xf32>
    %784 = arith.addf %782, %783 : vector<1x16xf32>
    %785 = arith.negf %784 : vector<1x16xf32>
    %786 = math.exp %785 : vector<1x16xf32>
    %cst_209 = arith.constant 1.000000e+00 : f32
    %787 = vector.broadcast %cst_209 : f32 to vector<1x16xf32>
    %788 = arith.addf %787, %786 : vector<1x16xf32>
    %789 = arith.divf %787, %788 : vector<1x16xf32>
    %790 = vector.extract_strided_slice %781 {offsets = [0, 16], sizes = [1, 16], strides = [1, 1]} : vector<1x48xf32> to vector<1x16xf32>
    %791 = vector.extract_strided_slice %778 {offsets = [0, 16], sizes = [1, 16], strides = [1, 1]} : vector<1x48xf32> to vector<1x16xf32>
    %792 = arith.addf %790, %791 : vector<1x16xf32>
    %793 = arith.negf %792 : vector<1x16xf32>
    %794 = math.exp %793 : vector<1x16xf32>
    %cst_210 = arith.constant 1.000000e+00 : f32
    %795 = vector.broadcast %cst_210 : f32 to vector<1x16xf32>
    %796 = arith.addf %795, %794 : vector<1x16xf32>
    %797 = arith.divf %795, %796 : vector<1x16xf32>
    %798 = vector.extract_strided_slice %781 {offsets = [0, 32], sizes = [1, 16], strides = [1, 1]} : vector<1x48xf32> to vector<1x16xf32>
    %799 = vector.extract_strided_slice %778 {offsets = [0, 32], sizes = [1, 16], strides = [1, 1]} : vector<1x48xf32> to vector<1x16xf32>
    %800 = arith.mulf %789, %799 : vector<1x16xf32>
    %801 = arith.addf %798, %800 : vector<1x16xf32>
    %802 = math.tanh %801 : vector<1x16xf32>
    %cst_211 = arith.constant 1.000000e+00 : f32
    %803 = vector.broadcast %cst_211 : f32 to vector<1x16xf32>
    %804 = arith.subf %803, %797 : vector<1x16xf32>
    %805 = arith.mulf %804, %802 : vector<1x16xf32>
    %806 = arith.mulf %797, %772 : vector<1x16xf32>
    %807 = arith.addf %805, %806 : vector<1x16xf32>
    %808 = arith.index_cast %c3_i32_207 : i32 to index
    %c0_212 = arith.constant 0 : index
    %809 = vector.load %arg24[%808, %c0_212] : memref<8x16xf32, #tpu.memory_space<vmem>>, vector<1x16xf32>
    tpu.vector_store %arg24[%808, %c0_212], %807 {strides = array<i32>} : memref<8x16xf32, #tpu.memory_space<vmem>>, vector<1x16xf32>,
    %cst_213 = arith.constant dense<0.000000e+00> : vector<1x96xf32>
    %810 = tpu.matmul %807, %669, %cst_213 {dimension_numbers = #tpu.dot_dimension_numbers<[1], [0], [0], [1], [0, 0, 1, 1], [], []>} : vector<1x16xf32>, vector<16x96xf32>, vector<1x96xf32> -> vector<1x96xf32>
    %811 = arith.addf %810, %670 : vector<1x96xf32>
    %812 = vector.extract_strided_slice %811 {offsets = [0, 0], sizes = [1, 48], strides = [1, 1]} : vector<1x96xf32> to vector<1x48xf32>
    %813 = vector.extract_strided_slice %811 {offsets = [0, 48], sizes = [1, 48], strides = [1, 1]} : vector<1x96xf32> to vector<1x48xf32>
    %c4_i32_214 = arith.constant 4 : i32
    %814 = arith.index_cast %c4_i32_214 : i32 to index
    %c0_215 = arith.constant 0 : index
    %815 = vector.load %arg23[%814, %c0_215] : memref<8x48xf32, #tpu.memory_space<vmem>>, vector<1x48xf32>
    %816 = arith.addf %815, %812 : vector<1x48xf32>
    %817 = vector.extract_strided_slice %816 {offsets = [0, 0], sizes = [1, 16], strides = [1, 1]} : vector<1x48xf32> to vector<1x16xf32>
    %818 = vector.extract_strided_slice %813 {offsets = [0, 0], sizes = [1, 16], strides = [1, 1]} : vector<1x48xf32> to vector<1x16xf32>
    %819 = arith.addf %817, %818 : vector<1x16xf32>
    %820 = arith.negf %819 : vector<1x16xf32>
    %821 = math.exp %820 : vector<1x16xf32>
    %cst_216 = arith.constant 1.000000e+00 : f32
    %822 = vector.broadcast %cst_216 : f32 to vector<1x16xf32>
    %823 = arith.addf %822, %821 : vector<1x16xf32>
    %824 = arith.divf %822, %823 : vector<1x16xf32>
    %825 = vector.extract_strided_slice %816 {offsets = [0, 16], sizes = [1, 16], strides = [1, 1]} : vector<1x48xf32> to vector<1x16xf32>
    %826 = vector.extract_strided_slice %813 {offsets = [0, 16], sizes = [1, 16], strides = [1, 1]} : vector<1x48xf32> to vector<1x16xf32>
    %827 = arith.addf %825, %826 : vector<1x16xf32>
    %828 = arith.negf %827 : vector<1x16xf32>
    %829 = math.exp %828 : vector<1x16xf32>
    %cst_217 = arith.constant 1.000000e+00 : f32
    %830 = vector.broadcast %cst_217 : f32 to vector<1x16xf32>
    %831 = arith.addf %830, %829 : vector<1x16xf32>
    %832 = arith.divf %830, %831 : vector<1x16xf32>
    %833 = vector.extract_strided_slice %816 {offsets = [0, 32], sizes = [1, 16], strides = [1, 1]} : vector<1x48xf32> to vector<1x16xf32>
    %834 = vector.extract_strided_slice %813 {offsets = [0, 32], sizes = [1, 16], strides = [1, 1]} : vector<1x48xf32> to vector<1x16xf32>
    %835 = arith.mulf %824, %834 : vector<1x16xf32>
    %836 = arith.addf %833, %835 : vector<1x16xf32>
    %837 = math.tanh %836 : vector<1x16xf32>
    %cst_218 = arith.constant 1.000000e+00 : f32
    %838 = vector.broadcast %cst_218 : f32 to vector<1x16xf32>
    %839 = arith.subf %838, %832 : vector<1x16xf32>
    %840 = arith.mulf %839, %837 : vector<1x16xf32>
    %841 = arith.mulf %832, %807 : vector<1x16xf32>
    %842 = arith.addf %840, %841 : vector<1x16xf32>
    %843 = arith.index_cast %c4_i32_214 : i32 to index
    %c0_219 = arith.constant 0 : index
    %844 = vector.load %arg24[%843, %c0_219] : memref<8x16xf32, #tpu.memory_space<vmem>>, vector<1x16xf32>
    tpu.vector_store %arg24[%843, %c0_219], %842 {strides = array<i32>} : memref<8x16xf32, #tpu.memory_space<vmem>>, vector<1x16xf32>,
    %cst_220 = arith.constant dense<0.000000e+00> : vector<1x96xf32>
    %845 = tpu.matmul %842, %669, %cst_220 {dimension_numbers = #tpu.dot_dimension_numbers<[1], [0], [0], [1], [0, 0, 1, 1], [], []>} : vector<1x16xf32>, vector<16x96xf32>, vector<1x96xf32> -> vector<1x96xf32>
    %846 = arith.addf %845, %670 : vector<1x96xf32>
    %847 = vector.extract_strided_slice %846 {offsets = [0, 0], sizes = [1, 48], strides = [1, 1]} : vector<1x96xf32> to vector<1x48xf32>
    %848 = vector.extract_strided_slice %846 {offsets = [0, 48], sizes = [1, 48], strides = [1, 1]} : vector<1x96xf32> to vector<1x48xf32>
    %c5_i32_221 = arith.constant 5 : i32
    %849 = arith.index_cast %c5_i32_221 : i32 to index
    %c0_222 = arith.constant 0 : index
    %850 = vector.load %arg23[%849, %c0_222] : memref<8x48xf32, #tpu.memory_space<vmem>>, vector<1x48xf32>
    %851 = arith.addf %850, %847 : vector<1x48xf32>
    %852 = vector.extract_strided_slice %851 {offsets = [0, 0], sizes = [1, 16], strides = [1, 1]} : vector<1x48xf32> to vector<1x16xf32>
    %853 = vector.extract_strided_slice %848 {offsets = [0, 0], sizes = [1, 16], strides = [1, 1]} : vector<1x48xf32> to vector<1x16xf32>
    %854 = arith.addf %852, %853 : vector<1x16xf32>
    %855 = arith.negf %854 : vector<1x16xf32>
    %856 = math.exp %855 : vector<1x16xf32>
    %cst_223 = arith.constant 1.000000e+00 : f32
    %857 = vector.broadcast %cst_223 : f32 to vector<1x16xf32>
    %858 = arith.addf %857, %856 : vector<1x16xf32>
    %859 = arith.divf %857, %858 : vector<1x16xf32>
    %860 = vector.extract_strided_slice %851 {offsets = [0, 16], sizes = [1, 16], strides = [1, 1]} : vector<1x48xf32> to vector<1x16xf32>
    %861 = vector.extract_strided_slice %848 {offsets = [0, 16], sizes = [1, 16], strides = [1, 1]} : vector<1x48xf32> to vector<1x16xf32>
    %862 = arith.addf %860, %861 : vector<1x16xf32>
    %863 = arith.negf %862 : vector<1x16xf32>
    %864 = math.exp %863 : vector<1x16xf32>
    %cst_224 = arith.constant 1.000000e+00 : f32
    %865 = vector.broadcast %cst_224 : f32 to vector<1x16xf32>
    %866 = arith.addf %865, %864 : vector<1x16xf32>
    %867 = arith.divf %865, %866 : vector<1x16xf32>
    %868 = vector.extract_strided_slice %851 {offsets = [0, 32], sizes = [1, 16], strides = [1, 1]} : vector<1x48xf32> to vector<1x16xf32>
    %869 = vector.extract_strided_slice %848 {offsets = [0, 32], sizes = [1, 16], strides = [1, 1]} : vector<1x48xf32> to vector<1x16xf32>
    %870 = arith.mulf %859, %869 : vector<1x16xf32>
    %871 = arith.addf %868, %870 : vector<1x16xf32>
    %872 = math.tanh %871 : vector<1x16xf32>
    %cst_225 = arith.constant 1.000000e+00 : f32
    %873 = vector.broadcast %cst_225 : f32 to vector<1x16xf32>
    %874 = arith.subf %873, %867 : vector<1x16xf32>
    %875 = arith.mulf %874, %872 : vector<1x16xf32>
    %876 = arith.mulf %867, %842 : vector<1x16xf32>
    %877 = arith.addf %875, %876 : vector<1x16xf32>
    %878 = arith.index_cast %c5_i32_221 : i32 to index
    %c0_226 = arith.constant 0 : index
    %879 = vector.load %arg24[%878, %c0_226] : memref<8x16xf32, #tpu.memory_space<vmem>>, vector<1x16xf32>
    tpu.vector_store %arg24[%878, %c0_226], %877 {strides = array<i32>} : memref<8x16xf32, #tpu.memory_space<vmem>>, vector<1x16xf32>,
    %cst_227 = arith.constant dense<0.000000e+00> : vector<1x96xf32>
    %880 = tpu.matmul %877, %669, %cst_227 {dimension_numbers = #tpu.dot_dimension_numbers<[1], [0], [0], [1], [0, 0, 1, 1], [], []>} : vector<1x16xf32>, vector<16x96xf32>, vector<1x96xf32> -> vector<1x96xf32>
    %881 = arith.addf %880, %670 : vector<1x96xf32>
    %882 = vector.extract_strided_slice %881 {offsets = [0, 0], sizes = [1, 48], strides = [1, 1]} : vector<1x96xf32> to vector<1x48xf32>
    %883 = vector.extract_strided_slice %881 {offsets = [0, 48], sizes = [1, 48], strides = [1, 1]} : vector<1x96xf32> to vector<1x48xf32>
    %c6_i32_228 = arith.constant 6 : i32
    %884 = arith.index_cast %c6_i32_228 : i32 to index
    %c0_229 = arith.constant 0 : index
    %885 = vector.load %arg23[%884, %c0_229] : memref<8x48xf32, #tpu.memory_space<vmem>>, vector<1x48xf32>
    %886 = arith.addf %885, %882 : vector<1x48xf32>
    %887 = vector.extract_strided_slice %886 {offsets = [0, 0], sizes = [1, 16], strides = [1, 1]} : vector<1x48xf32> to vector<1x16xf32>
    %888 = vector.extract_strided_slice %883 {offsets = [0, 0], sizes = [1, 16], strides = [1, 1]} : vector<1x48xf32> to vector<1x16xf32>
    %889 = arith.addf %887, %888 : vector<1x16xf32>
    %890 = arith.negf %889 : vector<1x16xf32>
    %891 = math.exp %890 : vector<1x16xf32>
    %cst_230 = arith.constant 1.000000e+00 : f32
    %892 = vector.broadcast %cst_230 : f32 to vector<1x16xf32>
    %893 = arith.addf %892, %891 : vector<1x16xf32>
    %894 = arith.divf %892, %893 : vector<1x16xf32>
    %895 = vector.extract_strided_slice %886 {offsets = [0, 16], sizes = [1, 16], strides = [1, 1]} : vector<1x48xf32> to vector<1x16xf32>
    %896 = vector.extract_strided_slice %883 {offsets = [0, 16], sizes = [1, 16], strides = [1, 1]} : vector<1x48xf32> to vector<1x16xf32>
    %897 = arith.addf %895, %896 : vector<1x16xf32>
    %898 = arith.negf %897 : vector<1x16xf32>
    %899 = math.exp %898 : vector<1x16xf32>
    %cst_231 = arith.constant 1.000000e+00 : f32
    %900 = vector.broadcast %cst_231 : f32 to vector<1x16xf32>
    %901 = arith.addf %900, %899 : vector<1x16xf32>
    %902 = arith.divf %900, %901 : vector<1x16xf32>
    %903 = vector.extract_strided_slice %886 {offsets = [0, 32], sizes = [1, 16], strides = [1, 1]} : vector<1x48xf32> to vector<1x16xf32>
    %904 = vector.extract_strided_slice %883 {offsets = [0, 32], sizes = [1, 16], strides = [1, 1]} : vector<1x48xf32> to vector<1x16xf32>
    %905 = arith.mulf %894, %904 : vector<1x16xf32>
    %906 = arith.addf %903, %905 : vector<1x16xf32>
    %907 = math.tanh %906 : vector<1x16xf32>
    %cst_232 = arith.constant 1.000000e+00 : f32
    %908 = vector.broadcast %cst_232 : f32 to vector<1x16xf32>
    %909 = arith.subf %908, %902 : vector<1x16xf32>
    %910 = arith.mulf %909, %907 : vector<1x16xf32>
    %911 = arith.mulf %902, %877 : vector<1x16xf32>
    %912 = arith.addf %910, %911 : vector<1x16xf32>
    %913 = arith.index_cast %c6_i32_228 : i32 to index
    %c0_233 = arith.constant 0 : index
    %914 = vector.load %arg24[%913, %c0_233] : memref<8x16xf32, #tpu.memory_space<vmem>>, vector<1x16xf32>
    tpu.vector_store %arg24[%913, %c0_233], %912 {strides = array<i32>} : memref<8x16xf32, #tpu.memory_space<vmem>>, vector<1x16xf32>,
    %cst_234 = arith.constant dense<0.000000e+00> : vector<1x96xf32>
    %915 = tpu.matmul %912, %669, %cst_234 {dimension_numbers = #tpu.dot_dimension_numbers<[1], [0], [0], [1], [0, 0, 1, 1], [], []>} : vector<1x16xf32>, vector<16x96xf32>, vector<1x96xf32> -> vector<1x96xf32>
    %916 = arith.addf %915, %670 : vector<1x96xf32>
    %917 = vector.extract_strided_slice %916 {offsets = [0, 0], sizes = [1, 48], strides = [1, 1]} : vector<1x96xf32> to vector<1x48xf32>
    %918 = vector.extract_strided_slice %916 {offsets = [0, 48], sizes = [1, 48], strides = [1, 1]} : vector<1x96xf32> to vector<1x48xf32>
    %c7_i32_235 = arith.constant 7 : i32
    %919 = arith.index_cast %c7_i32_235 : i32 to index
    %c0_236 = arith.constant 0 : index
    %920 = vector.load %arg23[%919, %c0_236] : memref<8x48xf32, #tpu.memory_space<vmem>>, vector<1x48xf32>
    %921 = arith.addf %920, %917 : vector<1x48xf32>
    %922 = vector.extract_strided_slice %921 {offsets = [0, 0], sizes = [1, 16], strides = [1, 1]} : vector<1x48xf32> to vector<1x16xf32>
    %923 = vector.extract_strided_slice %918 {offsets = [0, 0], sizes = [1, 16], strides = [1, 1]} : vector<1x48xf32> to vector<1x16xf32>
    %924 = arith.addf %922, %923 : vector<1x16xf32>
    %925 = arith.negf %924 : vector<1x16xf32>
    %926 = math.exp %925 : vector<1x16xf32>
    %cst_237 = arith.constant 1.000000e+00 : f32
    %927 = vector.broadcast %cst_237 : f32 to vector<1x16xf32>
    %928 = arith.addf %927, %926 : vector<1x16xf32>
    %929 = arith.divf %927, %928 : vector<1x16xf32>
    %930 = vector.extract_strided_slice %921 {offsets = [0, 16], sizes = [1, 16], strides = [1, 1]} : vector<1x48xf32> to vector<1x16xf32>
    %931 = vector.extract_strided_slice %918 {offsets = [0, 16], sizes = [1, 16], strides = [1, 1]} : vector<1x48xf32> to vector<1x16xf32>
    %932 = arith.addf %930, %931 : vector<1x16xf32>
    %933 = arith.negf %932 : vector<1x16xf32>
    %934 = math.exp %933 : vector<1x16xf32>
    %cst_238 = arith.constant 1.000000e+00 : f32
    %935 = vector.broadcast %cst_238 : f32 to vector<1x16xf32>
    %936 = arith.addf %935, %934 : vector<1x16xf32>
    %937 = arith.divf %935, %936 : vector<1x16xf32>
    %938 = vector.extract_strided_slice %921 {offsets = [0, 32], sizes = [1, 16], strides = [1, 1]} : vector<1x48xf32> to vector<1x16xf32>
    %939 = vector.extract_strided_slice %918 {offsets = [0, 32], sizes = [1, 16], strides = [1, 1]} : vector<1x48xf32> to vector<1x16xf32>
    %940 = arith.mulf %929, %939 : vector<1x16xf32>
    %941 = arith.addf %938, %940 : vector<1x16xf32>
    %942 = math.tanh %941 : vector<1x16xf32>
    %cst_239 = arith.constant 1.000000e+00 : f32
    %943 = vector.broadcast %cst_239 : f32 to vector<1x16xf32>
    %944 = arith.subf %943, %937 : vector<1x16xf32>
    %945 = arith.mulf %944, %942 : vector<1x16xf32>
    %946 = arith.mulf %937, %912 : vector<1x16xf32>
    %947 = arith.addf %945, %946 : vector<1x16xf32>
    %948 = arith.index_cast %c7_i32_235 : i32 to index
    %c0_240 = arith.constant 0 : index
    %949 = vector.load %arg24[%948, %c0_240] : memref<8x16xf32, #tpu.memory_space<vmem>>, vector<1x16xf32>
    tpu.vector_store %arg24[%948, %c0_240], %947 {strides = array<i32>} : memref<8x16xf32, #tpu.memory_space<vmem>>, vector<1x16xf32>,
    %cst_241 = arith.constant dense<0.000000e+00> : vector<1x96xf32>
    %950 = tpu.matmul %947, %669, %cst_241 {dimension_numbers = #tpu.dot_dimension_numbers<[1], [0], [0], [1], [0, 0, 1, 1], [], []>} : vector<1x16xf32>, vector<16x96xf32>, vector<1x96xf32> -> vector<1x96xf32>
    %951 = arith.addf %950, %670 : vector<1x96xf32>
    %952 = vector.extract_strided_slice %951 {offsets = [0, 0], sizes = [1, 48], strides = [1, 1]} : vector<1x96xf32> to vector<1x48xf32>
    %953 = vector.extract_strided_slice %951 {offsets = [0, 48], sizes = [1, 48], strides = [1, 1]} : vector<1x96xf32> to vector<1x48xf32>
    %c8_i32_242 = arith.constant 8 : i32
    %c0_243 = arith.constant 0 : index
    %c0_244 = arith.constant 0 : index
    %954 = vector.load %arg24[%c0_243, %c0_244] : memref<8x16xf32, #tpu.memory_space<vmem>>, vector<8x16xf32>
    %c0_245 = arith.constant 0 : index
    %c0_246 = arith.constant 0 : index
    %955 = vector.load %arg17[%c0_245, %c0_246] : memref<16x8xf32, #tpu.memory_space<vmem>>, vector<16x8xf32>
    %cst_247 = arith.constant dense<0.000000e+00> : vector<8x8xf32>
    %956 = tpu.matmul %954, %955, %cst_247 {dimension_numbers = #tpu.dot_dimension_numbers<[1], [0], [0], [1], [0, 0, 1, 1], [], []>} : vector<8x16xf32>, vector<16x8xf32>, vector<8x8xf32> -> vector<8x8xf32>
    %c0_248 = arith.constant 0 : index
    %c0_249 = arith.constant 0 : index
    %957 = vector.load %arg18[%c0_248, %c0_249] : memref<1x8xf32, #tpu.memory_space<vmem>>, vector<1x8xf32>
    %958 = vector.broadcast %957 : vector<1x8xf32> to vector<8x8xf32>
    %959 = arith.addf %956, %958 : vector<8x8xf32>
    %c0_250 = arith.constant 0 : index
    %c0_251 = arith.constant 0 : index
    %c0_252 = arith.constant 0 : index
    %960 = vector.load %arg20[%c0_250, %c0_251, %c0_252] : memref<1x8x8xf32, #tpu.memory_space<vmem>>, vector<1x8x8xf32>
    %961 = vector.shape_cast %960 : vector<1x8x8xf32> to vector<8x8xf32>
    %962 = vector.shape_cast %959 : vector<8x8xf32> to vector<1x8x8xf32>
    tpu.vector_store %arg20[%c0_250, %c0_251, %c0_252], %962 {strides = array<i32>} : memref<1x8x8xf32, #tpu.memory_space<vmem>>, vector<1x8x8xf32>,
    return
  }
  func.func @transform_0(%arg0: i32, %arg1: memref<2xi32, #tpu.memory_space<smem>>) -> (i32, i32, i32) {
    %c0_i32 = arith.constant 0 : i32
    %c0_i32_0 = arith.constant 0 : i32
    %c0_i32_1 = arith.constant 0 : i32
    return %arg0, %c0_i32, %c0_i32_0 : i32, i32, i32
  }
  func.func @transform_1(%arg0: i32, %arg1: memref<2xi32, #tpu.memory_space<smem>>) -> (i32, i32) {
    %c0_i32 = arith.constant 0 : i32
    %c0_i32_0 = arith.constant 0 : i32
    %c0_i32_1 = arith.constant 0 : i32
    return %c0_i32, %c0_i32_0 : i32, i32
  }
  func.func @transform_2(%arg0: i32, %arg1: memref<2xi32, #tpu.memory_space<smem>>) -> (i32, i32) {
    %c0_i32 = arith.constant 0 : i32
    %c0_i32_0 = arith.constant 0 : i32
    %c0_i32_1 = arith.constant 0 : i32
    return %c0_i32, %c0_i32_0 : i32, i32
  }
  func.func @transform_3(%arg0: i32, %arg1: memref<2xi32, #tpu.memory_space<smem>>) -> (i32, i32) {
    %c0_i32 = arith.constant 0 : i32
    %c0_i32_0 = arith.constant 0 : i32
    %c0_i32_1 = arith.constant 0 : i32
    return %c0_i32, %c0_i32_0 : i32, i32
  }
  func.func @transform_4(%arg0: i32, %arg1: memref<2xi32, #tpu.memory_space<smem>>) -> (i32, i32) {
    %c0_i32 = arith.constant 0 : i32
    %c0_i32_0 = arith.constant 0 : i32
    %c0_i32_1 = arith.constant 0 : i32
    return %c0_i32, %c0_i32_0 : i32, i32
  }
  func.func @transform_5(%arg0: i32, %arg1: memref<2xi32, #tpu.memory_space<smem>>) -> (i32, i32, i32) {
    %c0_i32 = arith.constant 0 : i32
    %c0_i32_0 = arith.constant 0 : i32
    %c0_i32_1 = arith.constant 0 : i32
    return %arg0, %c0_i32, %c0_i32_0 : i32, i32, i32
  }
  func.func @transform_6(%arg0: i32, %arg1: memref<2xi32, #tpu.memory_space<smem>>) -> (i32, i32, i32) {
    %c0_i32 = arith.constant 0 : i32
    %c0_i32_0 = arith.constant 0 : i32
    %c0_i32_1 = arith.constant 0 : i32
    return %arg0, %c0_i32, %c0_i32_0 : i32, i32, i32
  }
  func.func @transform_7(%arg0: i32, %arg1: memref<2xi32, #tpu.memory_space<smem>>) -> (i32, i32) {
    %c0_i32 = arith.constant 0 : i32
    %c0_i32_0 = arith.constant 0 : i32
    %c0_i32_1 = arith.constant 0 : i32
    return %c0_i32, %c0_i32_0 : i32, i32
  }
  func.func @transform_8(%arg0: i32, %arg1: memref<2xi32, #tpu.memory_space<smem>>) -> (i32, i32) {
    %c0_i32 = arith.constant 0 : i32
    %c0_i32_0 = arith.constant 0 : i32
    %c0_i32_1 = arith.constant 0 : i32
    return %c0_i32, %c0_i32_0 : i32, i32
  }
  func.func @transform_9(%arg0: i32, %arg1: memref<2xi32, #tpu.memory_space<smem>>) -> (i32, i32) {
    %c0_i32 = arith.constant 0 : i32
    %c0_i32_0 = arith.constant 0 : i32
    %c0_i32_1 = arith.constant 0 : i32
    return %c0_i32, %c0_i32_0 : i32, i32
  }
  func.func @transform_10(%arg0: i32, %arg1: memref<2xi32, #tpu.memory_space<smem>>) -> (i32, i32) {
    %c0_i32 = arith.constant 0 : i32
    %c0_i32_0 = arith.constant 0 : i32
    %c0_i32_1 = arith.constant 0 : i32
    return %c0_i32, %c0_i32_0 : i32, i32
  }
  func.func @transform_11(%arg0: i32, %arg1: memref<2xi32, #tpu.memory_space<smem>>) -> (i32, i32) {
    %c0_i32 = arith.constant 0 : i32
    %c0_i32_0 = arith.constant 0 : i32
    %c0_i32_1 = arith.constant 0 : i32
    return %c0_i32, %c0_i32_0 : i32, i32
  }
  func.func @transform_12(%arg0: i32, %arg1: memref<2xi32, #tpu.memory_space<smem>>) -> (i32, i32) {
    %c0_i32 = arith.constant 0 : i32
    %c0_i32_0 = arith.constant 0 : i32
    %c0_i32_1 = arith.constant 0 : i32
    return %c0_i32, %c0_i32_0 : i32, i32
  }
  func.func @transform_13(%arg0: i32, %arg1: memref<2xi32, #tpu.memory_space<smem>>) -> (i32, i32) {
    %c0_i32 = arith.constant 0 : i32
    %c0_i32_0 = arith.constant 0 : i32
    %c0_i32_1 = arith.constant 0 : i32
    return %c0_i32, %c0_i32_0 : i32, i32
  }
  func.func @transform_14(%arg0: i32, %arg1: memref<2xi32, #tpu.memory_space<smem>>) -> (i32, i32) {
    %c0_i32 = arith.constant 0 : i32
    %c0_i32_0 = arith.constant 0 : i32
    %c0_i32_1 = arith.constant 0 : i32
    return %c0_i32, %c0_i32_0 : i32, i32
  }
  func.func @transform_15(%arg0: i32, %arg1: memref<2xi32, #tpu.memory_space<smem>>) -> (i32, i32) {
    %c0_i32 = arith.constant 0 : i32
    %c0_i32_0 = arith.constant 0 : i32
    %c0_i32_1 = arith.constant 0 : i32
    return %c0_i32, %c0_i32_0 : i32, i32
  }
  func.func @transform_16(%arg0: i32, %arg1: memref<2xi32, #tpu.memory_space<smem>>) -> (i32, i32) {
    %c0_i32 = arith.constant 0 : i32
    %c0_i32_0 = arith.constant 0 : i32
    %c0_i32_1 = arith.constant 0 : i32
    return %c0_i32, %c0_i32_0 : i32, i32
  }
  func.func @transform_17(%arg0: i32, %arg1: memref<2xi32, #tpu.memory_space<smem>>) -> (i32, i32, i32) {
    %c0_i32 = arith.constant 0 : i32
    %c0_i32_0 = arith.constant 0 : i32
    %c0_i32_1 = arith.constant 0 : i32
    return %arg0, %c0_i32, %c0_i32_0 : i32, i32, i32
  }
  func.func @transform_18(%arg0: i32, %arg1: memref<2xi32, #tpu.memory_space<smem>>) -> (i32, i32, i32) {
    %c0_i32 = arith.constant 0 : i32
    %c0_i32_0 = arith.constant 0 : i32
    %c0_i32_1 = arith.constant 0 : i32
    return %arg0, %c0_i32, %c0_i32_0 : i32, i32, i32
  }
}

</mosaic_0001>

<llo_original>
// kernel: prosody_predictor_wrapper_forward.1
$region0: #{prosody_predictor_wrapper_forward.1}
  #allocation0 [shape = 'u32[]', space=smem, size = 0x4, offset = 0x4, fixed_abs, tag = 'smem constant byte address 0x4 - core index']
  #allocation1 [shape = 'u32[144,128]{1,0:T(1,128)}', space=vmem, size = 0x12000, scoped, tag = 'internal scratch']
  #allocation2 [shape = 'f32[8,128]{1,0:T(8,128)}', space=vmem, size = 0x1000, scoped, tag = 'scratch operand']
  #allocation3 [shape = 'f32[8,32]{1,0:T(8,128)}', space=vmem, size = 0x1000, scoped, tag = 'scratch operand']
  #allocation4 [shape = 'f32[8,48]{1,0:T(8,128)}', space=vmem, size = 0x1000, scoped, tag = 'scratch operand']
  #allocation5 [shape = 'f32[8,16]{1,0:T(8,128)}', space=vmem, size = 0x1000, scoped, tag = 'scratch operand']
  #allocation6 [shape = 's32[1]{0}', space=sflag, size = 0x4, scoped, tag = 'scoped memory for prosody_predictor_wrapper_forward.1']
  #allocation7 [shape = 'u8[512]{0}', space=smem, size = 0x200, scoped, tag = 'prefetched SMEM operand 0']
  %s0 = inlined_call_operand.vmem [shape: s32[2], index: 0, kind: input, shape index: {}]
  %s1 = inlined_call_operand.vmem [shape: f32[2,12,16], index: 1, kind: input, shape index: {}]
  %s2 = inlined_call_operand.vmem [shape: f32[80,32], index: 2, kind: input, shape index: {}]
  %s3 = inlined_call_operand.vmem [shape: f32[160,32], index: 3, kind: input, shape index: {}]
  %s4 = inlined_call_operand.vmem [shape: f32[160,32], index: 4, kind: input, shape index: {}]
  %s5 = inlined_call_operand.vmem [shape: f32[3,32], index: 5, kind: input, shape index: {}]
  %s6 = inlined_call_operand.vmem [shape: f32[2,2,32], index: 6, kind: input, shape index: {}]
  %s7 = inlined_call_operand.vmem [shape: f32[2,1,32], index: 7, kind: input, shape index: {}]
  %s8 = inlined_call_operand.vmem [shape: f32[32,128], index: 8, kind: input, shape index: {}]
  %s9 = inlined_call_operand.vmem [shape: f32[1,128], index: 9, kind: input, shape index: {}]
  %s10 = inlined_call_operand.vmem [shape: f32[16,64], index: 10, kind: input, shape index: {}]
  %s11 = inlined_call_operand.vmem [shape: f32[16,64], index: 11, kind: input, shape index: {}]
  %s12 = inlined_call_operand.vmem [shape: f32[32,48], index: 12, kind: input, shape index: {}]
  %s13 = inlined_call_operand.vmem [shape: f32[1,48], index: 13, kind: input, shape index: {}]
  %s14 = inlined_call_operand.vmem [shape: f32[16,96], index: 14, kind: input, shape index: {}]
  %s15 = inlined_call_operand.vmem [shape: f32[1,96], index: 15, kind: input, shape index: {}]
  %s16 = inlined_call_operand.vmem [shape: f32[16,8], index: 16, kind: input, shape index: {}]
  %s17 = inlined_call_operand.vmem [shape: f32[1,8], index: 17, kind: input, shape index: {}]
  %s18 = inlined_call_operand.hbm [shape: f32[2,8,32], index: 18, kind: output, shape index: {0}]
  %s19 = inlined_call_operand.hbm [shape: f32[2,8,8], index: 19, kind: output, shape index: {1}]
  %20 = xla_tuple %s18, %s19
  %s21 = sld [smem:[#allocation0]]
  $region109: #{prosody_predictor_wrapper_forward.1} parent=0
    _
  %s23 = ssub.s32 1, %s21
  %s24 = scalar_select 0, %s23, %s21
  %s25 = sshll.u32 %s0, 4
  %s26 = int_to_ptr.vmem [resolvable:$true] %s25
  %28 = dma.vmem_to_smem %s26, 16, [#allocation7], [#allocation6]
  %29 = dma.done [#allocation6], 16
  %30 = sfence
  $region1: #{prosody_predictor_wrapper_forward.1} parent=0
    #allocation8 [shape = 'u8[8192]{0}', space=vmem, size = 0x2000, scoped, tag = 'output window, operand 0']
    #allocation9 [shape = 's32[2]{0}', space=sflag, size = 0x8, scoped, tag = 'scoped memory for prosody_predictor_wrapper_forward.1']
    #allocation10 [shape = 'u8[8192]{0}', space=vmem, size = 0x2000, scoped, tag = 'output window, operand 1']
    #allocation11 [shape = 's32[2]{0}', space=sflag, size = 0x8, scoped, tag = 'scoped memory for prosody_predictor_wrapper_forward.1']
    %31 = vsyncpa [#allocation9], 0
    %s32 = scalar_lea.sflag [#allocation9], 1
    %33 = vsyncpa %s32, 0
    %34 = vsyncpa [#allocation11], 0
    %s35 = scalar_lea.sflag [#allocation11], 1
    %36 = vsyncpa %s35, 0
    loop: start=0, step=1, limit=4
    $region2: #{prosody_predictor_wrapper_forward.1} parent=1 // loop_pre_header
      _
    $region3: #{prosody_predictor_wrapper_forward.1} parent=1 // loop_header
      %s38 = sphi 0, %s42
      %p39 = scmp.ge.s32.totalorder %s38, 4
      %s48 = sphi 0, %s50
      %s51 = sphi 0, %s48
      %s52 = sphi 0, %s51
      %s68 = sphi 0, %s52
      %s72 = sphi 0, %s72
      %s74 = sphi 0, %s72
      %s75 = sphi 0, %s74
      %s89 = sphi 0, %s75
      %s93 = sphi 0, %s93
      %s95 = sphi 0, %s93
      %s96 = sphi 0, %s95
      %s110 = sphi 0, %s96
      %s114 = sphi 0, %s114
      %s116 = sphi 0, %s114
      %s117 = sphi 0, %s116
      %s131 = sphi 0, %s117
      %s135 = sphi 0, %s135
      %s137 = sphi 0, %s135
      %s138 = sphi 0, %s137
      %s152 = sphi 0, %s138
      %s158 = sphi 0, %s160
      %s161 = sphi 0, %s158
      %s162 = sphi 0, %s161
      %s178 = sphi 0, %s162
      %s184 = sphi 0, %s186
      %s187 = sphi 0, %s184
      %s188 = sphi 0, %s187
      %s204 = sphi 0, %s188
      %s208 = sphi 0, %s208
      %s210 = sphi 0, %s208
      %s211 = sphi 0, %s210
      %s225 = sphi 0, %s211
      %s229 = sphi 0, %s229
      %s231 = sphi 0, %s229
      %s232 = sphi 0, %s231
      %s246 = sphi 0, %s232
      %s250 = sphi 0, %s250
      %s252 = sphi 0, %s250
      %s253 = sphi 0, %s252
      %s267 = sphi 0, %s253
      %s271 = sphi 0, %s271
      %s273 = sphi 0, %s271
      %s274 = sphi 0, %s273
      %s288 = sphi 0, %s274
      %s292 = sphi 0, %s292
      %s294 = sphi 0, %s292
      %s295 = sphi 0, %s294
      %s309 = sphi 0, %s295
      %s313 = sphi 0, %s313
      %s315 = sphi 0, %s313
      %s316 = sphi 0, %s315
      %s330 = sphi 0, %s316
      %s334 = sphi 0, %s334
      %s336 = sphi 0, %s334
      %s337 = sphi 0, %s336
      %s351 = sphi 0, %s337
      %s355 = sphi 0, %s355
      %s357 = sphi 0, %s355
      %s358 = sphi 0, %s357
      %s372 = sphi 0, %s358
      %s376 = sphi 0, %s376
      %s378 = sphi 0, %s376
      %s379 = sphi 0, %s378
      %s393 = sphi 0, %s379
      %s397 = sphi 0, %s397
      %s399 = sphi 0, %s397
      %s400 = sphi 0, %s399
      %s414 = sphi 0, %s400
      %s420 = sphi 0, %s422
      %s423 = sphi 0, %s420
      %s424 = sphi 0, %s423
      %s440 = sphi 0, %s424
      %s446 = sphi 0, %s448
      %s449 = sphi 0, %s446
      %s450 = sphi 0, %s449
      %s466 = sphi 0, %s450
    $region4: #{prosody_predictor_wrapper_forward.1} parent=1 // loop_header_branch
      %41 = sbr.rel (%p39) target = $region8
    $region5: #{prosody_predictor_wrapper_forward.1} parent=1 // loop_body
      %s43 = ssub.s32 %s38, 1
      %s44 = ssub.s32 %s38, 2
      %s45 = sadd.s32 %s38, 1
      %s46 = ssub.s32 %s38, %s45
      %p47 = scmp.eq.s32.totalorder %s46, 0
      %s49 = sadd.s32 %s48, 1
      %s50 = scalar_select %p47, %s48, %s49
      %p53 = pneg %p47
      %p54 = scmp.eq.s32.totalorder %s38, 1
      %p55 = por %p53, %p54
      %p56 = scmp.ne.s32.totalorder %s48, %s51
      %p57 = scmp.eq.s32.totalorder %s38, 0
      %p58 = por %p56, %p57
      %p59 = scmp.ne.s32.totalorder %s48, %s51
      %p60 = scmp.eq.s32.totalorder %s43, 1
      %p61 = por %p59, %p60
      %p62 = scmp.ne.s32.totalorder %s51, %s52
      %p63 = scmp.eq.s32.totalorder %s43, 0
      %p64 = por %p62, %p63
      %p65 = scmp.ne.s32.totalorder %s51, %s52
      %p66 = scmp.eq.s32.totalorder %s44, 1
      %p67 = por %p65, %p66
      %p69 = scmp.ne.s32.totalorder %s52, %s68
      %p70 = scmp.eq.s32.totalorder %s44, 0
      %p71 = por %p69, %p70
      %s73 = sadd.s32 %s72, 1
      %p76 = scmp.eq.s32.totalorder %s38, 1
      %p77 = scmp.ne.s32.totalorder %s72, %s74
      %p78 = scmp.eq.s32.totalorder %s38, 0
      %p79 = por %p77, %p78
      %p80 = scmp.ne.s32.totalorder %s72, %s74
      %p81 = scmp.eq.s32.totalorder %s43, 1
      %p82 = por %p80, %p81
      %p83 = scmp.ne.s32.totalorder %s74, %s75
      %p84 = scmp.eq.s32.totalorder %s43, 0
      %p85 = por %p83, %p84
      %p86 = scmp.ne.s32.totalorder %s74, %s75
      %p87 = scmp.eq.s32.totalorder %s44, 1
      %p88 = por %p86, %p87
      %p90 = scmp.ne.s32.totalorder %s75, %s89
      %p91 = scmp.eq.s32.totalorder %s44, 0
      %p92 = por %p90, %p91
      %s94 = sadd.s32 %s93, 1
      %p97 = scmp.eq.s32.totalorder %s38, 1
      %p98 = scmp.ne.s32.totalorder %s93, %s95
      %p99 = scmp.eq.s32.totalorder %s38, 0
      %p100 = por %p98, %p99
      %p101 = scmp.ne.s32.totalorder %s93, %s95
      %p102 = scmp.eq.s32.totalorder %s43, 1
      %p103 = por %p101, %p102
      %p104 = scmp.ne.s32.totalorder %s95, %s96
      %p105 = scmp.eq.s32.totalorder %s43, 0
      %p106 = por %p104, %p105
      %p107 = scmp.ne.s32.totalorder %s95, %s96
      %p108 = scmp.eq.s32.totalorder %s44, 1
      %p109 = por %p107, %p108
      %p111 = scmp.ne.s32.totalorder %s96, %s110
      %p112 = scmp.eq.s32.totalorder %s44, 0
      %p113 = por %p111, %p112
      %s115 = sadd.s32 %s114, 1
      %p118 = scmp.eq.s32.totalorder %s38, 1
      %p119 = scmp.ne.s32.totalorder %s114, %s116
      %p120 = scmp.eq.s32.totalorder %s38, 0
      %p121 = por %p119, %p120
      %p122 = scmp.ne.s32.totalorder %s114, %s116
      %p123 = scmp.eq.s32.totalorder %s43, 1
      %p124 = por %p122, %p123
      %p125 = scmp.ne.s32.totalorder %s116, %s117
      %p126 = scmp.eq.s32.totalorder %s43, 0
      %p127 = por %p125, %p126
      %p128 = scmp.ne.s32.totalorder %s116, %s117
      %p129 = scmp.eq.s32.totalorder %s44, 1
      %p130 = por %p128, %p129
      %p132 = scmp.ne.s32.totalorder %s117, %s131
      %p133 = scmp.eq.s32.totalorder %s44, 0
      %p134 = por %p132, %p133
      %s136 = sadd.s32 %s135, 1
      %p139 = scmp.eq.s32.totalorder %s38, 1
      %p140 = scmp.ne.s32.totalorder %s135, %s137
      %p141 = scmp.eq.s32.totalorder %s38, 0
      %p142 = por %p140, %p141
      %p143 = scmp.ne.s32.totalorder %s135, %s137
      %p144 = scmp.eq.s32.totalorder %s43, 1
      %p145 = por %p143, %p144
      %p146 = scmp.ne.s32.totalorder %s137, %s138
      %p147 = scmp.eq.s32.totalorder %s43, 0
      %p148 = por %p146, %p147
      %p149 = scmp.ne.s32.totalorder %s137, %s138
      %p150 = scmp.eq.s32.totalorder %s44, 1
      %p151 = por %p149, %p150
      %p153 = scmp.ne.s32.totalorder %s138, %s152
      %p154 = scmp.eq.s32.totalorder %s44, 0
      %p155 = por %p153, %p154
      %s156 = ssub.s32 %s38, %s45
      %p157 = scmp.eq.s32.totalorder %s156, 0
      %s159 = sadd.s32 %s158, 1
      %s160 = scalar_select %p157, %s158, %s159
      %p163 = pneg %p157
      %p164 = scmp.eq.s32.totalorder %s38, 1
      %p165 = por %p163, %p164
      %p166 = scmp.ne.s32.totalorder %s158, %s161
      %p167 = scmp.eq.s32.totalorder %s38, 0
      %p168 = por %p166, %p167
      %p169 = scmp.ne.s32.totalorder %s158, %s161
      %p170 = scmp.eq.s32.totalorder %s43, 1
      %p171 = por %p169, %p170
      %p172 = scmp.ne.s32.totalorder %s161, %s162
      %p173 = scmp.eq.s32.totalorder %s43, 0
      %p174 = por %p172, %p173
      %p175 = scmp.ne.s32.totalorder %s161, %s162
      %p176 = scmp.eq.s32.totalorder %s44, 1
      %p177 = por %p175, %p176
      %p179 = scmp.ne.s32.totalorder %s162, %s178
      %p180 = scmp.eq.s32.totalorder %s44, 0
      %p181 = por %p179, %p180
      %s182 = ssub.s32 %s38, %s45
      %p183 = scmp.eq.s32.totalorder %s182, 0
      %s185 = sadd.s32 %s184, 1
      %s186 = scalar_select %p183, %s184, %s185
      %p189 = pneg %p183
      %p190 = scmp.eq.s32.totalorder %s38, 1
      %p191 = por %p189, %p190
      %p192 = scmp.ne.s32.totalorder %s184, %s187
      %p193 = scmp.eq.s32.totalorder %s38, 0
      %p194 = por %p192, %p193
      %p195 = scmp.ne.s32.totalorder %s184, %s187
      %p196 = scmp.eq.s32.totalorder %s43, 1
      %p197 = por %p195, %p196
      %p198 = scmp.ne.s32.totalorder %s187, %s188
      %p199 = scmp.eq.s32.totalorder %s43, 0
      %p200 = por %p198, %p199
      %p201 = scmp.ne.s32.totalorder %s187, %s188
      %p202 = scmp.eq.s32.totalorder %s44, 1
      %p203 = por %p201, %p202
      %p205 = scmp.ne.s32.totalorder %s188, %s204
      %p206 = scmp.eq.s32.totalorder %s44, 0
      %p207 = por %p205, %p206
      %s209 = sadd.s32 %s208, 1
      %p212 = scmp.eq.s32.totalorder %s38, 1
      %p213 = scmp.ne.s32.totalorder %s208, %s210
      %p214 = scmp.eq.s32.totalorder %s38, 0
      %p215 = por %p213, %p214
      %p216 = scmp.ne.s32.totalorder %s208, %s210
      %p217 = scmp.eq.s32.totalorder %s43, 1
      %p218 = por %p216, %p217
      %p219 = scmp.ne.s32.totalorder %s210, %s211
      %p220 = scmp.eq.s32.totalorder %s43, 0
      %p221 = por %p219, %p220
      %p222 = scmp.ne.s32.totalorder %s210, %s211
      %p223 = scmp.eq.s32.totalorder %s44, 1
      %p224 = por %p222, %p223
      %p226 = scmp.ne.s32.totalorder %s211, %s225
      %p227 = scmp.eq.s32.totalorder %s44, 0
      %p228 = por %p226, %p227
      %s230 = sadd.s32 %s229, 1
      %p233 = scmp.eq.s32.totalorder %s38, 1
      %p234 = scmp.ne.s32.totalorder %s229, %s231
      %p235 = scmp.eq.s32.totalorder %s38, 0
      %p236 = por %p234, %p235
      %p237 = scmp.ne.s32.totalorder %s229, %s231
      %p238 = scmp.eq.s32.totalorder %s43, 1
      %p239 = por %p237, %p238
      %p240 = scmp.ne.s32.totalorder %s231, %s232
      %p241 = scmp.eq.s32.totalorder %s43, 0
      %p242 = por %p240, %p241
      %p243 = scmp.ne.s32.totalorder %s231, %s232
      %p244 = scmp.eq.s32.totalorder %s44, 1
      %p245 = por %p243, %p244
      %p247 = scmp.ne.s32.totalorder %s232, %s246
      %p248 = scmp.eq.s32.totalorder %s44, 0
      %p249 = por %p247, %p248
      %s251 = sadd.s32 %s250, 1
      %p254 = scmp.eq.s32.totalorder %s38, 1
      %p255 = scmp.ne.s32.totalorder %s250, %s252
      %p256 = scmp.eq.s32.totalorder %s38, 0
      %p257 = por %p255, %p256
      %p258 = scmp.ne.s32.totalorder %s250, %s252
      %p259 = scmp.eq.s32.totalorder %s43, 1
      %p260 = por %p258, %p259
      %p261 = scmp.ne.s32.totalorder %s252, %s253
      %p262 = scmp.eq.s32.totalorder %s43, 0
      %p263 = por %p261, %p262
      %p264 = scmp.ne.s32.totalorder %s252, %s253
      %p265 = scmp.eq.s32.totalorder %s44, 1
      %p266 = por %p264, %p265
      %p268 = scmp.ne.s32.totalorder %s253, %s267
      %p269 = scmp.eq.s32.totalorder %s44, 0
      %p270 = por %p268, %p269
      %s272 = sadd.s32 %s271, 1
      %p275 = scmp.eq.s32.totalorder %s38, 1
      %p276 = scmp.ne.s32.totalorder %s271, %s273
      %p277 = scmp.eq.s32.totalorder %s38, 0
      %p278 = por %p276, %p277
      %p279 = scmp.ne.s32.totalorder %s271, %s273
      %p280 = scmp.eq.s32.totalorder %s43, 1
      %p281 = por %p279, %p280
      %p282 = scmp.ne.s32.totalorder %s273, %s274
      %p283 = scmp.eq.s32.totalorder %s43, 0
      %p284 = por %p282, %p283
      %p285 = scmp.ne.s32.totalorder %s273, %s274
      %p286 = scmp.eq.s32.totalorder %s44, 1
      %p287 = por %p285, %p286
      %p289 = scmp.ne.s32.totalorder %s274, %s288
      %p290 = scmp.eq.s32.totalorder %s44, 0
      %p291 = por %p289, %p290
      %s293 = sadd.s32 %s292, 1
      %p296 = scmp.eq.s32.totalorder %s38, 1
      %p297 = scmp.ne.s32.totalorder %s292, %s294
      %p298 = scmp.eq.s32.totalorder %s38, 0
      %p299 = por %p297, %p298
      %p300 = scmp.ne.s32.totalorder %s292, %s294
      %p301 = scmp.eq.s32.totalorder %s43, 1
      %p302 = por %p300, %p301
      %p303 = scmp.ne.s32.totalorder %s294, %s295
      %p304 = scmp.eq.s32.totalorder %s43, 0
      %p305 = por %p303, %p304
      %p306 = scmp.ne.s32.totalorder %s294, %s295
      %p307 = scmp.eq.s32.totalorder %s44, 1
      %p308 = por %p306, %p307
      %p310 = scmp.ne.s32.totalorder %s295, %s309
      %p311 = scmp.eq.s32.totalorder %s44, 0
      %p312 = por %p310, %p311
      %s314 = sadd.s32 %s313, 1
      %p317 = scmp.eq.s32.totalorder %s38, 1
      %p318 = scmp.ne.s32.totalorder %s313, %s315
      %p319 = scmp.eq.s32.totalorder %s38, 0
      %p320 = por %p318, %p319
      %p321 = scmp.ne.s32.totalorder %s313, %s315
      %p322 = scmp.eq.s32.totalorder %s43, 1
      %p323 = por %p321, %p322
      %p324 = scmp.ne.s32.totalorder %s315, %s316
      %p325 = scmp.eq.s32.totalorder %s43, 0
      %p326 = por %p324, %p325
      %p327 = scmp.ne.s32.totalorder %s315, %s316
      %p328 = scmp.eq.s32.totalorder %s44, 1
      %p329 = por %p327, %p328
      %p331 = scmp.ne.s32.totalorder %s316, %s330
      %p332 = scmp.eq.s32.totalorder %s44, 0
      %p333 = por %p331, %p332
      %s335 = sadd.s32 %s334, 1
      %p338 = scmp.eq.s32.totalorder %s38, 1
      %p339 = scmp.ne.s32.totalorder %s334, %s336
      %p340 = scmp.eq.s32.totalorder %s38, 0
      %p341 = por %p339, %p340
      %p342 = scmp.ne.s32.totalorder %s334, %s336
      %p343 = scmp.eq.s32.totalorder %s43, 1
      %p344 = por %p342, %p343
      %p345 = scmp.ne.s32.totalorder %s336, %s337
      %p346 = scmp.eq.s32.totalorder %s43, 0
      %p347 = por %p345, %p346
      %p348 = scmp.ne.s32.totalorder %s336, %s337
      %p349 = scmp.eq.s32.totalorder %s44, 1
      %p350 = por %p348, %p349
      %p352 = scmp.ne.s32.totalorder %s337, %s351
      %p353 = scmp.eq.s32.totalorder %s44, 0
      %p354 = por %p352, %p353
      %s356 = sadd.s32 %s355, 1
      %p359 = scmp.eq.s32.totalorder %s38, 1
      %p360 = scmp.ne.s32.totalorder %s355, %s357
      %p361 = scmp.eq.s32.totalorder %s38, 0
      %p362 = por %p360, %p361
      %p363 = scmp.ne.s32.totalorder %s355, %s357
      %p364 = scmp.eq.s32.totalorder %s43, 1
      %p365 = por %p363, %p364
      %p366 = scmp.ne.s32.totalorder %s357, %s358
      %p367 = scmp.eq.s32.totalorder %s43, 0
      %p368 = por %p366, %p367
      %p369 = scmp.ne.s32.totalorder %s357, %s358
      %p370 = scmp.eq.s32.totalorder %s44, 1
      %p371 = por %p369, %p370
      %p373 = scmp.ne.s32.totalorder %s358, %s372
      %p374 = scmp.eq.s32.totalorder %s44, 0
      %p375 = por %p373, %p374
      %s377 = sadd.s32 %s376, 1
      %p380 = scmp.eq.s32.totalorder %s38, 1
      %p381 = scmp.ne.s32.totalorder %s376, %s378
      %p382 = scmp.eq.s32.totalorder %s38, 0
      %p383 = por %p381, %p382
      %p384 = scmp.ne.s32.totalorder %s376, %s378
      %p385 = scmp.eq.s32.totalorder %s43, 1
      %p386 = por %p384, %p385
      %p387 = scmp.ne.s32.totalorder %s378, %s379
      %p388 = scmp.eq.s32.totalorder %s43, 0
      %p389 = por %p387, %p388
      %p390 = scmp.ne.s32.totalorder %s378, %s379
      %p391 = scmp.eq.s32.totalorder %s44, 1
      %p392 = por %p390, %p391
      %p394 = scmp.ne.s32.totalorder %s379, %s393
      %p395 = scmp.eq.s32.totalorder %s44, 0
      %p396 = por %p394, %p395
      %s398 = sadd.s32 %s397, 1
      %p401 = scmp.eq.s32.totalorder %s38, 1
      %p402 = scmp.ne.s32.totalorder %s397, %s399
      %p403 = scmp.eq.s32.totalorder %s38, 0
      %p404 = por %p402, %p403
      %p405 = scmp.ne.s32.totalorder %s397, %s399
      %p406 = scmp.eq.s32.totalorder %s43, 1
      %p407 = por %p405, %p406
      %p408 = scmp.ne.s32.totalorder %s399, %s400
      %p409 = scmp.eq.s32.totalorder %s43, 0
      %p410 = por %p408, %p409
      %p411 = scmp.ne.s32.totalorder %s399, %s400
      %p412 = scmp.eq.s32.totalorder %s44, 1
      %p413 = por %p411, %p412
      %p415 = scmp.ne.s32.totalorder %s400, %s414
      %p416 = scmp.eq.s32.totalorder %s44, 0
      %p417 = por %p415, %p416
      %s418 = ssub.s32 %s38, %s45
      %p419 = scmp.eq.s32.totalorder %s418, 0
      %s421 = sadd.s32 %s420, 1
      %s422 = scalar_select %p419, %s420, %s421
      %p425 = pneg %p419
      %p426 = scmp.eq.s32.totalorder %s38, 1
      %p427 = por %p425, %p426
      %p428 = scmp.ne.s32.totalorder %s420, %s423
      %p429 = scmp.eq.s32.totalorder %s38, 0
      %p430 = por %p428, %p429
      %p431 = scmp.ne.s32.totalorder %s420, %s423
      %p432 = scmp.eq.s32.totalorder %s43, 1
      %p433 = por %p431, %p432
      %p434 = scmp.ne.s32.totalorder %s423, %s424
      %p435 = scmp.eq.s32.totalorder %s43, 0
      %p436 = por %p434, %p435
      %p437 = scmp.ne.s32.totalorder %s423, %s424
      %p438 = scmp.eq.s32.totalorder %s44, 1
      %p439 = por %p437, %p438
      %p441 = scmp.ne.s32.totalorder %s424, %s440
      %p442 = scmp.eq.s32.totalorder %s44, 0
      %p443 = por %p441, %p442
      %s444 = ssub.s32 %s38, %s45
      %p445 = scmp.eq.s32.totalorder %s444, 0
      %s447 = sadd.s32 %s446, 1
      %s448 = scalar_select %p445, %s446, %s447
      %p451 = pneg %p445
      %p452 = scmp.eq.s32.totalorder %s38, 1
      %p453 = por %p451, %p452
      %p454 = scmp.ne.s32.totalorder %s446, %s449
      %p455 = scmp.eq.s32.totalorder %s38, 0
      %p456 = por %p454, %p455
      %p457 = scmp.ne.s32.totalorder %s446, %s449
      %p458 = scmp.eq.s32.totalorder %s43, 1
      %p459 = por %p457, %p458
      %p460 = scmp.ne.s32.totalorder %s449, %s450
      %p461 = scmp.eq.s32.totalorder %s43, 0
      %p462 = por %p460, %p461
      %p463 = scmp.ne.s32.totalorder %s449, %s450
      %p464 = scmp.eq.s32.totalorder %s44, 1
      %p465 = por %p463, %p464
      %p467 = scmp.ne.s32.totalorder %s450, %s466
      %p468 = scmp.eq.s32.totalorder %s44, 0
      %p469 = por %p467, %p468
      %p470 = scmp.le.s32.totalorder 1, %s38
      %p471 = scmp.lt.s32.totalorder %s38, 3
      %p472 = pnand %p470, %p471
      %p473 = pneg %p472
      // Predicated region
      $region9: #{prosody_predictor_wrapper_forward.1} parent=5 // pred_check
        _
      $region10: #{prosody_predictor_wrapper_forward.1} parent=5 // pred_check_branch
        %475 = sbr.rel (%p472) target = $region12
      $region11: #{prosody_predictor_wrapper_forward.1} parent=5 // pred_region
        %s476 = ssub.s32 %s38, 1
        // Predicated region
        $region13: #{prosody_predictor_wrapper_forward.1} parent=11 // pred_check
          %p477 = pneg %p85
        $region14: #{prosody_predictor_wrapper_forward.1} parent=11 // pred_check_branch
          %479 = sbr.rel (%p477) target = $region16
        $region15: #{prosody_predictor_wrapper_forward.1} parent=11 // pred_region
          _
        $region16: #{prosody_predictor_wrapper_forward.1} parent=11 // pred_fallthru
          _
        // Predicated region
        $region17: #{prosody_predictor_wrapper_forward.1} parent=11 // pred_check
          %p480 = pneg %p106
        $region18: #{prosody_predictor_wrapper_forward.1} parent=11 // pred_check_branch
          %482 = sbr.rel (%p480) target = $region20
        $region19: #{prosody_predictor_wrapper_forward.1} parent=11 // pred_region
          _
        $region20: #{prosody_predictor_wrapper_forward.1} parent=11 // pred_fallthru
          _
        // Predicated region
        $region21: #{prosody_predictor_wrapper_forward.1} parent=11 // pred_check
          %p483 = pneg %p127
        $region22: #{prosody_predictor_wrapper_forward.1} parent=11 // pred_check_branch
          %485 = sbr.rel (%p483) target = $region24
        $region23: #{prosody_predictor_wrapper_forward.1} parent=11 // pred_region
          _
        $region24: #{prosody_predictor_wrapper_forward.1} parent=11 // pred_fallthru
          _
        // Predicated region
        $region25: #{prosody_predictor_wrapper_forward.1} parent=11 // pred_check
          %p486 = pneg %p148
        $region26: #{prosody_predictor_wrapper_forward.1} parent=11 // pred_check_branch
          %488 = sbr.rel (%p486) target = $region28
        $region27: #{prosody_predictor_wrapper_forward.1} parent=11 // pred_region
          _
        $region28: #{prosody_predictor_wrapper_forward.1} parent=11 // pred_fallthru
          _
        // Predicated region
        $region29: #{prosody_predictor_wrapper_forward.1} parent=11 // pred_check
          %p489 = pneg %p221
        $region30: #{prosody_predictor_wrapper_forward.1} parent=11 // pred_check_branch
          %491 = sbr.rel (%p489) target = $region32
        $region31: #{prosody_predictor_wrapper_forward.1} parent=11 // pred_region
          _
        $region32: #{prosody_predictor_wrapper_forward.1} parent=11 // pred_fallthru
          _
        // Predicated region
        $region33: #{prosody_predictor_wrapper_forward.1} parent=11 // pred_check
          %p492 = pneg %p242
        $region34: #{prosody_predictor_wrapper_forward.1} parent=11 // pred_check_branch
          %494 = sbr.rel (%p492) target = $region36
        $region35: #{prosody_predictor_wrapper_forward.1} parent=11 // pred_region
          _
        $region36: #{prosody_predictor_wrapper_forward.1} parent=11 // pred_fallthru
          _
        // Predicated region
        $region37: #{prosody_predictor_wrapper_forward.1} parent=11 // pred_check
          %p495 = pneg %p263
        $region38: #{prosody_predictor_wrapper_forward.1} parent=11 // pred_check_branch
          %497 = sbr.rel (%p495) target = $region40
        $region39: #{prosody_predictor_wrapper_forward.1} parent=11 // pred_region
          _
        $region40: #{prosody_predictor_wrapper_forward.1} parent=11 // pred_fallthru
          _
        // Predicated region
        $region41: #{prosody_predictor_wrapper_forward.1} parent=11 // pred_check
          %p498 = pneg %p284
        $region42: #{prosody_predictor_wrapper_forward.1} parent=11 // pred_check_branch
          %500 = sbr.rel (%p498) target = $region44
        $region43: #{prosody_predictor_wrapper_forward.1} parent=11 // pred_region
          _
        $region44: #{prosody_predictor_wrapper_forward.1} parent=11 // pred_fallthru
          _
        // Predicated region
        $region45: #{prosody_predictor_wrapper_forward.1} parent=11 // pred_check
          %p501 = pneg %p305
        $region46: #{prosody_predictor_wrapper_forward.1} parent=11 // pred_check_branch
          %503 = sbr.rel (%p501) target = $region48
        $region47: #{prosody_predictor_wrapper_forward.1} parent=11 // pred_region
          _
        $region48: #{prosody_predictor_wrapper_forward.1} parent=11 // pred_fallthru
          _
        // Predicated region
        $region49: #{prosody_predictor_wrapper_forward.1} parent=11 // pred_check
          %p504 = pneg %p326
        $region50: #{prosody_predictor_wrapper_forward.1} parent=11 // pred_check_branch
          %506 = sbr.rel (%p504) target = $region52
        $region51: #{prosody_predictor_wrapper_forward.1} parent=11 // pred_region
          _
        $region52: #{prosody_predictor_wrapper_forward.1} parent=11 // pred_fallthru
          _
        // Predicated region
        $region53: #{prosody_predictor_wrapper_forward.1} parent=11 // pred_check
          %p507 = pneg %p347
        $region54: #{prosody_predictor_wrapper_forward.1} parent=11 // pred_check_branch
          %509 = sbr.rel (%p507) target = $region56
        $region55: #{prosody_predictor_wrapper_forward.1} parent=11 // pred_region
          _
        $region56: #{prosody_predictor_wrapper_forward.1} parent=11 // pred_fallthru
          _
        // Predicated region
        $region57: #{prosody_predictor_wrapper_forward.1} parent=11 // pred_check
          %p510 = pneg %p368
        $region58: #{prosody_predictor_wrapper_forward.1} parent=11 // pred_check_branch
          %512 = sbr.rel (%p510) target = $region60
        $region59: #{prosody_predictor_wrapper_forward.1} parent=11 // pred_region
          _
        $region60: #{prosody_predictor_wrapper_forward.1} parent=11 // pred_fallthru
          _
        // Predicated region
        $region61: #{prosody_predictor_wrapper_forward.1} parent=11 // pred_check
          %p513 = pneg %p389
        $region62: #{prosody_predictor_wrapper_forward.1} parent=11 // pred_check_branch
          %515 = sbr.rel (%p513) target = $region64
        $region63: #{prosody_predictor_wrapper_forward.1} parent=11 // pred_region
          _
        $region64: #{prosody_predictor_wrapper_forward.1} parent=11 // pred_fallthru
          _
        // Predicated region
        $region65: #{prosody_predictor_wrapper_forward.1} parent=11 // pred_check
          %p516 = pneg %p410
        $region66: #{prosody_predictor_wrapper_forward.1} parent=11 // pred_check_branch
          %518 = sbr.rel (%p516) target = $region68
        $region67: #{prosody_predictor_wrapper_forward.1} parent=11 // pred_region
          _
        $region68: #{prosody_predictor_wrapper_forward.1} parent=11 // pred_fallthru
          _
      $region12: #{prosody_predictor_wrapper_forward.1} parent=5 // pred_fallthru
        _
      %p519 = scmp.lt.s32.totalorder %s38, 2
      // Predicated region
      $region69: #{prosody_predictor_wrapper_forward.1} parent=5 // pred_check
        %p520 = pneg %p519
      $region70: #{prosody_predictor_wrapper_forward.1} parent=5 // pred_check_branch
        %522 = sbr.rel (%p520) target = $region72
      $region71: #{prosody_predictor_wrapper_forward.1} parent=5 // pred_region
        // Predicated region
        $region73: #{prosody_predictor_wrapper_forward.1} parent=71 // pred_check
          %p523 = pneg %p58
        $region74: #{prosody_predictor_wrapper_forward.1} parent=71 // pred_check_branch
          %525 = sbr.rel (%p523) target = $region76
        $region75: #{prosody_predictor_wrapper_forward.1} parent=71 // pred_region
          %p526 = scmp.lt.s32.totalorder %s38, 1
          %s527 = scalar_select %p526, %s38, 1
          %s528 = smul.addr %s527, 2
          %s529 = smul.addr %s528, 8
          %s530 = scalar_lea.vmem %s1, %s529
        $region76: #{prosody_predictor_wrapper_forward.1} parent=71 // pred_fallthru
          _
        // Predicated region
        $region77: #{prosody_predictor_wrapper_forward.1} parent=71 // pred_check
          %p531 = pneg %p168
        $region78: #{prosody_predictor_wrapper_forward.1} parent=71 // pred_check_branch
          %533 = sbr.rel (%p531) target = $region80
        $region79: #{prosody_predictor_wrapper_forward.1} parent=71 // pred_region
          %p534 = scmp.lt.s32.totalorder %s38, 1
          %s535 = scalar_select %p534, %s38, 1
          %s536 = smul.addr %s535, 2
          %s537 = scalar_lea.vmem %s6, %s536
        $region80: #{prosody_predictor_wrapper_forward.1} parent=71 // pred_fallthru
          _
        // Predicated region
        $region81: #{prosody_predictor_wrapper_forward.1} parent=71 // pred_check
          %p538 = pneg %p194
        $region82: #{prosody_predictor_wrapper_forward.1} parent=71 // pred_check_branch
          %540 = sbr.rel (%p538) target = $region84
        $region83: #{prosody_predictor_wrapper_forward.1} parent=71 // pred_region
          %p541 = scmp.lt.s32.totalorder %s38, 1
          %s542 = scalar_select %p541, %s38, 1
          %s543 = scalar_lea.vmem %s7, %s542
        $region84: #{prosody_predictor_wrapper_forward.1} parent=71 // pred_fallthru
          _
      $region72: #{prosody_predictor_wrapper_forward.1} parent=5 // pred_fallthru
        _
      %p544 = scmp.le.s32.totalorder 1, %s38
      %p545 = scmp.lt.s32.totalorder %s38, 3
      %p546 = pnand %p544, %p545
      %p547 = pneg %p546
      // Predicated region
      $region85: #{prosody_predictor_wrapper_forward.1} parent=5 // pred_check
        _
      $region86: #{prosody_predictor_wrapper_forward.1} parent=5 // pred_check_branch
        %549 = sbr.rel (%p546) target = $region88
      $region87: #{prosody_predictor_wrapper_forward.1} parent=5 // pred_region
        %s550 = ssub.s32 %s38, 1
        %p551 = scmp.lt.s32.totalorder %s43, 1
        %s552 = scalar_select %p551, %s43, 1
        %s553 = smul.addr %s552, 2
        %s554 = smul.addr %s553, 8
        %s555 = scalar_lea.vmem %s1, %s554
        %p556 = pneg %p64
        %p557 = pneg %p61
        %p558 = pneg %p85
        %p559 = pneg %p82
        %p560 = pneg %p106
        %p561 = pneg %p103
        %p562 = pneg %p127
        %p563 = pneg %p124
        %p564 = pneg %p148
        %p565 = pneg %p145
        %p566 = scmp.lt.s32.totalorder %s43, 1
        %s567 = scalar_select %p566, %s43, 1
        %s568 = smul.addr %s567, 2
        %s569 = scalar_lea.vmem %s6, %s568
        %p570 = pneg %p174
        %p571 = pneg %p171
        %p572 = scmp.lt.s32.totalorder %s43, 1
        %s573 = scalar_select %p572, %s43, 1
        %s574 = scalar_lea.vmem %s7, %s573
        %p575 = pneg %p200
        %p576 = pneg %p197
        %p577 = pneg %p221
        %p578 = pneg %p218
        %p579 = pneg %p242
        %p580 = pneg %p239
        %p581 = pneg %p263
        %p582 = pneg %p260
        %p583 = pneg %p284
        %p584 = pneg %p281
        %p585 = pneg %p305
        %p586 = pneg %p302
        %p587 = pneg %p326
        %p588 = pneg %p323
        %p589 = pneg %p347
        %p590 = pneg %p344
        %p591 = pneg %p368
        %p592 = pneg %p365
        %p593 = pneg %p389
        %p594 = pneg %p386
        %p595 = pneg %p410
        %p596 = pneg %p407
        %p597 = pneg %p436
        %p598 = pneg %p433
        %s599 = sand.u32 %s423, 1
        %s600 = scalar_lea.sflag [#allocation9], %s599
        %s601 = sand.u32 %s423, 1
        %s602 = smul.addr %s601, 8
        %s603 = scalar_lea.vmem [#allocation8], %s602
        %p604 = pneg %p462
        %p605 = pneg %p459
        %s606 = sand.u32 %s449, 1
        %s607 = scalar_lea.sflag [#allocation11], %s606
        %s608 = sand.u32 %s449, 1
        %s609 = smul.addr %s608, 8
        %s610 = scalar_lea.vmem [#allocation10], %s609
        %p611 = scmp.lt.s32.totalorder %s43, 1
        %s612 = scalar_select %p611, %s43, 1
        %s613 = smul.addr %s612, 2
        %s614 = smul.addr %s613, 8
        %s615 = scalar_lea.vmem %s1, %s614
        %p616 = scmp.lt.s32.totalorder %s43, 1
        %s617 = scalar_select %p616, %s43, 1
        %s618 = smul.addr %s617, 2
        %s619 = scalar_lea.vmem %s6, %s618
        %p620 = scmp.lt.s32.totalorder %s43, 1
        %s621 = scalar_select %p620, %s43, 1
        %s622 = scalar_lea.vmem %s7, %s621
        %s623 = sld [smem:[#allocation7 + %s43]]
        %v624 = vld [vmem:[%s615] sm:$0xff]
        %v625 = vld [vmem:[%s615 + $0x8] sm:$0xf]
        %vm628 = vcmask 1046528
        %v629 = vrot.slane %v624, 1
        %v630 = vrot.slane %v625, 1
        %v631 = vsel %vm628, %v629, %v630
        %632 = vrot.lane.b32.xlu0 %v631, 16
        %v633 = vpop.permute.xlu0 %632
        %vm635 = vcmask 1045504
        %v636 = vrot.slane %v624, 2
        %v637 = vrot.slane %v625, 2
        %v638 = vsel %vm635, %v636, %v637
        %639 = vrot.lane.b32.xlu0 %v638, 32
        %v640 = vpop.permute.xlu0 %639
        %vm642 = vcmask 1044480
        %v643 = vrot.slane %v624, 3
        %v644 = vrot.slane %v625, 3
        %v645 = vsel %vm642, %v643, %v644
        %646 = vrot.lane.b32.xlu0 %v645, 48
        %v647 = vpop.permute.xlu0 %646
        %vm649 = vcmask 1043456
        %v650 = vrot.slane %v624, 4
        %v651 = vrot.slane %v625, 4
        %v652 = vsel %vm649, %v650, %v651
        %653 = vrot.lane.b32.xlu0 %v652, 64
        %v654 = vpop.permute.xlu0 %653
        %vm656 = vcmask 130048
        %v657 = vsel %vm656, %v624, %v633
        %vm658 = vcmask 261120
        %v659 = vsel %vm658, %v657, %v640
        %vm660 = vcmask 392192
        %v661 = vsel %vm660, %v659, %v647
        %vm662 = vcmask 523264
        %v663 = vsel %vm662, %v661, %v654
        %v664 = vld [vmem:[%s2] sm:$0xff]
        %v665 = vld [vmem:[%s2 + $0x8] sm:$0xff]
        %v666 = vld [vmem:[%s2 + $0x10] sm:$0xff]
        %v667 = vld [vmem:[%s2 + $0x18] sm:$0xff]
        %v668 = vld [vmem:[%s2 + $0x20] sm:$0xff]
        %v669 = vld [vmem:[%s2 + $0x28] sm:$0xff]
        %v670 = vld [vmem:[%s2 + $0x30] sm:$0xff]
        %v671 = vld [vmem:[%s2 + $0x38] sm:$0xff]
        %v672 = vld [vmem:[%s2 + $0x40] sm:$0xff]
        %v673 = vld [vmem:[%s2 + $0x48] sm:$0xff]
        %v674 = vld [vmem:[%s5] sm:$0x1]
        %v675 = vlaneseq
        %v676 = vshrl.u32 %v675, 7
        %v677 = vsub.s32 0, %v676
        %v678 = vrot.slane %v674, %v677
        %vm679 = vcmask 654336
        %v681 = vsel %vm679, %v663, 0
        %683 = vmatprep.subr.mxu0 0.0
        %684 = vmatpush1.msra.mxu0 %v664
        %685 = vmatprep.subr.mxu0 0.0
        %686 = vmatpush1.msra.mxu0 %v665
        %687 = vmatprep.subr.mxu0 0.0
        %688 = vmatpush1.msra.mxu0 %v666
        %689 = vmatprep.subr.mxu0 0.0
        %690 = vmatpush1.msra.mxu0 %v667
        %691 = vmatprep.subr.mxu0 0.0
        %692 = vmatpush1.msra.mxu0 %v668
        %693 = vmatprep.subr.mxu0 0.0
        %694 = vmatpush1.msra.mxu0 %v669
        %695 = vmatprep.subr.mxu0 0.0
        %696 = vmatpush1.msra.mxu0 %v670
        %697 = vmatprep.subr.mxu0 0.0
        %698 = vmatpush1.msra.mxu0 %v671
        %699 = vmatprep.subr.mxu0 0.0
        %700 = vmatpush1.msra.mxu0 %v672
        %701 = vmatprep.subr.mxu0 0.0
        %702 = vmatpush1.msra.mxu0 %v673
        %703 = vmatprep.subr.mxu0 0.0
        %704 = vmatpush1.msra.mxu0 0.0
        %705 = vmatprep.subr.mxu0 0.0
        %706 = vmatpush1.msra.mxu0 0.0
        %707 = vmatprep.subr.mxu0 0.0
        %708 = vmatpush1.msra.mxu0 0.0
        %709 = vmatprep.subr.mxu0 0.0
        %710 = vmatpush1.msra.mxu0 0.0
        %711 = vmatprep.subr.mxu0 0.0
        %712 = vmatpush1.msra.mxu0 0.0
        %713 = vmatprep.subr.mxu0 0.0
        %714 = vmatpush1.msra.mxu0 0.0
        %715 = vmatprep.subr.mxu0 0.0
        %716 = vmatpush1.msra.mxu0 0.0
        %717 = vmatprep.subr.mxu0 0.0
        %718 = vmatpush1.msra.mxu0 0.0
        %719 = vmatprep.subr.mxu0 0.0
        %720 = vmatpush1.msra.mxu0 0.0
        %721 = vmatprep.subr.mxu0 0.0
        %722 = vmatpush1.msra.mxu0 0.0
        %723 = vmatprep.subr.mxu0 0.0
        %724 = vmatpush1.msra.mxu0 0.0
        %725 = vmatprep.subr.mxu0 0.0
        %726 = vmatpush1.msra.mxu0 0.0
        %727 = vmatprep.subr.mxu0 0.0
        %728 = vmatpush1.msra.mxu0 0.0
        %729 = vmatprep.subr.mxu0 0.0
        %730 = vmatpush1.msra.mxu0 0.0
        %731 = vmatprep.subr.mxu0 0.0
        %732 = vmatpush1.msra.mxu0 0.0
        %733 = vmatprep.subr.mxu0 0.0
        %734 = vmatpush1.msra.mxu0 0.0
        %735 = vmatprep.subr.mxu0 0.0
        %736 = vmatpush1.msra.mxu0 0.0
        %737 = vmatprep.subr.mxu0 0.0
        %738 = vmatpush1.msra.mxu0 0.0
        %739 = vmatprep.subr.mxu0 0.0
        %740 = vmatpush1.msra.mxu0 0.0
        %741 = vmatprep.subr.mxu0 0.0
        %742 = vmatpush1.msra.mxu0 0.0
        %743 = vmatprep.subr.mxu0 0.0
        %744 = vmatpush1.msra.mxu0 0.0
        %745 = vmatprep.subr.mxu0 0.0
        %746 = vmatpush1.msra.mxu0 0.0
        %747 = vmatprep.mubr.f32.mxu0 0.0
        %748 = vmatmul.mubr.f32.gmra.mrb[0].mxu0 %v681
        %v749 = vpop.f32.mrb[0].mxu0
        %v750 = vadd.f32 %v678, %v749
        %v751 = vpop.f32.mrb[0].mxu0
        %752 = vdwg.mxu0
        %v753 = vmax.f32 %v750, 0.0
        %v755 = vrot.slane %v753, 6
        %vm757 = vcmask 1041408
        %v758 = vsel %vm757, 0.0, %v755
        %v759 = vsel %vm757, %v755, 0.0
        %v762 = vrot.slane %v758, 1
        %v763 = vrot.slane %v759, 1
        %v764 = vsel %vm628, %v762, %v763
        %765 = vrot.lane.b32.xlu0 %v764, 32
        %v766 = vpop.permute.xlu0 %765
        %v768 = vrot.slane %v758, 2
        %v769 = vrot.slane %v759, 2
        %v770 = vsel %vm635, %v768, %v769
        %771 = vrot.lane.b32.xlu0 %v770, 64
        %v772 = vpop.permute.xlu0 %771
        %v774 = vrot.slane %v758, 3
        %v775 = vrot.slane %v759, 3
        %v776 = vsel %vm642, %v774, %v775
        %777 = vrot.lane.b32.xlu0 %v776, 96
        %v778 = vpop.permute.xlu0 %777
        %v780 = vrot.slane %v758, 4
        %v781 = vrot.slane %v759, 4
        %v782 = vsel %vm649, %v780, %v781
        %v783 = vsel %vm658, %v758, %v766
        %v784 = vsel %vm662, %v783, %v772
        %vm785 = vcmask 785408
        %v786 = vsel %vm785, %v784, %v778
        %v787 = vld [vmem:[%s3] sm:$0xff]
        %v788 = vld [vmem:[%s3 + $0x8] sm:$0xff]
        %v789 = vld [vmem:[%s3 + $0x10] sm:$0xff]
        %v790 = vld [vmem:[%s3 + $0x18] sm:$0xff]
        %v791 = vld [vmem:[%s3 + $0x20] sm:$0xff]
        %v792 = vld [vmem:[%s3 + $0x28] sm:$0xff]
        %v793 = vld [vmem:[%s3 + $0x30] sm:$0xff]
        %v794 = vld [vmem:[%s3 + $0x38] sm:$0xff]
        %v795 = vld [vmem:[%s3 + $0x40] sm:$0xff]
        %v796 = vld [vmem:[%s3 + $0x48] sm:$0xff]
        %v797 = vld [vmem:[%s3 + $0x50] sm:$0xff]
        %v798 = vld [vmem:[%s3 + $0x58] sm:$0xff]
        %v799 = vld [vmem:[%s3 + $0x60] sm:$0xff]
        %v800 = vld [vmem:[%s3 + $0x68] sm:$0xff]
        %v801 = vld [vmem:[%s3 + $0x70] sm:$0xff]
        %v802 = vld [vmem:[%s3 + $0x78] sm:$0xff]
        %v803 = vld [vmem:[%s3 + $0x80] sm:$0xff]
        %v804 = vld [vmem:[%s3 + $0x88] sm:$0xff]
        %v805 = vld [vmem:[%s3 + $0x90] sm:$0xff]
        %v806 = vld [vmem:[%s3 + $0x98] sm:$0xff]
        %v807 = vld [vmem:[%s5 + $0x1] sm:$0x1]
        %v808 = vlaneseq
        %v809 = vshrl.u32 %v808, 7
        %v810 = vsub.s32 0, %v809
        %v811 = vrot.slane %v807, %v810
        %v812 = vsel %vm658, %v782, 0
        %814 = vmatprep.subr.mxu0 0.0
        %815 = vmatpush1.msra.mxu0 %v787
        %816 = vmatprep.subr.mxu0 0.0
        %817 = vmatpush1.msra.mxu0 %v788
        %818 = vmatprep.subr.mxu0 0.0
        %819 = vmatpush1.msra.mxu0 %v789
        %820 = vmatprep.subr.mxu0 0.0
        %821 = vmatpush1.msra.mxu0 %v790
        %822 = vmatprep.subr.mxu0 0.0
        %823 = vmatpush1.msra.mxu0 %v791
        %824 = vmatprep.subr.mxu0 0.0
        %825 = vmatpush1.msra.mxu0 %v792
        %826 = vmatprep.subr.mxu0 0.0
        %827 = vmatpush1.msra.mxu0 %v793
        %828 = vmatprep.subr.mxu0 0.0
        %829 = vmatpush1.msra.mxu0 %v794
        %830 = vmatprep.subr.mxu0 0.0
        %831 = vmatpush1.msra.mxu0 %v795
        %832 = vmatprep.subr.mxu0 0.0
        %833 = vmatpush1.msra.mxu0 %v796
        %834 = vmatprep.subr.mxu0 0.0
        %835 = vmatpush1.msra.mxu0 %v797
        %836 = vmatprep.subr.mxu0 0.0
        %837 = vmatpush1.msra.mxu0 %v798
        %838 = vmatprep.subr.mxu0 0.0
        %839 = vmatpush1.msra.mxu0 %v799
        %840 = vmatprep.subr.mxu0 0.0
        %841 = vmatpush1.msra.mxu0 %v800
        %842 = vmatprep.subr.mxu0 0.0
        %843 = vmatpush1.msra.mxu0 %v801
        %844 = vmatprep.subr.mxu0 0.0
        %845 = vmatpush1.msra.mxu0 %v802
        %846 = vmatprep.subr.mxu0 0.0
        %847 = vmatpush1.msra.mxu0 %v803
        %848 = vmatprep.subr.mxu0 0.0
        %849 = vmatpush1.msra.mxu0 %v804
        %850 = vmatprep.subr.mxu0 0.0
        %851 = vmatpush1.msra.mxu0 %v805
        %852 = vmatprep.subr.mxu0 0.0
        %853 = vmatpush1.msra.mxu0 %v806
        %854 = vmatprep.subr.mxu0 0.0
        %855 = vmatpush1.msra.mxu0 0.0
        %856 = vmatprep.subr.mxu0 0.0
        %857 = vmatpush1.msra.mxu0 0.0
        %858 = vmatprep.subr.mxu0 0.0
        %859 = vmatpush1.msra.mxu0 0.0
        %860 = vmatprep.subr.mxu0 0.0
        %861 = vmatpush1.msra.mxu0 0.0
        %862 = vmatprep.subr.mxu0 0.0
        %863 = vmatpush1.msra.mxu0 0.0
        %864 = vmatprep.subr.mxu0 0.0
        %865 = vmatpush1.msra.mxu0 0.0
        %866 = vmatprep.subr.mxu0 0.0
        %867 = vmatpush1.msra.mxu0 0.0
        %868 = vmatprep.subr.mxu0 0.0
        %869 = vmatpush1.msra.mxu0 0.0
        %870 = vmatprep.subr.mxu0 0.0
        %871 = vmatpush1.msra.mxu0 0.0
        %872 = vmatprep.subr.mxu0 0.0
        %873 = vmatpush1.msra.mxu0 0.0
        %874 = vmatprep.subr.mxu0 0.0
        %875 = vmatpush1.msra.mxu0 0.0
        %876 = vmatprep.subr.mxu0 0.0
        %877 = vmatpush1.msra.mxu0 0.0
        %878 = vmatprep.mubr.f32.mxu0 %v812
        %879 = vmatmul.mubr.f32.gmra.mrb[0].mxu0 %v786
        %v880 = vpop.f32.mrb[0].mxu0
        %v881 = vadd.f32 %v811, %v880
        %v882 = vpop.f32.mrb[0].mxu0
        %883 = vdwg.mxu0
        %v884 = vmax.f32 %v881, 0.0
        %v885 = vld [vmem:[%s619] sm:$0x1]
        %v886 = vlaneseq
        %v887 = vshrl.u32 %v886, 7
        %v888 = vsub.s32 0, %v887
        %v889 = vrot.slane %v885, %v888
        %v890 = vadd.f32 %v884, %v889
        %v892 = vrot.slane %v890, 6
        %v894 = vsel %vm757, 0.0, %v892
        %v895 = vsel %vm757, %v892, 0.0
        %v898 = vrot.slane %v894, 1
        %v899 = vrot.slane %v895, 1
        %v900 = vsel %vm628, %v898, %v899
        %901 = vrot.lane.b32.xlu0 %v900, 32
        %v902 = vpop.permute.xlu0 %901
        %v904 = vrot.slane %v894, 2
        %v905 = vrot.slane %v895, 2
        %v906 = vsel %vm635, %v904, %v905
        %907 = vrot.lane.b32.xlu0 %v906, 64
        %v908 = vpop.permute.xlu0 %907
        %v910 = vrot.slane %v894, 3
        %v911 = vrot.slane %v895, 3
        %v912 = vsel %vm642, %v910, %v911
        %913 = vrot.lane.b32.xlu0 %v912, 96
        %v914 = vpop.permute.xlu0 %913
        %v916 = vrot.slane %v894, 4
        %v917 = vrot.slane %v895, 4
        %v918 = vsel %vm649, %v916, %v917
        %v919 = vsel %vm658, %v894, %v902
        %v920 = vsel %vm662, %v919, %v908
        %v921 = vsel %vm785, %v920, %v914
        %v922 = vld [vmem:[%s4] sm:$0xff]
        %v923 = vld [vmem:[%s4 + $0x8] sm:$0xff]
        %v924 = vld [vmem:[%s4 + $0x10] sm:$0xff]
        %v925 = vld [vmem:[%s4 + $0x18] sm:$0xff]
        %v926 = vld [vmem:[%s4 + $0x20] sm:$0xff]
        %v927 = vld [vmem:[%s4 + $0x28] sm:$0xff]
        %v928 = vld [vmem:[%s4 + $0x30] sm:$0xff]
        %v929 = vld [vmem:[%s4 + $0x38] sm:$0xff]
        %v930 = vld [vmem:[%s4 + $0x40] sm:$0xff]
        %v931 = vld [vmem:[%s4 + $0x48] sm:$0xff]
        %v932 = vld [vmem:[%s4 + $0x50] sm:$0xff]
        %v933 = vld [vmem:[%s4 + $0x58] sm:$0xff]
        %v934 = vld [vmem:[%s4 + $0x60] sm:$0xff]
        %v935 = vld [vmem:[%s4 + $0x68] sm:$0xff]
        %v936 = vld [vmem:[%s4 + $0x70] sm:$0xff]
        %v937 = vld [vmem:[%s4 + $0x78] sm:$0xff]
        %v938 = vld [vmem:[%s4 + $0x80] sm:$0xff]
        %v939 = vld [vmem:[%s4 + $0x88] sm:$0xff]
        %v940 = vld [vmem:[%s4 + $0x90] sm:$0xff]
        %v941 = vld [vmem:[%s4 + $0x98] sm:$0xff]
        %v942 = vld [vmem:[%s5 + $0x2] sm:$0x1]
        %v943 = vlaneseq
        %v944 = vshrl.u32 %v943, 7
        %v945 = vsub.s32 0, %v944
        %v946 = vrot.slane %v942, %v945
        %v947 = vsel %vm658, %v918, 0
        %949 = vmatprep.subr.mxu0 0.0
        %950 = vmatpush1.msra.mxu0 %v922
        %951 = vmatprep.subr.mxu0 0.0
        %952 = vmatpush1.msra.mxu0 %v923
        %953 = vmatprep.subr.mxu0 0.0
        %954 = vmatpush1.msra.mxu0 %v924
        %955 = vmatprep.subr.mxu0 0.0
        %956 = vmatpush1.msra.mxu0 %v925
        %957 = vmatprep.subr.mxu0 0.0
        %958 = vmatpush1.msra.mxu0 %v926
        %959 = vmatprep.subr.mxu0 0.0
        %960 = vmatpush1.msra.mxu0 %v927
        %961 = vmatprep.subr.mxu0 0.0
        %962 = vmatpush1.msra.mxu0 %v928
        %963 = vmatprep.subr.mxu0 0.0
        %964 = vmatpush1.msra.mxu0 %v929
        %965 = vmatprep.subr.mxu0 0.0
        %966 = vmatpush1.msra.mxu0 %v930
        %967 = vmatprep.subr.mxu0 0.0
        %968 = vmatpush1.msra.mxu0 %v931
        %969 = vmatprep.subr.mxu0 0.0
        %970 = vmatpush1.msra.mxu0 %v932
        %971 = vmatprep.subr.mxu0 0.0
        %972 = vmatpush1.msra.mxu0 %v933
        %973 = vmatprep.subr.mxu0 0.0
        %974 = vmatpush1.msra.mxu0 %v934
        %975 = vmatprep.subr.mxu0 0.0
        %976 = vmatpush1.msra.mxu0 %v935
        %977 = vmatprep.subr.mxu0 0.0
        %978 = vmatpush1.msra.mxu0 %v936
        %979 = vmatprep.subr.mxu0 0.0
        %980 = vmatpush1.msra.mxu0 %v937
        %981 = vmatprep.subr.mxu0 0.0
        %982 = vmatpush1.msra.mxu0 %v938
        %983 = vmatprep.subr.mxu0 0.0
        %984 = vmatpush1.msra.mxu0 %v939
        %985 = vmatprep.subr.mxu0 0.0
        %986 = vmatpush1.msra.mxu0 %v940
        %987 = vmatprep.subr.mxu0 0.0
        %988 = vmatpush1.msra.mxu0 %v941
        %989 = vmatprep.subr.mxu0 0.0
        %990 = vmatpush1.msra.mxu0 0.0
        %991 = vmatprep.subr.mxu0 0.0
        %992 = vmatpush1.msra.mxu0 0.0
        %993 = vmatprep.subr.mxu0 0.0
        %994 = vmatpush1.msra.mxu0 0.0
        %995 = vmatprep.subr.mxu0 0.0
        %996 = vmatpush1.msra.mxu0 0.0
        %997 = vmatprep.subr.mxu0 0.0
        %998 = vmatpush1.msra.mxu0 0.0
        %999 = vmatprep.subr.mxu0 0.0
        %1000 = vmatpush1.msra.mxu0 0.0
        %1001 = vmatprep.subr.mxu0 0.0
        %1002 = vmatpush1.msra.mxu0 0.0
        %1003 = vmatprep.subr.mxu0 0.0
        %1004 = vmatpush1.msra.mxu0 0.0
        %1005 = vmatprep.subr.mxu0 0.0
        %1006 = vmatpush1.msra.mxu0 0.0
        %1007 = vmatprep.subr.mxu0 0.0
        %1008 = vmatpush1.msra.mxu0 0.0
        %1009 = vmatprep.subr.mxu0 0.0
        %1010 = vmatpush1.msra.mxu0 0.0
        %1011 = vmatprep.subr.mxu0 0.0
        %1012 = vmatpush1.msra.mxu0 0.0
        %1013 = vmatprep.mubr.f32.mxu0 %v947
        %1014 = vmatmul.mubr.f32.gmra.mrb[0].mxu0 %v921
        %v1015 = vpop.f32.mrb[0].mxu0
        %v1016 = vadd.f32 %v946, %v1015
        %v1017 = vpop.f32.mrb[0].mxu0
        %1018 = vdwg.mxu0
        %v1019 = vmax.f32 %v1016, 0.0
        %v1020 = vld [vmem:[%s619 + $0x1] sm:$0x1]
        %v1021 = vlaneseq
        %v1022 = vshrl.u32 %v1021, 7
        %v1023 = vsub.s32 0, %v1022
        %v1024 = vrot.slane %v1020, %v1023
        %v1025 = vadd.f32 %v1019, %v1024
        %v1026 = vld [vmem:[%s8] sm:$0xff]
        %v1027 = vld [vmem:[%s8 + $0x8] sm:$0xff]
        %v1028 = vld [vmem:[%s8 + $0x10] sm:$0xff]
        %v1029 = vld [vmem:[%s8 + $0x18] sm:$0xff]
        %v1030 = vld [vmem:[%s9] sm:$0x1]
        %v1032 = vlaneseq
        %v1033 = vshrl.u32 %v1032, 7
        %v1034 = vsub.s32 0, %v1033
        %v1035 = vrot.slane %v1030, %v1034
        %v1038 = vsel %vm658, %v1025, 0
        %1040 = vmatprep.subr.mxu0 0.0
        %1041 = vmatpush1.msra.mxu0 %v1026
        %1042 = vmatprep.subr.mxu0 0.0
        %1043 = vmatpush1.msra.mxu0 %v1027
        %1044 = vmatprep.subr.mxu0 0.0
        %1045 = vmatpush1.msra.mxu0 %v1028
        %1046 = vmatprep.subr.mxu0 0.0
        %1047 = vmatpush1.msra.mxu0 %v1029
        %1048 = vmatprep.subr.mxu0 0.0
        %1049 = vmatpush1.msra.mxu0 0.0
        %1050 = vmatprep.subr.mxu0 0.0
        %1051 = vmatpush1.msra.mxu0 0.0
        %1052 = vmatprep.subr.mxu0 0.0
        %1053 = vmatpush1.msra.mxu0 0.0
        %1054 = vmatprep.subr.mxu0 0.0
        %1055 = vmatpush1.msra.mxu0 0.0
        %1056 = vmatprep.subr.mxu0 0.0
        %1057 = vmatpush1.msra.mxu0 0.0
        %1058 = vmatprep.subr.mxu0 0.0
        %1059 = vmatpush1.msra.mxu0 0.0
        %1060 = vmatprep.subr.mxu0 0.0
        %1061 = vmatpush1.msra.mxu0 0.0
        %1062 = vmatprep.subr.mxu0 0.0
        %1063 = vmatpush1.msra.mxu0 0.0
        %1064 = vmatprep.subr.mxu0 0.0
        %1065 = vmatpush1.msra.mxu0 0.0
        %1066 = vmatprep.subr.mxu0 0.0
        %1067 = vmatpush1.msra.mxu0 0.0
        %1068 = vmatprep.subr.mxu0 0.0
        %1069 = vmatpush1.msra.mxu0 0.0
        %1070 = vmatprep.subr.mxu0 0.0
        %1071 = vmatpush1.msra.mxu0 0.0
        %1072 = vmatprep.subr.mxu0 0.0
        %1073 = vmatpush1.msra.mxu0 0.0
        %1074 = vmatprep.subr.mxu0 0.0
        %1075 = vmatpush1.msra.mxu0 0.0
        %1076 = vmatprep.subr.mxu0 0.0
        %1077 = vmatpush1.msra.mxu0 0.0
        %1078 = vmatprep.subr.mxu0 0.0
        %1079 = vmatpush1.msra.mxu0 0.0
        %1080 = vmatprep.subr.mxu0 0.0
        %1081 = vmatpush1.msra.mxu0 0.0
        %1082 = vmatprep.subr.mxu0 0.0
        %1083 = vmatpush1.msra.mxu0 0.0
        %1084 = vmatprep.subr.mxu0 0.0
        %1085 = vmatpush1.msra.mxu0 0.0
        %1086 = vmatprep.subr.mxu0 0.0
        %1087 = vmatpush1.msra.mxu0 0.0
        %1088 = vmatprep.subr.mxu0 0.0
        %1089 = vmatpush1.msra.mxu0 0.0
        %1090 = vmatprep.subr.mxu0 0.0
        %1091 = vmatpush1.msra.mxu0 0.0
        %1092 = vmatprep.subr.mxu0 0.0
        %1093 = vmatpush1.msra.mxu0 0.0
        %1094 = vmatprep.subr.mxu0 0.0
        %1095 = vmatpush1.msra.mxu0 0.0
        %1096 = vmatprep.subr.mxu0 0.0
        %1097 = vmatpush1.msra.mxu0 0.0
        %1098 = vmatprep.subr.mxu0 0.0
        %1099 = vmatpush1.msra.mxu0 0.0
        %1100 = vmatprep.subr.mxu0 0.0
        %1101 = vmatpush1.msra.mxu0 0.0
        %1102 = vmatprep.subr.mxu0 0.0
        %1103 = vmatpush1.msra.mxu0 0.0
        %1104 = vmatprep.mubr.f32.mxu0 0.0
        %1105 = vmatmul.mubr.f32.gmra.mrb[0].mxu0 %v1038
        %v1106 = vpop.f32.mrb[0].mxu0
        %v1107 = vadd.f32 %v1035, %v1106
        %v1108 = vpop.f32.mrb[0].mxu0
        %1109 = vdwg.mxu0
        %1110 = vst [vmem:[#allocation2] sm:$0xff] %v1107
        %v1111 = vld [vmem:[%s10] sm:$0xff]
        %v1112 = vld [vmem:[%s10 + $0x8] sm:$0xff]
        %v1113 = vld [vmem:[%s11] sm:$0xff]
        %v1114 = vld [vmem:[%s11 + $0x8] sm:$0xff]
        %v1115 = vld [vmem:[#allocation2] sm:$0x1]
        %v1117 = vsel %vm656, 0.0, 0
        %1119 = vmatprep.subr.mxu0 0.0
        %1120 = vmatpush1.msra.mxu0 %v1111
        %1121 = vmatprep.subr.mxu0 0.0
        %1122 = vmatpush1.msra.mxu0 %v1112
        %1123 = vmatprep.subr.mxu0 0.0
        %1124 = vmatpush1.msra.mxu0 0.0
        %1125 = vmatprep.subr.mxu0 0.0
        %1126 = vmatpush1.msra.mxu0 0.0
        %1127 = vmatprep.subr.mxu0 0.0
        %1128 = vmatpush1.msra.mxu0 0.0
        %1129 = vmatprep.subr.mxu0 0.0
        %1130 = vmatpush1.msra.mxu0 0.0
        %1131 = vmatprep.subr.mxu0 0.0
        %1132 = vmatpush1.msra.mxu0 0.0
        %1133 = vmatprep.subr.mxu0 0.0
        %1134 = vmatpush1.msra.mxu0 0.0
        %1135 = vmatprep.subr.mxu0 0.0
        %1136 = vmatpush1.msra.mxu0 0.0
        %1137 = vmatprep.subr.mxu0 0.0
        %1138 = vmatpush1.msra.mxu0 0.0
        %1139 = vmatprep.subr.mxu0 0.0
        %1140 = vmatpush1.msra.mxu0 0.0
        %1141 = vmatprep.subr.mxu0 0.0
        %1142 = vmatpush1.msra.mxu0 0.0
        %1143 = vmatprep.subr.mxu0 0.0
        %1144 = vmatpush1.msra.mxu0 0.0
        %1145 = vmatprep.subr.mxu0 0.0
        %1146 = vmatpush1.msra.mxu0 0.0
        %1147 = vmatprep.subr.mxu0 0.0
        %1148 = vmatpush1.msra.mxu0 0.0
        %1149 = vmatprep.subr.mxu0 0.0
        %1150 = vmatpush1.msra.mxu0 0.0
        %1151 = vmatprep.subr.mxu0 0.0
        %1152 = vmatpush1.msra.mxu0 0.0
        %1153 = vmatprep.subr.mxu0 0.0
        %1154 = vmatpush1.msra.mxu0 0.0
        %1155 = vmatprep.subr.mxu0 0.0
        %1156 = vmatpush1.msra.mxu0 0.0
        %1157 = vmatprep.subr.mxu0 0.0
        %1158 = vmatpush1.msra.mxu0 0.0
        %1159 = vmatprep.subr.mxu0 0.0
        %1160 = vmatpush1.msra.mxu0 0.0
        %1161 = vmatprep.subr.mxu0 0.0
        %1162 = vmatpush1.msra.mxu0 0.0
        %1163 = vmatprep.subr.mxu0 0.0
        %1164 = vmatpush1.msra.mxu0 0.0
        %1165 = vmatprep.subr.mxu0 0.0
        %1166 = vmatpush1.msra.mxu0 0.0
        %1167 = vmatprep.subr.mxu0 0.0
        %1168 = vmatpush1.msra.mxu0 0.0
        %1169 = vmatprep.subr.mxu0 0.0
        %1170 = vmatpush1.msra.mxu0 0.0
        %1171 = vmatprep.subr.mxu0 0.0
        %1172 = vmatpush1.msra.mxu0 0.0
        %1173 = vmatprep.subr.mxu0 0.0
        %1174 = vmatpush1.msra.mxu0 0.0
        %1175 = vmatprep.subr.mxu0 0.0
        %1176 = vmatpush1.msra.mxu0 0.0
        %1177 = vmatprep.subr.mxu0 0.0
        %1178 = vmatpush1.msra.mxu0 0.0
        %1179 = vmatprep.subr.mxu0 0.0
        %1180 = vmatpush1.msra.mxu0 0.0
        %1181 = vmatprep.subr.mxu0 0.0
        %1182 = vmatpush1.msra.mxu0 0.0
        %1183 = vmatprep.mubr.f32.mxu0 0.0
        %1184 = vmatmul.mubr.f32.gmra.mrb[0].mxu0 %v1117
        %v1185 = vpop.f32.mrb[0].mxu0
        %v1186 = vadd.f32 0.0, %v1185
        %v1187 = vpop.f32.mrb[0].mxu0
        %1188 = vdwg.mxu0
        %v1189 = vadd.f32 %v1115, %v1186
        %v1190 = vxor.u32 %v1189, 2147483648
        %v1191 = vmul.f32 %v1190, 1.442695
        %v1192 = vpow.pop %v1191
        %v1193 = vadd.f32 %v1192, 1.0
        %v1194 = vrcp.pop %v1193
        %v1195 = vmul.f32 1.0, %v1194
        %v1196 = vtanh.pop %v1189
        %v1197 = vmul.f32 %v1195, 0.0
        %1199 = vrot.lane.b32.xlu0 %v1196, 96
        %v1200 = vpop.permute.xlu0 %1199
        %v1202 = vmul.f32 %v1195, %v1200
        %1204 = vrot.lane.b32.xlu0 %v1202, 16
        %v1205 = vpop.permute.xlu0 %1204
        %v1207 = vadd.f32 %v1197, %v1205
        %v1208 = vtanh.pop %v1207
        %1210 = vrot.lane.b32.xlu0 %v1208, 32
        %v1211 = vpop.permute.xlu0 %1210
        %v1213 = vmul.f32 %v1195, %v1211
        %p1214 = scmp.gt.s32.totalorder %s623, 0
        %s1215 = scalar_select %p1214, 1, 0
        %v1216 = vstv %s1215
        %vm1217 = vcmp.eq.s32.totalorder %v1216, 1
        %v1218 = vsel %vm1217, %v1213, 0.0
        %1220 = vrot.lane.b32.xlu0 %v1218, 80
        %v1221 = vpop.permute.xlu0 %1220
        %vm1223 = vcmask 122880
        %1224 = vst.msk [vmem:[#allocation3] sm:$0x1] %vm1223, %v1221
        %v1225 = vsel %vm1217, %v1207, 0.0
        %v1226 = vld [vmem:[#allocation2 + $0x1] sm:$0x1]
        %v1227 = vsel %vm656, %v1221, 0
        %1229 = vmatprep.subr.mxu0 0.0
        %1230 = vmatpush1.msra.mxu0 %v1111
        %1231 = vmatprep.subr.mxu0 0.0
        %1232 = vmatpush1.msra.mxu0 %v1112
        %1233 = vmatprep.subr.mxu0 0.0
        %1234 = vmatpush1.msra.mxu0 0.0
        %1235 = vmatprep.subr.mxu0 0.0
        %1236 = vmatpush1.msra.mxu0 0.0
        %1237 = vmatprep.subr.mxu0 0.0
        %1238 = vmatpush1.msra.mxu0 0.0
        %1239 = vmatprep.subr.mxu0 0.0
        %1240 = vmatpush1.msra.mxu0 0.0
        %1241 = vmatprep.subr.mxu0 0.0
        %1242 = vmatpush1.msra.mxu0 0.0
        %1243 = vmatprep.subr.mxu0 0.0
        %1244 = vmatpush1.msra.mxu0 0.0
        %1245 = vmatprep.subr.mxu0 0.0
        %1246 = vmatpush1.msra.mxu0 0.0
        %1247 = vmatprep.subr.mxu0 0.0
        %1248 = vmatpush1.msra.mxu0 0.0
        %1249 = vmatprep.subr.mxu0 0.0
        %1250 = vmatpush1.msra.mxu0 0.0
        %1251 = vmatprep.subr.mxu0 0.0
        %1252 = vmatpush1.msra.mxu0 0.0
        %1253 = vmatprep.subr.mxu0 0.0
        %1254 = vmatpush1.msra.mxu0 0.0
        %1255 = vmatprep.subr.mxu0 0.0
        %1256 = vmatpush1.msra.mxu0 0.0
        %1257 = vmatprep.subr.mxu0 0.0
        %1258 = vmatpush1.msra.mxu0 0.0
        %1259 = vmatprep.subr.mxu0 0.0
        %1260 = vmatpush1.msra.mxu0 0.0
        %1261 = vmatprep.subr.mxu0 0.0
        %1262 = vmatpush1.msra.mxu0 0.0
        %1263 = vmatprep.subr.mxu0 0.0
        %1264 = vmatpush1.msra.mxu0 0.0
        %1265 = vmatprep.subr.mxu0 0.0
        %1266 = vmatpush1.msra.mxu0 0.0
        %1267 = vmatprep.subr.mxu0 0.0
        %1268 = vmatpush1.msra.mxu0 0.0
        %1269 = vmatprep.subr.mxu0 0.0
        %1270 = vmatpush1.msra.mxu0 0.0
        %1271 = vmatprep.subr.mxu0 0.0
        %1272 = vmatpush1.msra.mxu0 0.0
        %1273 = vmatprep.subr.mxu0 0.0
        %1274 = vmatpush1.msra.mxu0 0.0
        %1275 = vmatprep.subr.mxu0 0.0
        %1276 = vmatpush1.msra.mxu0 0.0
        %1277 = vmatprep.subr.mxu0 0.0
        %1278 = vmatpush1.msra.mxu0 0.0
        %1279 = vmatprep.subr.mxu0 0.0
        %1280 = vmatpush1.msra.mxu0 0.0
        %1281 = vmatprep.subr.mxu0 0.0
        %1282 = vmatpush1.msra.mxu0 0.0
        %1283 = vmatprep.subr.mxu0 0.0
        %1284 = vmatpush1.msra.mxu0 0.0
        %1285 = vmatprep.subr.mxu0 0.0
        %1286 = vmatpush1.msra.mxu0 0.0
        %1287 = vmatprep.subr.mxu0 0.0
        %1288 = vmatpush1.msra.mxu0 0.0
        %1289 = vmatprep.subr.mxu0 0.0
        %1290 = vmatpush1.msra.mxu0 0.0
        %1291 = vmatprep.subr.mxu0 0.0
        %1292 = vmatpush1.msra.mxu0 0.0
        %1293 = vmatprep.mubr.f32.mxu0 0.0
        %1294 = vmatmul.mubr.f32.gmra.mrb[0].mxu0 %v1227
        %v1295 = vpop.f32.mrb[0].mxu0
        %v1296 = vadd.f32 0.0, %v1295
        %v1297 = vpop.f32.mrb[0].mxu0
        %1298 = vdwg.mxu0
        %v1299 = vadd.f32 %v1226, %v1296
        %v1300 = vxor.u32 %v1299, 2147483648
        %v1301 = vmul.f32 %v1300, 1.442695
        %v1302 = vpow.pop %v1301
        %v1303 = vadd.f32 %v1302, 1.0
        %v1304 = vrcp.pop %v1303
        %v1305 = vmul.f32 1.0, %v1304
        %v1306 = vtanh.pop %v1299
        %v1307 = vmul.f32 %v1305, %v1225
        %1309 = vrot.lane.b32.xlu0 %v1306, 96
        %v1310 = vpop.permute.xlu0 %1309
        %v1312 = vmul.f32 %v1305, %v1310
        %1314 = vrot.lane.b32.xlu0 %v1312, 16
        %v1315 = vpop.permute.xlu0 %1314
        %v1317 = vadd.f32 %v1307, %v1315
        %v1318 = vtanh.pop %v1317
        %1320 = vrot.lane.b32.xlu0 %v1318, 32
        %v1321 = vpop.permute.xlu0 %1320
        %v1323 = vmul.f32 %v1305, %v1321
        %p1324 = scmp.gt.s32.totalorder %s623, 1
        %s1325 = scalar_select %p1324, 1, 0
        %v1326 = vstv %s1325
        %vm1327 = vcmp.eq.s32.totalorder %v1326, 1
        %v1328 = vsel %vm1327, %v1323, 0.0
        %1330 = vrot.lane.b32.xlu0 %v1328, 80
        %v1331 = vpop.permute.xlu0 %1330
        %1333 = vst.msk [vmem:[#allocation3 + $0x1] sm:$0x1] %vm1223, %v1331
        %v1334 = vsel %vm1327, %v1323, %v1218
        %v1335 = vsel %vm1327, %v1317, %v1225
        %v1336 = vld [vmem:[#allocation2 + $0x2] sm:$0x1]
        %1338 = vrot.lane.b32.xlu0 %v1334, 80
        %v1339 = vpop.permute.xlu0 %1338
        %v1340 = vsel %vm656, %v1339, 0
        %1342 = vmatprep.subr.mxu0 0.0
        %1343 = vmatpush1.msra.mxu0 %v1111
        %1344 = vmatprep.subr.mxu0 0.0
        %1345 = vmatpush1.msra.mxu0 %v1112
        %1346 = vmatprep.subr.mxu0 0.0
        %1347 = vmatpush1.msra.mxu0 0.0
        %1348 = vmatprep.subr.mxu0 0.0
        %1349 = vmatpush1.msra.mxu0 0.0
        %1350 = vmatprep.subr.mxu0 0.0
        %1351 = vmatpush1.msra.mxu0 0.0
        %1352 = vmatprep.subr.mxu0 0.0
        %1353 = vmatpush1.msra.mxu0 0.0
        %1354 = vmatprep.subr.mxu0 0.0
        %1355 = vmatpush1.msra.mxu0 0.0
        %1356 = vmatprep.subr.mxu0 0.0
        %1357 = vmatpush1.msra.mxu0 0.0
        %1358 = vmatprep.subr.mxu0 0.0
        %1359 = vmatpush1.msra.mxu0 0.0
        %1360 = vmatprep.subr.mxu0 0.0
        %1361 = vmatpush1.msra.mxu0 0.0
        %1362 = vmatprep.subr.mxu0 0.0
        %1363 = vmatpush1.msra.mxu0 0.0
        %1364 = vmatprep.subr.mxu0 0.0
        %1365 = vmatpush1.msra.mxu0 0.0
        %1366 = vmatprep.subr.mxu0 0.0
        %1367 = vmatpush1.msra.mxu0 0.0
        %1368 = vmatprep.subr.mxu0 0.0
        %1369 = vmatpush1.msra.mxu0 0.0
        %1370 = vmatprep.subr.mxu0 0.0
        %1371 = vmatpush1.msra.mxu0 0.0
        %1372 = vmatprep.subr.mxu0 0.0
        %1373 = vmatpush1.msra.mxu0 0.0
        %1374 = vmatprep.subr.mxu0 0.0
        %1375 = vmatpush1.msra.mxu0 0.0
        %1376 = vmatprep.subr.mxu0 0.0
        %1377 = vmatpush1.msra.mxu0 0.0
        %1378 = vmatprep.subr.mxu0 0.0
        %1379 = vmatpush1.msra.mxu0 0.0
        %1380 = vmatprep.subr.mxu0 0.0
        %1381 = vmatpush1.msra.mxu0 0.0
        %1382 = vmatprep.subr.mxu0 0.0
        %1383 = vmatpush1.msra.mxu0 0.0
        %1384 = vmatprep.subr.mxu0 0.0
        %1385 = vmatpush1.msra.mxu0 0.0
        %1386 = vmatprep.subr.mxu0 0.0
        %1387 = vmatpush1.msra.mxu0 0.0
        %1388 = vmatprep.subr.mxu0 0.0
        %1389 = vmatpush1.msra.mxu0 0.0
        %1390 = vmatprep.subr.mxu0 0.0
        %1391 = vmatpush1.msra.mxu0 0.0
        %1392 = vmatprep.subr.mxu0 0.0
        %1393 = vmatpush1.msra.mxu0 0.0
        %1394 = vmatprep.subr.mxu0 0.0
        %1395 = vmatpush1.msra.mxu0 0.0
        %1396 = vmatprep.subr.mxu0 0.0
        %1397 = vmatpush1.msra.mxu0 0.0
        %1398 = vmatprep.subr.mxu0 0.0
        %1399 = vmatpush1.msra.mxu0 0.0
        %1400 = vmatprep.subr.mxu0 0.0
        %1401 = vmatpush1.msra.mxu0 0.0
        %1402 = vmatprep.subr.mxu0 0.0
        %1403 = vmatpush1.msra.mxu0 0.0
        %1404 = vmatprep.subr.mxu0 0.0
        %1405 = vmatpush1.msra.mxu0 0.0
        %1406 = vmatprep.mubr.f32.mxu0 0.0
        %1407 = vmatmul.mubr.f32.gmra.mrb[0].mxu0 %v1340
        %v1408 = vpop.f32.mrb[0].mxu0
        %v1409 = vadd.f32 0.0, %v1408
        %v1410 = vpop.f32.mrb[0].mxu0
        %1411 = vdwg.mxu0
        %v1412 = vadd.f32 %v1336, %v1409
        %v1413 = vxor.u32 %v1412, 2147483648
        %v1414 = vmul.f32 %v1413, 1.442695
        %v1415 = vpow.pop %v1414
        %v1416 = vadd.f32 %v1415, 1.0
        %v1417 = vrcp.pop %v1416
        %v1418 = vmul.f32 1.0, %v1417
        %v1419 = vtanh.pop %v1412
        %v1420 = vmul.f32 %v1418, %v1335
        %1422 = vrot.lane.b32.xlu0 %v1419, 96
        %v1423 = vpop.permute.xlu0 %1422
        %v1425 = vmul.f32 %v1418, %v1423
        %1427 = vrot.lane.b32.xlu0 %v1425, 16
        %v1428 = vpop.permute.xlu0 %1427
        %v1430 = vadd.f32 %v1420, %v1428
        %v1431 = vtanh.pop %v1430
        %1433 = vrot.lane.b32.xlu0 %v1431, 32
        %v1434 = vpop.permute.xlu0 %1433
        %v1436 = vmul.f32 %v1418, %v1434
        %p1437 = scmp.gt.s32.totalorder %s623, 2
        %s1438 = scalar_select %p1437, 1, 0
        %v1439 = vstv %s1438
        %vm1440 = vcmp.eq.s32.totalorder %v1439, 1
        %v1441 = vsel %vm1440, %v1436, 0.0
        %1443 = vrot.lane.b32.xlu0 %v1441, 80
        %v1444 = vpop.permute.xlu0 %1443
        %1446 = vst.msk [vmem:[#allocation3 + $0x2] sm:$0x1] %vm1223, %v1444
        %v1447 = vsel %vm1440, %v1436, %v1334
        %v1448 = vsel %vm1440, %v1430, %v1335
        %v1449 = vld [vmem:[#allocation2 + $0x3] sm:$0x1]
        %1451 = vrot.lane.b32.xlu0 %v1447, 80
        %v1452 = vpop.permute.xlu0 %1451
        %v1453 = vsel %vm656, %v1452, 0
        %1455 = vmatprep.subr.mxu0 0.0
        %1456 = vmatpush1.msra.mxu0 %v1111
        %1457 = vmatprep.subr.mxu0 0.0
        %1458 = vmatpush1.msra.mxu0 %v1112
        %1459 = vmatprep.subr.mxu0 0.0
        %1460 = vmatpush1.msra.mxu0 0.0
        %1461 = vmatprep.subr.mxu0 0.0
        %1462 = vmatpush1.msra.mxu0 0.0
        %1463 = vmatprep.subr.mxu0 0.0
        %1464 = vmatpush1.msra.mxu0 0.0
        %1465 = vmatprep.subr.mxu0 0.0
        %1466 = vmatpush1.msra.mxu0 0.0
        %1467 = vmatprep.subr.mxu0 0.0
        %1468 = vmatpush1.msra.mxu0 0.0
        %1469 = vmatprep.subr.mxu0 0.0
        %1470 = vmatpush1.msra.mxu0 0.0
        %1471 = vmatprep.subr.mxu0 0.0
        %1472 = vmatpush1.msra.mxu0 0.0
        %1473 = vmatprep.subr.mxu0 0.0
        %1474 = vmatpush1.msra.mxu0 0.0
        %1475 = vmatprep.subr.mxu0 0.0
        %1476 = vmatpush1.msra.mxu0 0.0
        %1477 = vmatprep.subr.mxu0 0.0
        %1478 = vmatpush1.msra.mxu0 0.0
        %1479 = vmatprep.subr.mxu0 0.0
        %1480 = vmatpush1.msra.mxu0 0.0
        %1481 = vmatprep.subr.mxu0 0.0
        %1482 = vmatpush1.msra.mxu0 0.0
        %1483 = vmatprep.subr.mxu0 0.0
        %1484 = vmatpush1.msra.mxu0 0.0
        %1485 = vmatprep.subr.mxu0 0.0
        %1486 = vmatpush1.msra.mxu0 0.0
        %1487 = vmatprep.subr.mxu0 0.0
        %1488 = vmatpush1.msra.mxu0 0.0
        %1489 = vmatprep.subr.mxu0 0.0
        %1490 = vmatpush1.msra.mxu0 0.0
        %1491 = vmatprep.subr.mxu0 0.0
        %1492 = vmatpush1.msra.mxu0 0.0
        %1493 = vmatprep.subr.mxu0 0.0
        %1494 = vmatpush1.msra.mxu0 0.0
        %1495 = vmatprep.subr.mxu0 0.0
        %1496 = vmatpush1.msra.mxu0 0.0
        %1497 = vmatprep.subr.mxu0 0.0
        %1498 = vmatpush1.msra.mxu0 0.0
        %1499 = vmatprep.subr.mxu0 0.0
        %1500 = vmatpush1.msra.mxu0 0.0
        %1501 = vmatprep.subr.mxu0 0.0
        %1502 = vmatpush1.msra.mxu0 0.0
        %1503 = vmatprep.subr.mxu0 0.0
        %1504 = vmatpush1.msra.mxu0 0.0
        %1505 = vmatprep.subr.mxu0 0.0
        %1506 = vmatpush1.msra.mxu0 0.0
        %1507 = vmatprep.subr.mxu0 0.0
        %1508 = vmatpush1.msra.mxu0 0.0
        %1509 = vmatprep.subr.mxu0 0.0
        %1510 = vmatpush1.msra.mxu0 0.0
        %1511 = vmatprep.subr.mxu0 0.0
        %1512 = vmatpush1.msra.mxu0 0.0
        %1513 = vmatprep.subr.mxu0 0.0
        %1514 = vmatpush1.msra.mxu0 0.0
        %1515 = vmatprep.subr.mxu0 0.0
        %1516 = vmatpush1.msra.mxu0 0.0
        %1517 = vmatprep.subr.mxu0 0.0
        %1518 = vmatpush1.msra.mxu0 0.0
        %1519 = vmatprep.mubr.f32.mxu0 0.0
        %1520 = vmatmul.mubr.f32.gmra.mrb[0].mxu0 %v1453
        %v1521 = vpop.f32.mrb[0].mxu0
        %v1522 = vadd.f32 0.0, %v1521
        %v1523 = vpop.f32.mrb[0].mxu0
        %1524 = vdwg.mxu0
        %v1525 = vadd.f32 %v1449, %v1522
        %v1526 = vxor.u32 %v1525, 2147483648
        %v1527 = vmul.f32 %v1526, 1.442695
        %v1528 = vpow.pop %v1527
        %v1529 = vadd.f32 %v1528, 1.0
        %v1530 = vrcp.pop %v1529
        %v1531 = vmul.f32 1.0, %v1530
        %v1532 = vtanh.pop %v1525
        %v1533 = vmul.f32 %v1531, %v1448
        %1535 = vrot.lane.b32.xlu0 %v1532, 96
        %v1536 = vpop.permute.xlu0 %1535
        %v1538 = vmul.f32 %v1531, %v1536
        %1540 = vrot.lane.b32.xlu0 %v1538, 16
        %v1541 = vpop.permute.xlu0 %1540
        %v1543 = vadd.f32 %v1533, %v1541
        %v1544 = vtanh.pop %v1543
        %1546 = vrot.lane.b32.xlu0 %v1544, 32
        %v1547 = vpop.permute.xlu0 %1546
        %v1549 = vmul.f32 %v1531, %v1547
        %p1550 = scmp.gt.s32.totalorder %s623, 3
        %s1551 = scalar_select %p1550, 1, 0
        %v1552 = vstv %s1551
        %vm1553 = vcmp.eq.s32.totalorder %v1552, 1
        %v1554 = vsel %vm1553, %v1549, 0.0
        %1556 = vrot.lane.b32.xlu0 %v1554, 80
        %v1557 = vpop.permute.xlu0 %1556
        %1559 = vst.msk [vmem:[#allocation3 + $0x3] sm:$0x1] %vm1223, %v1557
        %v1560 = vsel %vm1553, %v1549, %v1447
        %v1561 = vsel %vm1553, %v1543, %v1448
        %v1562 = vld [vmem:[#allocation2 + $0x4] sm:$0x1]
        %1564 = vrot.lane.b32.xlu0 %v1560, 80
        %v1565 = vpop.permute.xlu0 %1564
        %v1566 = vsel %vm656, %v1565, 0
        %1568 = vmatprep.subr.mxu0 0.0
        %1569 = vmatpush1.msra.mxu0 %v1111
        %1570 = vmatprep.subr.mxu0 0.0
        %1571 = vmatpush1.msra.mxu0 %v1112
        %1572 = vmatprep.subr.mxu0 0.0
        %1573 = vmatpush1.msra.mxu0 0.0
        %1574 = vmatprep.subr.mxu0 0.0
        %1575 = vmatpush1.msra.mxu0 0.0
        %1576 = vmatprep.subr.mxu0 0.0
        %1577 = vmatpush1.msra.mxu0 0.0
        %1578 = vmatprep.subr.mxu0 0.0
        %1579 = vmatpush1.msra.mxu0 0.0
        %1580 = vmatprep.subr.mxu0 0.0
        %1581 = vmatpush1.msra.mxu0 0.0
        %1582 = vmatprep.subr.mxu0 0.0
        %1583 = vmatpush1.msra.mxu0 0.0
        %1584 = vmatprep.subr.mxu0 0.0
        %1585 = vmatpush1.msra.mxu0 0.0
        %1586 = vmatprep.subr.mxu0 0.0
        %1587 = vmatpush1.msra.mxu0 0.0
        %1588 = vmatprep.subr.mxu0 0.0
        %1589 = vmatpush1.msra.mxu0 0.0
        %1590 = vmatprep.subr.mxu0 0.0
        %1591 = vmatpush1.msra.mxu0 0.0
        %1592 = vmatprep.subr.mxu0 0.0
        %1593 = vmatpush1.msra.mxu0 0.0
        %1594 = vmatprep.subr.mxu0 0.0
        %1595 = vmatpush1.msra.mxu0 0.0
        %1596 = vmatprep.subr.mxu0 0.0
        %1597 = vmatpush1.msra.mxu0 0.0
        %1598 = vmatprep.subr.mxu0 0.0
        %1599 = vmatpush1.msra.mxu0 0.0
        %1600 = vmatprep.subr.mxu0 0.0
        %1601 = vmatpush1.msra.mxu0 0.0
        %1602 = vmatprep.subr.mxu0 0.0
        %1603 = vmatpush1.msra.mxu0 0.0
        %1604 = vmatprep.subr.mxu0 0.0
        %1605 = vmatpush1.msra.mxu0 0.0
        %1606 = vmatprep.subr.mxu0 0.0
        %1607 = vmatpush1.msra.mxu0 0.0
        %1608 = vmatprep.subr.mxu0 0.0
        %1609 = vmatpush1.msra.mxu0 0.0
        %1610 = vmatprep.subr.mxu0 0.0
        %1611 = vmatpush1.msra.mxu0 0.0
        %1612 = vmatprep.subr.mxu0 0.0
        %1613 = vmatpush1.msra.mxu0 0.0
        %1614 = vmatprep.subr.mxu0 0.0
        %1615 = vmatpush1.msra.mxu0 0.0
        %1616 = vmatprep.subr.mxu0 0.0
        %1617 = vmatpush1.msra.mxu0 0.0
        %1618 = vmatprep.subr.mxu0 0.0
        %1619 = vmatpush1.msra.mxu0 0.0
        %1620 = vmatprep.subr.mxu0 0.0
        %1621 = vmatpush1.msra.mxu0 0.0
        %1622 = vmatprep.subr.mxu0 0.0
        %1623 = vmatpush1.msra.mxu0 0.0
        %1624 = vmatprep.subr.mxu0 0.0
        %1625 = vmatpush1.msra.mxu0 0.0
        %1626 = vmatprep.subr.mxu0 0.0
        %1627 = vmatpush1.msra.mxu0 0.0
        %1628 = vmatprep.subr.mxu0 0.0
        %1629 = vmatpush1.msra.mxu0 0.0
        %1630 = vmatprep.subr.mxu0 0.0
        %1631 = vmatpush1.msra.mxu0 0.0
        %1632 = vmatprep.mubr.f32.mxu0 0.0
        %1633 = vmatmul.mubr.f32.gmra.mrb[0].mxu0 %v1566
        %v1634 = vpop.f32.mrb[0].mxu0
        %v1635 = vadd.f32 0.0, %v1634
        %v1636 = vpop.f32.mrb[0].mxu0
        %1637 = vdwg.mxu0
        %v1638 = vadd.f32 %v1562, %v1635
        %v1639 = vxor.u32 %v1638, 2147483648
        %v1640 = vmul.f32 %v1639, 1.442695
        %v1641 = vpow.pop %v1640
        %v1642 = vadd.f32 %v1641, 1.0
        %v1643 = vrcp.pop %v1642
        %v1644 = vmul.f32 1.0, %v1643
        %v1645 = vtanh.pop %v1638
        %v1646 = vmul.f32 %v1644, %v1561
        %1648 = vrot.lane.b32.xlu0 %v1645, 96
        %v1649 = vpop.permute.xlu0 %1648
        %v1651 = vmul.f32 %v1644, %v1649
        %1653 = vrot.lane.b32.xlu0 %v1651, 16
        %v1654 = vpop.permute.xlu0 %1653
        %v1656 = vadd.f32 %v1646, %v1654
        %v1657 = vtanh.pop %v1656
        %1659 = vrot.lane.b32.xlu0 %v1657, 32
        %v1660 = vpop.permute.xlu0 %1659
        %v1662 = vmul.f32 %v1644, %v1660
        %p1663 = scmp.gt.s32.totalorder %s623, 4
        %s1664 = scalar_select %p1663, 1, 0
        %v1665 = vstv %s1664
        %vm1666 = vcmp.eq.s32.totalorder %v1665, 1
        %v1667 = vsel %vm1666, %v1662, 0.0
        %1669 = vrot.lane.b32.xlu0 %v1667, 80
        %v1670 = vpop.permute.xlu0 %1669
        %1672 = vst.msk [vmem:[#allocation3 + $0x4] sm:$0x1] %vm1223, %v1670
        %v1673 = vsel %vm1666, %v1662, %v1560
        %v1674 = vsel %vm1666, %v1656, %v1561
        %v1675 = vld [vmem:[#allocation2 + $0x5] sm:$0x1]
        %1677 = vrot.lane.b32.xlu0 %v1673, 80
        %v1678 = vpop.permute.xlu0 %1677
        %v1679 = vsel %vm656, %v1678, 0
        %1681 = vmatprep.subr.mxu0 0.0
        %1682 = vmatpush1.msra.mxu0 %v1111
        %1683 = vmatprep.subr.mxu0 0.0
        %1684 = vmatpush1.msra.mxu0 %v1112
        %1685 = vmatprep.subr.mxu0 0.0
        %1686 = vmatpush1.msra.mxu0 0.0
        %1687 = vmatprep.subr.mxu0 0.0
        %1688 = vmatpush1.msra.mxu0 0.0
        %1689 = vmatprep.subr.mxu0 0.0
        %1690 = vmatpush1.msra.mxu0 0.0
        %1691 = vmatprep.subr.mxu0 0.0
        %1692 = vmatpush1.msra.mxu0 0.0
        %1693 = vmatprep.subr.mxu0 0.0
        %1694 = vmatpush1.msra.mxu0 0.0
        %1695 = vmatprep.subr.mxu0 0.0
        %1696 = vmatpush1.msra.mxu0 0.0
        %1697 = vmatprep.subr.mxu0 0.0
        %1698 = vmatpush1.msra.mxu0 0.0
        %1699 = vmatprep.subr.mxu0 0.0
        %1700 = vmatpush1.msra.mxu0 0.0
        %1701 = vmatprep.subr.mxu0 0.0
        %1702 = vmatpush1.msra.mxu0 0.0
        %1703 = vmatprep.subr.mxu0 0.0
        %1704 = vmatpush1.msra.mxu0 0.0
        %1705 = vmatprep.subr.mxu0 0.0
        %1706 = vmatpush1.msra.mxu0 0.0
        %1707 = vmatprep.subr.mxu0 0.0
        %1708 = vmatpush1.msra.mxu0 0.0
        %1709 = vmatprep.subr.mxu0 0.0
        %1710 = vmatpush1.msra.mxu0 0.0
        %1711 = vmatprep.subr.mxu0 0.0
        %1712 = vmatpush1.msra.mxu0 0.0
        %1713 = vmatprep.subr.mxu0 0.0
        %1714 = vmatpush1.msra.mxu0 0.0
        %1715 = vmatprep.subr.mxu0 0.0
        %1716 = vmatpush1.msra.mxu0 0.0
        %1717 = vmatprep.subr.mxu0 0.0
        %1718 = vmatpush1.msra.mxu0 0.0
        %1719 = vmatprep.subr.mxu0 0.0
        %1720 = vmatpush1.msra.mxu0 0.0
        %1721 = vmatprep.subr.mxu0 0.0
        %1722 = vmatpush1.msra.mxu0 0.0
        %1723 = vmatprep.subr.mxu0 0.0
        %1724 = vmatpush1.msra.mxu0 0.0
        %1725 = vmatprep.subr.mxu0 0.0
        %1726 = vmatpush1.msra.mxu0 0.0
        %1727 = vmatprep.subr.mxu0 0.0
        %1728 = vmatpush1.msra.mxu0 0.0
        %1729 = vmatprep.subr.mxu0 0.0
        %1730 = vmatpush1.msra.mxu0 0.0
        %1731 = vmatprep.subr.mxu0 0.0
        %1732 = vmatpush1.msra.mxu0 0.0
        %1733 = vmatprep.subr.mxu0 0.0
        %1734 = vmatpush1.msra.mxu0 0.0
        %1735 = vmatprep.subr.mxu0 0.0
        %1736 = vmatpush1.msra.mxu0 0.0
        %1737 = vmatprep.subr.mxu0 0.0
        %1738 = vmatpush1.msra.mxu0 0.0
        %1739 = vmatprep.subr.mxu0 0.0
        %1740 = vmatpush1.msra.mxu0 0.0
        %1741 = vmatprep.subr.mxu0 0.0
        %1742 = vmatpush1.msra.mxu0 0.0
        %1743 = vmatprep.subr.mxu0 0.0
        %1744 = vmatpush1.msra.mxu0 0.0
        %1745 = vmatprep.mubr.f32.mxu0 0.0
        %1746 = vmatmul.mubr.f32.gmra.mrb[0].mxu0 %v1679
        %v1747 = vpop.f32.mrb[0].mxu0
        %v1748 = vadd.f32 0.0, %v1747
        %v1749 = vpop.f32.mrb[0].mxu0
        %1750 = vdwg.mxu0
        %v1751 = vadd.f32 %v1675, %v1748
        %v1752 = vxor.u32 %v1751, 2147483648
        %v1753 = vmul.f32 %v1752, 1.442695
        %v1754 = vpow.pop %v1753
        %v1755 = vadd.f32 %v1754, 1.0
        %v1756 = vrcp.pop %v1755
        %v1757 = vmul.f32 1.0, %v1756
        %v1758 = vtanh.pop %v1751
        %v1759 = vmul.f32 %v1757, %v1674
        %1761 = vrot.lane.b32.xlu0 %v1758, 96
        %v1762 = vpop.permute.xlu0 %1761
        %v1764 = vmul.f32 %v1757, %v1762
        %1766 = vrot.lane.b32.xlu0 %v1764, 16
        %v1767 = vpop.permute.xlu0 %1766
        %v1769 = vadd.f32 %v1759, %v1767
        %v1770 = vtanh.pop %v1769
        %1772 = vrot.lane.b32.xlu0 %v1770, 32
        %v1773 = vpop.permute.xlu0 %1772
        %v1775 = vmul.f32 %v1757, %v1773
        %p1776 = scmp.gt.s32.totalorder %s623, 5
        %s1777 = scalar_select %p1776, 1, 0
        %v1778 = vstv %s1777
        %vm1779 = vcmp.eq.s32.totalorder %v1778, 1
        %v1780 = vsel %vm1779, %v1775, 0.0
        %1782 = vrot.lane.b32.xlu0 %v1780, 80
        %v1783 = vpop.permute.xlu0 %1782
        %1785 = vst.msk [vmem:[#allocation3 + $0x5] sm:$0x1] %vm1223, %v1783
        %v1786 = vsel %vm1779, %v1775, %v1673
        %v1787 = vsel %vm1779, %v1769, %v1674
        %v1788 = vld [vmem:[#allocation2 + $0x6] sm:$0x1]
        %1790 = vrot.lane.b32.xlu0 %v1786, 80
        %v1791 = vpop.permute.xlu0 %1790
        %v1792 = vsel %vm656, %v1791, 0
        %1794 = vmatprep.subr.mxu0 0.0
        %1795 = vmatpush1.msra.mxu0 %v1111
        %1796 = vmatprep.subr.mxu0 0.0
        %1797 = vmatpush1.msra.mxu0 %v1112
        %1798 = vmatprep.subr.mxu0 0.0
        %1799 = vmatpush1.msra.mxu0 0.0
        %1800 = vmatprep.subr.mxu0 0.0
        %1801 = vmatpush1.msra.mxu0 0.0
        %1802 = vmatprep.subr.mxu0 0.0
        %1803 = vmatpush1.msra.mxu0 0.0
        %1804 = vmatprep.subr.mxu0 0.0
        %1805 = vmatpush1.msra.mxu0 0.0
        %1806 = vmatprep.subr.mxu0 0.0
        %1807 = vmatpush1.msra.mxu0 0.0
        %1808 = vmatprep.subr.mxu0 0.0
        %1809 = vmatpush1.msra.mxu0 0.0
        %1810 = vmatprep.subr.mxu0 0.0
        %1811 = vmatpush1.msra.mxu0 0.0
        %1812 = vmatprep.subr.mxu0 0.0
        %1813 = vmatpush1.msra.mxu0 0.0
        %1814 = vmatprep.subr.mxu0 0.0
        %1815 = vmatpush1.msra.mxu0 0.0
        %1816 = vmatprep.subr.mxu0 0.0
        %1817 = vmatpush1.msra.mxu0 0.0
        %1818 = vmatprep.subr.mxu0 0.0
        %1819 = vmatpush1.msra.mxu0 0.0
        %1820 = vmatprep.subr.mxu0 0.0
        %1821 = vmatpush1.msra.mxu0 0.0
        %1822 = vmatprep.subr.mxu0 0.0
        %1823 = vmatpush1.msra.mxu0 0.0
        %1824 = vmatprep.subr.mxu0 0.0
        %1825 = vmatpush1.msra.mxu0 0.0
        %1826 = vmatprep.subr.mxu0 0.0
        %1827 = vmatpush1.msra.mxu0 0.0
        %1828 = vmatprep.subr.mxu0 0.0
        %1829 = vmatpush1.msra.mxu0 0.0
        %1830 = vmatprep.subr.mxu0 0.0
        %1831 = vmatpush1.msra.mxu0 0.0
        %1832 = vmatprep.subr.mxu0 0.0
        %1833 = vmatpush1.msra.mxu0 0.0
        %1834 = vmatprep.subr.mxu0 0.0
        %1835 = vmatpush1.msra.mxu0 0.0
        %1836 = vmatprep.subr.mxu0 0.0
        %1837 = vmatpush1.msra.mxu0 0.0
        %1838 = vmatprep.subr.mxu0 0.0
        %1839 = vmatpush1.msra.mxu0 0.0
        %1840 = vmatprep.subr.mxu0 0.0
        %1841 = vmatpush1.msra.mxu0 0.0
        %1842 = vmatprep.subr.mxu0 0.0
        %1843 = vmatpush1.msra.mxu0 0.0
        %1844 = vmatprep.subr.mxu0 0.0
        %1845 = vmatpush1.msra.mxu0 0.0
        %1846 = vmatprep.subr.mxu0 0.0
        %1847 = vmatpush1.msra.mxu0 0.0
        %1848 = vmatprep.subr.mxu0 0.0
        %1849 = vmatpush1.msra.mxu0 0.0
        %1850 = vmatprep.subr.mxu0 0.0
        %1851 = vmatpush1.msra.mxu0 0.0
        %1852 = vmatprep.subr.mxu0 0.0
        %1853 = vmatpush1.msra.mxu0 0.0
        %1854 = vmatprep.subr.mxu0 0.0
        %1855 = vmatpush1.msra.mxu0 0.0
        %1856 = vmatprep.subr.mxu0 0.0
        %1857 = vmatpush1.msra.mxu0 0.0
        %1858 = vmatprep.mubr.f32.mxu0 0.0
        %1859 = vmatmul.mubr.f32.gmra.mrb[0].mxu0 %v1792
        %v1860 = vpop.f32.mrb[0].mxu0
        %v1861 = vadd.f32 0.0, %v1860
        %v1862 = vpop.f32.mrb[0].mxu0
        %1863 = vdwg.mxu0
        %v1864 = vadd.f32 %v1788, %v1861
        %v1865 = vxor.u32 %v1864, 2147483648
        %v1866 = vmul.f32 %v1865, 1.442695
        %v1867 = vpow.pop %v1866
        %v1868 = vadd.f32 %v1867, 1.0
        %v1869 = vrcp.pop %v1868
        %v1870 = vmul.f32 1.0, %v1869
        %v1871 = vtanh.pop %v1864
        %v1872 = vmul.f32 %v1870, %v1787
        %1874 = vrot.lane.b32.xlu0 %v1871, 96
        %v1875 = vpop.permute.xlu0 %1874
        %v1877 = vmul.f32 %v1870, %v1875
        %1879 = vrot.lane.b32.xlu0 %v1877, 16
        %v1880 = vpop.permute.xlu0 %1879
        %v1882 = vadd.f32 %v1872, %v1880
        %v1883 = vtanh.pop %v1882
        %1885 = vrot.lane.b32.xlu0 %v1883, 32
        %v1886 = vpop.permute.xlu0 %1885
        %v1888 = vmul.f32 %v1870, %v1886
        %p1889 = scmp.gt.s32.totalorder %s623, 6
        %s1890 = scalar_select %p1889, 1, 0
        %v1891 = vstv %s1890
        %vm1892 = vcmp.eq.s32.totalorder %v1891, 1
        %v1893 = vsel %vm1892, %v1888, 0.0
        %1895 = vrot.lane.b32.xlu0 %v1893, 80
        %v1896 = vpop.permute.xlu0 %1895
        %1898 = vst.msk [vmem:[#allocation3 + $0x6] sm:$0x1] %vm1223, %v1896
        %v1899 = vsel %vm1892, %v1888, %v1786
        %v1900 = vsel %vm1892, %v1882, %v1787
        %v1901 = vld [vmem:[#allocation2 + $0x7] sm:$0x1]
        %1903 = vrot.lane.b32.xlu0 %v1899, 80
        %v1904 = vpop.permute.xlu0 %1903
        %v1905 = vsel %vm656, %v1904, 0
        %1907 = vmatprep.subr.mxu0 0.0
        %1908 = vmatpush1.msra.mxu0 %v1111
        %1909 = vmatprep.subr.mxu0 0.0
        %1910 = vmatpush1.msra.mxu0 %v1112
        %1911 = vmatprep.subr.mxu0 0.0
        %1912 = vmatpush1.msra.mxu0 0.0
        %1913 = vmatprep.subr.mxu0 0.0
        %1914 = vmatpush1.msra.mxu0 0.0
        %1915 = vmatprep.subr.mxu0 0.0
        %1916 = vmatpush1.msra.mxu0 0.0
        %1917 = vmatprep.subr.mxu0 0.0
        %1918 = vmatpush1.msra.mxu0 0.0
        %1919 = vmatprep.subr.mxu0 0.0
        %1920 = vmatpush1.msra.mxu0 0.0
        %1921 = vmatprep.subr.mxu0 0.0
        %1922 = vmatpush1.msra.mxu0 0.0
        %1923 = vmatprep.subr.mxu0 0.0
        %1924 = vmatpush1.msra.mxu0 0.0
        %1925 = vmatprep.subr.mxu0 0.0
        %1926 = vmatpush1.msra.mxu0 0.0
        %1927 = vmatprep.subr.mxu0 0.0
        %1928 = vmatpush1.msra.mxu0 0.0
        %1929 = vmatprep.subr.mxu0 0.0
        %1930 = vmatpush1.msra.mxu0 0.0
        %1931 = vmatprep.subr.mxu0 0.0
        %1932 = vmatpush1.msra.mxu0 0.0
        %1933 = vmatprep.subr.mxu0 0.0
        %1934 = vmatpush1.msra.mxu0 0.0
        %1935 = vmatprep.subr.mxu0 0.0
        %1936 = vmatpush1.msra.mxu0 0.0
        %1937 = vmatprep.subr.mxu0 0.0
        %1938 = vmatpush1.msra.mxu0 0.0
        %1939 = vmatprep.subr.mxu0 0.0
        %1940 = vmatpush1.msra.mxu0 0.0
        %1941 = vmatprep.subr.mxu0 0.0
        %1942 = vmatpush1.msra.mxu0 0.0
        %1943 = vmatprep.subr.mxu0 0.0
        %1944 = vmatpush1.msra.mxu0 0.0
        %1945 = vmatprep.subr.mxu0 0.0
        %1946 = vmatpush1.msra.mxu0 0.0
        %1947 = vmatprep.subr.mxu0 0.0
        %1948 = vmatpush1.msra.mxu0 0.0
        %1949 = vmatprep.subr.mxu0 0.0
        %1950 = vmatpush1.msra.mxu0 0.0
        %1951 = vmatprep.subr.mxu0 0.0
        %1952 = vmatpush1.msra.mxu0 0.0
        %1953 = vmatprep.subr.mxu0 0.0
        %1954 = vmatpush1.msra.mxu0 0.0
        %1955 = vmatprep.subr.mxu0 0.0
        %1956 = vmatpush1.msra.mxu0 0.0
        %1957 = vmatprep.subr.mxu0 0.0
        %1958 = vmatpush1.msra.mxu0 0.0
        %1959 = vmatprep.subr.mxu0 0.0
        %1960 = vmatpush1.msra.mxu0 0.0
        %1961 = vmatprep.subr.mxu0 0.0
        %1962 = vmatpush1.msra.mxu0 0.0
        %1963 = vmatprep.subr.mxu0 0.0
        %1964 = vmatpush1.msra.mxu0 0.0
        %1965 = vmatprep.subr.mxu0 0.0
        %1966 = vmatpush1.msra.mxu0 0.0
        %1967 = vmatprep.subr.mxu0 0.0
        %1968 = vmatpush1.msra.mxu0 0.0
        %1969 = vmatprep.subr.mxu0 0.0
        %1970 = vmatpush1.msra.mxu0 0.0
        %1971 = vmatprep.mubr.f32.mxu0 0.0
        %1972 = vmatmul.mubr.f32.gmra.mrb[0].mxu0 %v1905
        %v1973 = vpop.f32.mrb[0].mxu0
        %v1974 = vadd.f32 0.0, %v1973
        %v1975 = vpop.f32.mrb[0].mxu0
        %1976 = vdwg.mxu0
        %v1977 = vadd.f32 %v1901, %v1974
        %v1978 = vxor.u32 %v1977, 2147483648
        %v1979 = vmul.f32 %v1978, 1.442695
        %v1980 = vpow.pop %v1979
        %v1981 = vadd.f32 %v1980, 1.0
        %v1982 = vrcp.pop %v1981
        %v1983 = vmul.f32 1.0, %v1982
        %v1984 = vtanh.pop %v1977
        %v1985 = vmul.f32 %v1983, %v1900
        %1987 = vrot.lane.b32.xlu0 %v1984, 96
        %v1988 = vpop.permute.xlu0 %1987
        %v1990 = vmul.f32 %v1983, %v1988
        %1992 = vrot.lane.b32.xlu0 %v1990, 16
        %v1993 = vpop.permute.xlu0 %1992
        %v1995 = vadd.f32 %v1985, %v1993
        %v1996 = vtanh.pop %v1995
        %1998 = vrot.lane.b32.xlu0 %v1996, 32
        %v1999 = vpop.permute.xlu0 %1998
        %v2001 = vmul.f32 %v1983, %v1999
        %p2002 = scmp.gt.s32.totalorder %s623, 7
        %s2003 = scalar_select %p2002, 1, 0
        %v2004 = vstv %s2003
        %vm2005 = vcmp.eq.s32.totalorder %v2004, 1
        %v2006 = vsel %vm2005, %v2001, 0.0
        %2008 = vrot.lane.b32.xlu0 %v2006, 80
        %v2009 = vpop.permute.xlu0 %2008
        %2011 = vst.msk [vmem:[#allocation3 + $0x7] sm:$0x1] %vm1223, %v2009
        %v2012 = vld [vmem:[#allocation2 + $0x7] sm:$0x1]
        %2013 = vmatprep.subr.mxu0 0.0
        %2014 = vmatpush1.msra.mxu0 %v1113
        %2015 = vmatprep.subr.mxu0 0.0
        %2016 = vmatpush1.msra.mxu0 %v1114
        %2017 = vmatprep.subr.mxu0 0.0
        %2018 = vmatpush1.msra.mxu0 0.0
        %2019 = vmatprep.subr.mxu0 0.0
        %2020 = vmatpush1.msra.mxu0 0.0
        %2021 = vmatprep.subr.mxu0 0.0
        %2022 = vmatpush1.msra.mxu0 0.0
        %2023 = vmatprep.subr.mxu0 0.0
        %2024 = vmatpush1.msra.mxu0 0.0
        %2025 = vmatprep.subr.mxu0 0.0
        %2026 = vmatpush1.msra.mxu0 0.0
        %2027 = vmatprep.subr.mxu0 0.0
        %2028 = vmatpush1.msra.mxu0 0.0
        %2029 = vmatprep.subr.mxu0 0.0
        %2030 = vmatpush1.msra.mxu0 0.0
        %2031 = vmatprep.subr.mxu0 0.0
        %2032 = vmatpush1.msra.mxu0 0.0
        %2033 = vmatprep.subr.mxu0 0.0
        %2034 = vmatpush1.msra.mxu0 0.0
        %2035 = vmatprep.subr.mxu0 0.0
        %2036 = vmatpush1.msra.mxu0 0.0
        %2037 = vmatprep.subr.mxu0 0.0
        %2038 = vmatpush1.msra.mxu0 0.0
        %2039 = vmatprep.subr.mxu0 0.0
        %2040 = vmatpush1.msra.mxu0 0.0
        %2041 = vmatprep.subr.mxu0 0.0
        %2042 = vmatpush1.msra.mxu0 0.0
        %2043 = vmatprep.subr.mxu0 0.0
        %2044 = vmatpush1.msra.mxu0 0.0
        %2045 = vmatprep.subr.mxu0 0.0
        %2046 = vmatpush1.msra.mxu0 0.0
        %2047 = vmatprep.subr.mxu0 0.0
        %2048 = vmatpush1.msra.mxu0 0.0
        %2049 = vmatprep.subr.mxu0 0.0
        %2050 = vmatpush1.msra.mxu0 0.0
        %2051 = vmatprep.subr.mxu0 0.0
        %2052 = vmatpush1.msra.mxu0 0.0
        %2053 = vmatprep.subr.mxu0 0.0
        %2054 = vmatpush1.msra.mxu0 0.0
        %2055 = vmatprep.subr.mxu0 0.0
        %2056 = vmatpush1.msra.mxu0 0.0
        %2057 = vmatprep.subr.mxu0 0.0
        %2058 = vmatpush1.msra.mxu0 0.0
        %2059 = vmatprep.subr.mxu0 0.0
        %2060 = vmatpush1.msra.mxu0 0.0
        %2061 = vmatprep.subr.mxu0 0.0
        %2062 = vmatpush1.msra.mxu0 0.0
        %2063 = vmatprep.subr.mxu0 0.0
        %2064 = vmatpush1.msra.mxu0 0.0
        %2065 = vmatprep.subr.mxu0 0.0
        %2066 = vmatpush1.msra.mxu0 0.0
        %2067 = vmatprep.subr.mxu0 0.0
        %2068 = vmatpush1.msra.mxu0 0.0
        %2069 = vmatprep.subr.mxu0 0.0
        %2070 = vmatpush1.msra.mxu0 0.0
        %2071 = vmatprep.subr.mxu0 0.0
        %2072 = vmatpush1.msra.mxu0 0.0
        %2073 = vmatprep.subr.mxu0 0.0
        %2074 = vmatpush1.msra.mxu0 0.0
        %2075 = vmatprep.subr.mxu0 0.0
        %2076 = vmatpush1.msra.mxu0 0.0
        %2077 = vmatprep.mubr.f32.mxu0 0.0
        %2078 = vmatmul.mubr.f32.gmra.mrb[0].mxu0 %v1117
        %v2079 = vpop.f32.mrb[0].mxu0
        %v2080 = vadd.f32 0.0, %v2079
        %v2081 = vpop.f32.mrb[0].mxu0
        %2082 = vdwg.mxu0
        %2084 = vrot.lane.b32.xlu0 %v2080, 64
        %v2085 = vpop.permute.xlu0 %2084
        %v2087 = vadd.f32 %v2012, %v2085
        %v2088 = vxor.u32 %v2087, 2147483648
        %v2089 = vmul.f32 %v2088, 1.442695
        %v2090 = vpow.pop %v2089
        %v2091 = vadd.f32 %v2090, 1.0
        %v2092 = vrcp.pop %v2091
        %v2093 = vmul.f32 1.0, %v2092
        %v2094 = vtanh.pop %v2087
        %v2095 = vmul.f32 %v2093, 0.0
        %2097 = vrot.lane.b32.xlu0 %v2094, 96
        %v2098 = vpop.permute.xlu0 %2097
        %v2100 = vmul.f32 %v2093, %v2098
        %2102 = vrot.lane.b32.xlu0 %v2100, 16
        %v2103 = vpop.permute.xlu0 %2102
        %v2105 = vadd.f32 %v2095, %v2103
        %v2106 = vtanh.pop %v2105
        %2108 = vrot.lane.b32.xlu0 %v2106, 32
        %v2109 = vpop.permute.xlu0 %2108
        %v2111 = vmul.f32 %v2093, %v2109
        %v2112 = vsel %vm2005, %v2111, 0.0
        %2114 = vrot.lane.b32.xlu0 %v2112, 32
        %v2115 = vpop.permute.xlu0 %2114
        %vm2117 = vcmask 254080
        %2118 = vst.msk [vmem:[#allocation3 + $0x7] sm:$0x1] %vm2117, %v2115
        %v2119 = vsel %vm2005, %v2105, 0.0
        %v2120 = vld [vmem:[#allocation2 + $0x6] sm:$0x1]
        %2121 = vrot.lane.b32.xlu0 %v2112, 16
        %v2122 = vpop.permute.xlu0 %2121
        %v2123 = vsel %vm656, %v2122, 0
        %2125 = vmatprep.subr.mxu0 0.0
        %2126 = vmatpush1.msra.mxu0 %v1113
        %2127 = vmatprep.subr.mxu0 0.0
        %2128 = vmatpush1.msra.mxu0 %v1114
        %2129 = vmatprep.subr.mxu0 0.0
        %2130 = vmatpush1.msra.mxu0 0.0
        %2131 = vmatprep.subr.mxu0 0.0
        %2132 = vmatpush1.msra.mxu0 0.0
        %2133 = vmatprep.subr.mxu0 0.0
        %2134 = vmatpush1.msra.mxu0 0.0
        %2135 = vmatprep.subr.mxu0 0.0
        %2136 = vmatpush1.msra.mxu0 0.0
        %2137 = vmatprep.subr.mxu0 0.0
        %2138 = vmatpush1.msra.mxu0 0.0
        %2139 = vmatprep.subr.mxu0 0.0
        %2140 = vmatpush1.msra.mxu0 0.0
        %2141 = vmatprep.subr.mxu0 0.0
        %2142 = vmatpush1.msra.mxu0 0.0
        %2143 = vmatprep.subr.mxu0 0.0
        %2144 = vmatpush1.msra.mxu0 0.0
        %2145 = vmatprep.subr.mxu0 0.0
        %2146 = vmatpush1.msra.mxu0 0.0
        %2147 = vmatprep.subr.mxu0 0.0
        %2148 = vmatpush1.msra.mxu0 0.0
        %2149 = vmatprep.subr.mxu0 0.0
        %2150 = vmatpush1.msra.mxu0 0.0
        %2151 = vmatprep.subr.mxu0 0.0
        %2152 = vmatpush1.msra.mxu0 0.0
        %2153 = vmatprep.subr.mxu0 0.0
        %2154 = vmatpush1.msra.mxu0 0.0
        %2155 = vmatprep.subr.mxu0 0.0
        %2156 = vmatpush1.msra.mxu0 0.0
        %2157 = vmatprep.subr.mxu0 0.0
        %2158 = vmatpush1.msra.mxu0 0.0
        %2159 = vmatprep.subr.mxu0 0.0
        %2160 = vmatpush1.msra.mxu0 0.0
        %2161 = vmatprep.subr.mxu0 0.0
        %2162 = vmatpush1.msra.mxu0 0.0
        %2163 = vmatprep.subr.mxu0 0.0
        %2164 = vmatpush1.msra.mxu0 0.0
        %2165 = vmatprep.subr.mxu0 0.0
        %2166 = vmatpush1.msra.mxu0 0.0
        %2167 = vmatprep.subr.mxu0 0.0
        %2168 = vmatpush1.msra.mxu0 0.0
        %2169 = vmatprep.subr.mxu0 0.0
        %2170 = vmatpush1.msra.mxu0 0.0
        %2171 = vmatprep.subr.mxu0 0.0
        %2172 = vmatpush1.msra.mxu0 0.0
        %2173 = vmatprep.subr.mxu0 0.0
        %2174 = vmatpush1.msra.mxu0 0.0
        %2175 = vmatprep.subr.mxu0 0.0
        %2176 = vmatpush1.msra.mxu0 0.0
        %2177 = vmatprep.subr.mxu0 0.0
        %2178 = vmatpush1.msra.mxu0 0.0
        %2179 = vmatprep.subr.mxu0 0.0
        %2180 = vmatpush1.msra.mxu0 0.0
        %2181 = vmatprep.subr.mxu0 0.0
        %2182 = vmatpush1.msra.mxu0 0.0
        %2183 = vmatprep.subr.mxu0 0.0
        %2184 = vmatpush1.msra.mxu0 0.0
        %2185 = vmatprep.subr.mxu0 0.0
        %2186 = vmatpush1.msra.mxu0 0.0
        %2187 = vmatprep.subr.mxu0 0.0
        %2188 = vmatpush1.msra.mxu0 0.0
        %2189 = vmatprep.mubr.f32.mxu0 0.0
        %2190 = vmatmul.mubr.f32.gmra.mrb[0].mxu0 %v2123
        %v2191 = vpop.f32.mrb[0].mxu0
        %v2192 = vadd.f32 0.0, %v2191
        %v2193 = vpop.f32.mrb[0].mxu0
        %2194 = vdwg.mxu0
        %2196 = vrot.lane.b32.xlu0 %v2192, 64
        %v2197 = vpop.permute.xlu0 %2196
        %v2199 = vadd.f32 %v2120, %v2197
        %v2200 = vxor.u32 %v2199, 2147483648
        %v2201 = vmul.f32 %v2200, 1.442695
        %v2202 = vpow.pop %v2201
        %v2203 = vadd.f32 %v2202, 1.0
        %v2204 = vrcp.pop %v2203
        %v2205 = vmul.f32 1.0, %v2204
        %v2206 = vtanh.pop %v2199
        %v2207 = vmul.f32 %v2205, %v2119
        %2209 = vrot.lane.b32.xlu0 %v2206, 96
        %v2210 = vpop.permute.xlu0 %2209
        %v2212 = vmul.f32 %v2205, %v2210
        %2214 = vrot.lane.b32.xlu0 %v2212, 16
        %v2215 = vpop.permute.xlu0 %2214
        %v2217 = vadd.f32 %v2207, %v2215
        %v2218 = vtanh.pop %v2217
        %2220 = vrot.lane.b32.xlu0 %v2218, 32
        %v2221 = vpop.permute.xlu0 %2220
        %v2223 = vmul.f32 %v2205, %v2221
        %v2224 = vsel %vm1892, %v2223, 0.0
        %2226 = vrot.lane.b32.xlu0 %v2224, 32
        %v2227 = vpop.permute.xlu0 %2226
        %2229 = vst.msk [vmem:[#allocation3 + $0x6] sm:$0x1] %vm2117, %v2227
        %v2230 = vsel %vm1892, %v2223, %v2112
        %v2231 = vsel %vm1892, %v2217, %v2119
        %v2232 = vld [vmem:[#allocation2 + $0x5] sm:$0x1]
        %2234 = vrot.lane.b32.xlu0 %v2230, 16
        %v2235 = vpop.permute.xlu0 %2234
        %v2236 = vsel %vm656, %v2235, 0
        %2238 = vmatprep.subr.mxu0 0.0
        %2239 = vmatpush1.msra.mxu0 %v1113
        %2240 = vmatprep.subr.mxu0 0.0
        %2241 = vmatpush1.msra.mxu0 %v1114
        %2242 = vmatprep.subr.mxu0 0.0
        %2243 = vmatpush1.msra.mxu0 0.0
        %2244 = vmatprep.subr.mxu0 0.0
        %2245 = vmatpush1.msra.mxu0 0.0
        %2246 = vmatprep.subr.mxu0 0.0
        %2247 = vmatpush1.msra.mxu0 0.0
        %2248 = vmatprep.subr.mxu0 0.0
        %2249 = vmatpush1.msra.mxu0 0.0
        %2250 = vmatprep.subr.mxu0 0.0
        %2251 = vmatpush1.msra.mxu0 0.0
        %2252 = vmatprep.subr.mxu0 0.0
        %2253 = vmatpush1.msra.mxu0 0.0
        %2254 = vmatprep.subr.mxu0 0.0
        %2255 = vmatpush1.msra.mxu0 0.0
        %2256 = vmatprep.subr.mxu0 0.0
        %2257 = vmatpush1.msra.mxu0 0.0
        %2258 = vmatprep.subr.mxu0 0.0
        %2259 = vmatpush1.msra.mxu0 0.0
        %2260 = vmatprep.subr.mxu0 0.0
        %2261 = vmatpush1.msra.mxu0 0.0
        %2262 = vmatprep.subr.mxu0 0.0
        %2263 = vmatpush1.msra.mxu0 0.0
        %2264 = vmatprep.subr.mxu0 0.0
        %2265 = vmatpush1.msra.mxu0 0.0
        %2266 = vmatprep.subr.mxu0 0.0
        %2267 = vmatpush1.msra.mxu0 0.0
        %2268 = vmatprep.subr.mxu0 0.0
        %2269 = vmatpush1.msra.mxu0 0.0
        %2270 = vmatprep.subr.mxu0 0.0
        %2271 = vmatpush1.msra.mxu0 0.0
        %2272 = vmatprep.subr.mxu0 0.0
        %2273 = vmatpush1.msra.mxu0 0.0
        %2274 = vmatprep.subr.mxu0 0.0
        %2275 = vmatpush1.msra.mxu0 0.0
        %2276 = vmatprep.subr.mxu0 0.0
        %2277 = vmatpush1.msra.mxu0 0.0
        %2278 = vmatprep.subr.mxu0 0.0
        %2279 = vmatpush1.msra.mxu0 0.0
        %2280 = vmatprep.subr.mxu0 0.0
        %2281 = vmatpush1.msra.mxu0 0.0
        %2282 = vmatprep.subr.mxu0 0.0
        %2283 = vmatpush1.msra.mxu0 0.0
        %2284 = vmatprep.subr.mxu0 0.0
        %2285 = vmatpush1.msra.mxu0 0.0
        %2286 = vmatprep.subr.mxu0 0.0
        %2287 = vmatpush1.msra.mxu0 0.0
        %2288 = vmatprep.subr.mxu0 0.0
        %2289 = vmatpush1.msra.mxu0 0.0
        %2290 = vmatprep.subr.mxu0 0.0
        %2291 = vmatpush1.msra.mxu0 0.0
        %2292 = vmatprep.subr.mxu0 0.0
        %2293 = vmatpush1.msra.mxu0 0.0
        %2294 = vmatprep.subr.mxu0 0.0
        %2295 = vmatpush1.msra.mxu0 0.0
        %2296 = vmatprep.subr.mxu0 0.0
        %2297 = vmatpush1.msra.mxu0 0.0
        %2298 = vmatprep.subr.mxu0 0.0
        %2299 = vmatpush1.msra.mxu0 0.0
        %2300 = vmatprep.subr.mxu0 0.0
        %2301 = vmatpush1.msra.mxu0 0.0
        %2302 = vmatprep.mubr.f32.mxu0 0.0
        %2303 = vmatmul.mubr.f32.gmra.mrb[0].mxu0 %v2236
        %v2304 = vpop.f32.mrb[0].mxu0
        %v2305 = vadd.f32 0.0, %v2304
        %v2306 = vpop.f32.mrb[0].mxu0
        %2307 = vdwg.mxu0
        %2309 = vrot.lane.b32.xlu0 %v2305, 64
        %v2310 = vpop.permute.xlu0 %2309
        %v2312 = vadd.f32 %v2232, %v2310
        %v2313 = vxor.u32 %v2312, 2147483648
        %v2314 = vmul.f32 %v2313, 1.442695
        %v2315 = vpow.pop %v2314
        %v2316 = vadd.f32 %v2315, 1.0
        %v2317 = vrcp.pop %v2316
        %v2318 = vmul.f32 1.0, %v2317
        %v2319 = vtanh.pop %v2312
        %v2320 = vmul.f32 %v2318, %v2231
        %2322 = vrot.lane.b32.xlu0 %v2319, 96
        %v2323 = vpop.permute.xlu0 %2322
        %v2325 = vmul.f32 %v2318, %v2323
        %2327 = vrot.lane.b32.xlu0 %v2325, 16
        %v2328 = vpop.permute.xlu0 %2327
        %v2330 = vadd.f32 %v2320, %v2328
        %v2331 = vtanh.pop %v2330
        %2333 = vrot.lane.b32.xlu0 %v2331, 32
        %v2334 = vpop.permute.xlu0 %2333
        %v2336 = vmul.f32 %v2318, %v2334
        %v2337 = vsel %vm1779, %v2336, 0.0
        %2339 = vrot.lane.b32.xlu0 %v2337, 32
        %v2340 = vpop.permute.xlu0 %2339
        %2342 = vst.msk [vmem:[#allocation3 + $0x5] sm:$0x1] %vm2117, %v2340
        %v2343 = vsel %vm1779, %v2336, %v2230
        %v2344 = vsel %vm1779, %v2330, %v2231
        %v2345 = vld [vmem:[#allocation2 + $0x4] sm:$0x1]
        %2347 = vrot.lane.b32.xlu0 %v2343, 16
        %v2348 = vpop.permute.xlu0 %2347
        %v2349 = vsel %vm656, %v2348, 0
        %2351 = vmatprep.subr.mxu0 0.0
        %2352 = vmatpush1.msra.mxu0 %v1113
        %2353 = vmatprep.subr.mxu0 0.0
        %2354 = vmatpush1.msra.mxu0 %v1114
        %2355 = vmatprep.subr.mxu0 0.0
        %2356 = vmatpush1.msra.mxu0 0.0
        %2357 = vmatprep.subr.mxu0 0.0
        %2358 = vmatpush1.msra.mxu0 0.0
        %2359 = vmatprep.subr.mxu0 0.0
        %2360 = vmatpush1.msra.mxu0 0.0
        %2361 = vmatprep.subr.mxu0 0.0
        %2362 = vmatpush1.msra.mxu0 0.0
        %2363 = vmatprep.subr.mxu0 0.0
        %2364 = vmatpush1.msra.mxu0 0.0
        %2365 = vmatprep.subr.mxu0 0.0
        %2366 = vmatpush1.msra.mxu0 0.0
        %2367 = vmatprep.subr.mxu0 0.0
        %2368 = vmatpush1.msra.mxu0 0.0
        %2369 = vmatprep.subr.mxu0 0.0
        %2370 = vmatpush1.msra.mxu0 0.0
        %2371 = vmatprep.subr.mxu0 0.0
        %2372 = vmatpush1.msra.mxu0 0.0
        %2373 = vmatprep.subr.mxu0 0.0
        %2374 = vmatpush1.msra.mxu0 0.0
        %2375 = vmatprep.subr.mxu0 0.0
        %2376 = vmatpush1.msra.mxu0 0.0
        %2377 = vmatprep.subr.mxu0 0.0
        %2378 = vmatpush1.msra.mxu0 0.0
        %2379 = vmatprep.subr.mxu0 0.0
        %2380 = vmatpush1.msra.mxu0 0.0
        %2381 = vmatprep.subr.mxu0 0.0
        %2382 = vmatpush1.msra.mxu0 0.0
        %2383 = vmatprep.subr.mxu0 0.0
        %2384 = vmatpush1.msra.mxu0 0.0
        %2385 = vmatprep.subr.mxu0 0.0
        %2386 = vmatpush1.msra.mxu0 0.0
        %2387 = vmatprep.subr.mxu0 0.0
        %2388 = vmatpush1.msra.mxu0 0.0
        %2389 = vmatprep.subr.mxu0 0.0
        %2390 = vmatpush1.msra.mxu0 0.0
        %2391 = vmatprep.subr.mxu0 0.0
        %2392 = vmatpush1.msra.mxu0 0.0
        %2393 = vmatprep.subr.mxu0 0.0
        %2394 = vmatpush1.msra.mxu0 0.0
        %2395 = vmatprep.subr.mxu0 0.0
        %2396 = vmatpush1.msra.mxu0 0.0
        %2397 = vmatprep.subr.mxu0 0.0
        %2398 = vmatpush1.msra.mxu0 0.0
        %2399 = vmatprep.subr.mxu0 0.0
        %2400 = vmatpush1.msra.mxu0 0.0
        %2401 = vmatprep.subr.mxu0 0.0
        %2402 = vmatpush1.msra.mxu0 0.0
        %2403 = vmatprep.subr.mxu0 0.0
        %2404 = vmatpush1.msra.mxu0 0.0
        %2405 = vmatprep.subr.mxu0 0.0
        %2406 = vmatpush1.msra.mxu0 0.0
        %2407 = vmatprep.subr.mxu0 0.0
        %2408 = vmatpush1.msra.mxu0 0.0
        %2409 = vmatprep.subr.mxu0 0.0
        %2410 = vmatpush1.msra.mxu0 0.0
        %2411 = vmatprep.subr.mxu0 0.0
        %2412 = vmatpush1.msra.mxu0 0.0
        %2413 = vmatprep.subr.mxu0 0.0
        %2414 = vmatpush1.msra.mxu0 0.0
        %2415 = vmatprep.mubr.f32.mxu0 0.0
        %2416 = vmatmul.mubr.f32.gmra.mrb[0].mxu0 %v2349
        %v2417 = vpop.f32.mrb[0].mxu0
        %v2418 = vadd.f32 0.0, %v2417
        %v2419 = vpop.f32.mrb[0].mxu0
        %2420 = vdwg.mxu0
        %2422 = vrot.lane.b32.xlu0 %v2418, 64
        %v2423 = vpop.permute.xlu0 %2422
        %v2425 = vadd.f32 %v2345, %v2423
        %v2426 = vxor.u32 %v2425, 2147483648
        %v2427 = vmul.f32 %v2426, 1.442695
        %v2428 = vpow.pop %v2427
        %v2429 = vadd.f32 %v2428, 1.0
        %v2430 = vrcp.pop %v2429
        %v2431 = vmul.f32 1.0, %v2430
        %v2432 = vtanh.pop %v2425
        %v2433 = vmul.f32 %v2431, %v2344
        %2435 = vrot.lane.b32.xlu0 %v2432, 96
        %v2436 = vpop.permute.xlu0 %2435
        %v2438 = vmul.f32 %v2431, %v2436
        %2440 = vrot.lane.b32.xlu0 %v2438, 16
        %v2441 = vpop.permute.xlu0 %2440
        %v2443 = vadd.f32 %v2433, %v2441
        %v2444 = vtanh.pop %v2443
        %2446 = vrot.lane.b32.xlu0 %v2444, 32
        %v2447 = vpop.permute.xlu0 %2446
        %v2449 = vmul.f32 %v2431, %v2447
        %v2450 = vsel %vm1666, %v2449, 0.0
        %2452 = vrot.lane.b32.xlu0 %v2450, 32
        %v2453 = vpop.permute.xlu0 %2452
        %2455 = vst.msk [vmem:[#allocation3 + $0x4] sm:$0x1] %vm2117, %v2453
        %v2456 = vsel %vm1666, %v2449, %v2343
        %v2457 = vsel %vm1666, %v2443, %v2344
        %v2458 = vld [vmem:[#allocation2 + $0x3] sm:$0x1]
        %2460 = vrot.lane.b32.xlu0 %v2456, 16
        %v2461 = vpop.permute.xlu0 %2460
        %v2462 = vsel %vm656, %v2461, 0
        %2464 = vmatprep.subr.mxu0 0.0
        %2465 = vmatpush1.msra.mxu0 %v1113
        %2466 = vmatprep.subr.mxu0 0.0
        %2467 = vmatpush1.msra.mxu0 %v1114
        %2468 = vmatprep.subr.mxu0 0.0
        %2469 = vmatpush1.msra.mxu0 0.0
        %2470 = vmatprep.subr.mxu0 0.0
        %2471 = vmatpush1.msra.mxu0 0.0
        %2472 = vmatprep.subr.mxu0 0.0
        %2473 = vmatpush1.msra.mxu0 0.0
        %2474 = vmatprep.subr.mxu0 0.0
        %2475 = vmatpush1.msra.mxu0 0.0
        %2476 = vmatprep.subr.mxu0 0.0
        %2477 = vmatpush1.msra.mxu0 0.0
        %2478 = vmatprep.subr.mxu0 0.0
        %2479 = vmatpush1.msra.mxu0 0.0
        %2480 = vmatprep.subr.mxu0 0.0
        %2481 = vmatpush1.msra.mxu0 0.0
        %2482 = vmatprep.subr.mxu0 0.0
        %2483 = vmatpush1.msra.mxu0 0.0
        %2484 = vmatprep.subr.mxu0 0.0
        %2485 = vmatpush1.msra.mxu0 0.0
        %2486 = vmatprep.subr.mxu0 0.0
        %2487 = vmatpush1.msra.mxu0 0.0
        %2488 = vmatprep.subr.mxu0 0.0
        %2489 = vmatpush1.msra.mxu0 0.0
        %2490 = vmatprep.subr.mxu0 0.0
        %2491 = vmatpush1.msra.mxu0 0.0
        %2492 = vmatprep.subr.mxu0 0.0
        %2493 = vmatpush1.msra.mxu0 0.0
        %2494 = vmatprep.subr.mxu0 0.0
        %2495 = vmatpush1.msra.mxu0 0.0
        %2496 = vmatprep.subr.mxu0 0.0
        %2497 = vmatpush1.msra.mxu0 0.0
        %2498 = vmatprep.subr.mxu0 0.0
        %2499 = vmatpush1.msra.mxu0 0.0
        %2500 = vmatprep.subr.mxu0 0.0
        %2501 = vmatpush1.msra.mxu0 0.0
        %2502 = vmatprep.subr.mxu0 0.0
        %2503 = vmatpush1.msra.mxu0 0.0
        %2504 = vmatprep.subr.mxu0 0.0
        %2505 = vmatpush1.msra.mxu0 0.0
        %2506 = vmatprep.subr.mxu0 0.0
        %2507 = vmatpush1.msra.mxu0 0.0
        %2508 = vmatprep.subr.mxu0 0.0
        %2509 = vmatpush1.msra.mxu0 0.0
        %2510 = vmatprep.subr.mxu0 0.0
        %2511 = vmatpush1.msra.mxu0 0.0
        %2512 = vmatprep.subr.mxu0 0.0
        %2513 = vmatpush1.msra.mxu0 0.0
        %2514 = vmatprep.subr.mxu0 0.0
        %2515 = vmatpush1.msra.mxu0 0.0
        %2516 = vmatprep.subr.mxu0 0.0
        %2517 = vmatpush1.msra.mxu0 0.0
        %2518 = vmatprep.subr.mxu0 0.0
        %2519 = vmatpush1.msra.mxu0 0.0
        %2520 = vmatprep.subr.mxu0 0.0
        %2521 = vmatpush1.msra.mxu0 0.0
        %2522 = vmatprep.subr.mxu0 0.0
        %2523 = vmatpush1.msra.mxu0 0.0
        %2524 = vmatprep.subr.mxu0 0.0
        %2525 = vmatpush1.msra.mxu0 0.0
        %2526 = vmatprep.subr.mxu0 0.0
        %2527 = vmatpush1.msra.mxu0 0.0
        %2528 = vmatprep.mubr.f32.mxu0 0.0
        %2529 = vmatmul.mubr.f32.gmra.mrb[0].mxu0 %v2462
        %v2530 = vpop.f32.mrb[0].mxu0
        %v2531 = vadd.f32 0.0, %v2530
        %v2532 = vpop.f32.mrb[0].mxu0
        %2533 = vdwg.mxu0
        %2535 = vrot.lane.b32.xlu0 %v2531, 64
        %v2536 = vpop.permute.xlu0 %2535
        %v2538 = vadd.f32 %v2458, %v2536
        %v2539 = vxor.u32 %v2538, 2147483648
        %v2540 = vmul.f32 %v2539, 1.442695
        %v2541 = vpow.pop %v2540
        %v2542 = vadd.f32 %v2541, 1.0
        %v2543 = vrcp.pop %v2542
        %v2544 = vmul.f32 1.0, %v2543
        %v2545 = vtanh.pop %v2538
        %v2546 = vmul.f32 %v2544, %v2457
        %2548 = vrot.lane.b32.xlu0 %v2545, 96
        %v2549 = vpop.permute.xlu0 %2548
        %v2551 = vmul.f32 %v2544, %v2549
        %2553 = vrot.lane.b32.xlu0 %v2551, 16
        %v2554 = vpop.permute.xlu0 %2553
        %v2556 = vadd.f32 %v2546, %v2554
        %v2557 = vtanh.pop %v2556
        %2559 = vrot.lane.b32.xlu0 %v2557, 32
        %v2560 = vpop.permute.xlu0 %2559
        %v2562 = vmul.f32 %v2544, %v2560
        %v2563 = vsel %vm1553, %v2562, 0.0
        %2565 = vrot.lane.b32.xlu0 %v2563, 32
        %v2566 = vpop.permute.xlu0 %2565
        %2568 = vst.msk [vmem:[#allocation3 + $0x3] sm:$0x1] %vm2117, %v2566
        %v2569 = vsel %vm1553, %v2562, %v2456
        %v2570 = vsel %vm1553, %v2556, %v2457
        %v2571 = vld [vmem:[#allocation2 + $0x2] sm:$0x1]
        %2573 = vrot.lane.b32.xlu0 %v2569, 16
        %v2574 = vpop.permute.xlu0 %2573
        %v2575 = vsel %vm656, %v2574, 0
        %2577 = vmatprep.subr.mxu0 0.0
        %2578 = vmatpush1.msra.mxu0 %v1113
        %2579 = vmatprep.subr.mxu0 0.0
        %2580 = vmatpush1.msra.mxu0 %v1114
        %2581 = vmatprep.subr.mxu0 0.0
        %2582 = vmatpush1.msra.mxu0 0.0
        %2583 = vmatprep.subr.mxu0 0.0
        %2584 = vmatpush1.msra.mxu0 0.0
        %2585 = vmatprep.subr.mxu0 0.0
        %2586 = vmatpush1.msra.mxu0 0.0
        %2587 = vmatprep.subr.mxu0 0.0
        %2588 = vmatpush1.msra.mxu0 0.0
        %2589 = vmatprep.subr.mxu0 0.0
        %2590 = vmatpush1.msra.mxu0 0.0
        %2591 = vmatprep.subr.mxu0 0.0
        %2592 = vmatpush1.msra.mxu0 0.0
        %2593 = vmatprep.subr.mxu0 0.0
        %2594 = vmatpush1.msra.mxu0 0.0
        %2595 = vmatprep.subr.mxu0 0.0
        %2596 = vmatpush1.msra.mxu0 0.0
        %2597 = vmatprep.subr.mxu0 0.0
        %2598 = vmatpush1.msra.mxu0 0.0
        %2599 = vmatprep.subr.mxu0 0.0
        %2600 = vmatpush1.msra.mxu0 0.0
        %2601 = vmatprep.subr.mxu0 0.0
        %2602 = vmatpush1.msra.mxu0 0.0
        %2603 = vmatprep.subr.mxu0 0.0
        %2604 = vmatpush1.msra.mxu0 0.0
        %2605 = vmatprep.subr.mxu0 0.0
        %2606 = vmatpush1.msra.mxu0 0.0
        %2607 = vmatprep.subr.mxu0 0.0
        %2608 = vmatpush1.msra.mxu0 0.0
        %2609 = vmatprep.subr.mxu0 0.0
        %2610 = vmatpush1.msra.mxu0 0.0
        %2611 = vmatprep.subr.mxu0 0.0
        %2612 = vmatpush1.msra.mxu0 0.0
        %2613 = vmatprep.subr.mxu0 0.0
        %2614 = vmatpush1.msra.mxu0 0.0
        %2615 = vmatprep.subr.mxu0 0.0
        %2616 = vmatpush1.msra.mxu0 0.0
        %2617 = vmatprep.subr.mxu0 0.0
        %2618 = vmatpush1.msra.mxu0 0.0
        %2619 = vmatprep.subr.mxu0 0.0
        %2620 = vmatpush1.msra.mxu0 0.0
        %2621 = vmatprep.subr.mxu0 0.0
        %2622 = vmatpush1.msra.mxu0 0.0
        %2623 = vmatprep.subr.mxu0 0.0
        %2624 = vmatpush1.msra.mxu0 0.0
        %2625 = vmatprep.subr.mxu0 0.0
        %2626 = vmatpush1.msra.mxu0 0.0
        %2627 = vmatprep.subr.mxu0 0.0
        %2628 = vmatpush1.msra.mxu0 0.0
        %2629 = vmatprep.subr.mxu0 0.0
        %2630 = vmatpush1.msra.mxu0 0.0
        %2631 = vmatprep.subr.mxu0 0.0
        %2632 = vmatpush1.msra.mxu0 0.0
        %2633 = vmatprep.subr.mxu0 0.0
        %2634 = vmatpush1.msra.mxu0 0.0
        %2635 = vmatprep.subr.mxu0 0.0
        %2636 = vmatpush1.msra.mxu0 0.0
        %2637 = vmatprep.subr.mxu0 0.0
        %2638 = vmatpush1.msra.mxu0 0.0
        %2639 = vmatprep.subr.mxu0 0.0
        %2640 = vmatpush1.msra.mxu0 0.0
        %2641 = vmatprep.mubr.f32.mxu0 0.0
        %2642 = vmatmul.mubr.f32.gmra.mrb[0].mxu0 %v2575
        %v2643 = vpop.f32.mrb[0].mxu0
        %v2644 = vadd.f32 0.0, %v2643
        %v2645 = vpop.f32.mrb[0].mxu0
        %2646 = vdwg.mxu0
        %2648 = vrot.lane.b32.xlu0 %v2644, 64
        %v2649 = vpop.permute.xlu0 %2648
        %v2651 = vadd.f32 %v2571, %v2649
        %v2652 = vxor.u32 %v2651, 2147483648
        %v2653 = vmul.f32 %v2652, 1.442695
        %v2654 = vpow.pop %v2653
        %v2655 = vadd.f32 %v2654, 1.0
        %v2656 = vrcp.pop %v2655
        %v2657 = vmul.f32 1.0, %v2656
        %v2658 = vtanh.pop %v2651
        %v2659 = vmul.f32 %v2657, %v2570
        %2661 = vrot.lane.b32.xlu0 %v2658, 96
        %v2662 = vpop.permute.xlu0 %2661
        %v2664 = vmul.f32 %v2657, %v2662
        %2666 = vrot.lane.b32.xlu0 %v2664, 16
        %v2667 = vpop.permute.xlu0 %2666
        %v2669 = vadd.f32 %v2659, %v2667
        %v2670 = vtanh.pop %v2669
        %2672 = vrot.lane.b32.xlu0 %v2670, 32
        %v2673 = vpop.permute.xlu0 %2672
        %v2675 = vmul.f32 %v2657, %v2673
        %v2676 = vsel %vm1440, %v2675, 0.0
        %2678 = vrot.lane.b32.xlu0 %v2676, 32
        %v2679 = vpop.permute.xlu0 %2678
        %2681 = vst.msk [vmem:[#allocation3 + $0x2] sm:$0x1] %vm2117, %v2679
        %v2682 = vsel %vm1440, %v2675, %v2569
        %v2683 = vsel %vm1440, %v2669, %v2570
        %v2684 = vld [vmem:[#allocation2 + $0x1] sm:$0x1]
        %2686 = vrot.lane.b32.xlu0 %v2682, 16
        %v2687 = vpop.permute.xlu0 %2686
        %v2688 = vsel %vm656, %v2687, 0
        %2690 = vmatprep.subr.mxu0 0.0
        %2691 = vmatpush1.msra.mxu0 %v1113
        %2692 = vmatprep.subr.mxu0 0.0
        %2693 = vmatpush1.msra.mxu0 %v1114
        %2694 = vmatprep.subr.mxu0 0.0
        %2695 = vmatpush1.msra.mxu0 0.0
        %2696 = vmatprep.subr.mxu0 0.0
        %2697 = vmatpush1.msra.mxu0 0.0
        %2698 = vmatprep.subr.mxu0 0.0
        %2699 = vmatpush1.msra.mxu0 0.0
        %2700 = vmatprep.subr.mxu0 0.0
        %2701 = vmatpush1.msra.mxu0 0.0
        %2702 = vmatprep.subr.mxu0 0.0
        %2703 = vmatpush1.msra.mxu0 0.0
        %2704 = vmatprep.subr.mxu0 0.0
        %2705 = vmatpush1.msra.mxu0 0.0
        %2706 = vmatprep.subr.mxu0 0.0
        %2707 = vmatpush1.msra.mxu0 0.0
        %2708 = vmatprep.subr.mxu0 0.0
        %2709 = vmatpush1.msra.mxu0 0.0
        %2710 = vmatprep.subr.mxu0 0.0
        %2711 = vmatpush1.msra.mxu0 0.0
        %2712 = vmatprep.subr.mxu0 0.0
        %2713 = vmatpush1.msra.mxu0 0.0
        %2714 = vmatprep.subr.mxu0 0.0
        %2715 = vmatpush1.msra.mxu0 0.0
        %2716 = vmatprep.subr.mxu0 0.0
        %2717 = vmatpush1.msra.mxu0 0.0
        %2718 = vmatprep.subr.mxu0 0.0
        %2719 = vmatpush1.msra.mxu0 0.0
        %2720 = vmatprep.subr.mxu0 0.0
        %2721 = vmatpush1.msra.mxu0 0.0
        %2722 = vmatprep.subr.mxu0 0.0
        %2723 = vmatpush1.msra.mxu0 0.0
        %2724 = vmatprep.subr.mxu0 0.0
        %2725 = vmatpush1.msra.mxu0 0.0
        %2726 = vmatprep.subr.mxu0 0.0
        %2727 = vmatpush1.msra.mxu0 0.0
        %2728 = vmatprep.subr.mxu0 0.0
        %2729 = vmatpush1.msra.mxu0 0.0
        %2730 = vmatprep.subr.mxu0 0.0
        %2731 = vmatpush1.msra.mxu0 0.0
        %2732 = vmatprep.subr.mxu0 0.0
        %2733 = vmatpush1.msra.mxu0 0.0
        %2734 = vmatprep.subr.mxu0 0.0
        %2735 = vmatpush1.msra.mxu0 0.0
        %2736 = vmatprep.subr.mxu0 0.0
        %2737 = vmatpush1.msra.mxu0 0.0
        %2738 = vmatprep.subr.mxu0 0.0
        %2739 = vmatpush1.msra.mxu0 0.0
        %2740 = vmatprep.subr.mxu0 0.0
        %2741 = vmatpush1.msra.mxu0 0.0
        %2742 = vmatprep.subr.mxu0 0.0
        %2743 = vmatpush1.msra.mxu0 0.0
        %2744 = vmatprep.subr.mxu0 0.0
        %2745 = vmatpush1.msra.mxu0 0.0
        %2746 = vmatprep.subr.mxu0 0.0
        %2747 = vmatpush1.msra.mxu0 0.0
        %2748 = vmatprep.subr.mxu0 0.0
        %2749 = vmatpush1.msra.mxu0 0.0
        %2750 = vmatprep.subr.mxu0 0.0
        %2751 = vmatpush1.msra.mxu0 0.0
        %2752 = vmatprep.subr.mxu0 0.0
        %2753 = vmatpush1.msra.mxu0 0.0
        %2754 = vmatprep.mubr.f32.mxu0 0.0
        %2755 = vmatmul.mubr.f32.gmra.mrb[0].mxu0 %v2688
        %v2756 = vpop.f32.mrb[0].mxu0
        %v2757 = vadd.f32 0.0, %v2756
        %v2758 = vpop.f32.mrb[0].mxu0
        %2759 = vdwg.mxu0
        %2761 = vrot.lane.b32.xlu0 %v2757, 64
        %v2762 = vpop.permute.xlu0 %2761
        %v2764 = vadd.f32 %v2684, %v2762
        %v2765 = vxor.u32 %v2764, 2147483648
        %v2766 = vmul.f32 %v2765, 1.442695
        %v2767 = vpow.pop %v2766
        %v2768 = vadd.f32 %v2767, 1.0
        %v2769 = vrcp.pop %v2768
        %v2770 = vmul.f32 1.0, %v2769
        %v2771 = vtanh.pop %v2764
        %v2772 = vmul.f32 %v2770, %v2683
        %2774 = vrot.lane.b32.xlu0 %v2771, 96
        %v2775 = vpop.permute.xlu0 %2774
        %v2777 = vmul.f32 %v2770, %v2775
        %2779 = vrot.lane.b32.xlu0 %v2777, 16
        %v2780 = vpop.permute.xlu0 %2779
        %v2782 = vadd.f32 %v2772, %v2780
        %v2783 = vtanh.pop %v2782
        %2785 = vrot.lane.b32.xlu0 %v2783, 32
        %v2786 = vpop.permute.xlu0 %2785
        %v2788 = vmul.f32 %v2770, %v2786
        %v2789 = vsel %vm1327, %v2788, 0.0
        %2791 = vrot.lane.b32.xlu0 %v2789, 32
        %v2792 = vpop.permute.xlu0 %2791
        %2794 = vst.msk [vmem:[#allocation3 + $0x1] sm:$0x1] %vm2117, %v2792
        %v2795 = vsel %vm1327, %v2788, %v2682
        %v2796 = vsel %vm1327, %v2782, %v2683
        %v2797 = vld [vmem:[#allocation2] sm:$0x1]
        %2799 = vrot.lane.b32.xlu0 %v2795, 16
        %v2800 = vpop.permute.xlu0 %2799
        %v2801 = vsel %vm656, %v2800, 0
        %2803 = vmatprep.subr.mxu0 0.0
        %2804 = vmatpush1.msra.mxu0 %v1113
        %2805 = vmatprep.subr.mxu0 0.0
        %2806 = vmatpush1.msra.mxu0 %v1114
        %2807 = vmatprep.subr.mxu0 0.0
        %2808 = vmatpush1.msra.mxu0 0.0
        %2809 = vmatprep.subr.mxu0 0.0
        %2810 = vmatpush1.msra.mxu0 0.0
        %2811 = vmatprep.subr.mxu0 0.0
        %2812 = vmatpush1.msra.mxu0 0.0
        %2813 = vmatprep.subr.mxu0 0.0
        %2814 = vmatpush1.msra.mxu0 0.0
        %2815 = vmatprep.subr.mxu0 0.0
        %2816 = vmatpush1.msra.mxu0 0.0
        %2817 = vmatprep.subr.mxu0 0.0
        %2818 = vmatpush1.msra.mxu0 0.0
        %2819 = vmatprep.subr.mxu0 0.0
        %2820 = vmatpush1.msra.mxu0 0.0
        %2821 = vmatprep.subr.mxu0 0.0
        %2822 = vmatpush1.msra.mxu0 0.0
        %2823 = vmatprep.subr.mxu0 0.0
        %2824 = vmatpush1.msra.mxu0 0.0
        %2825 = vmatprep.subr.mxu0 0.0
        %2826 = vmatpush1.msra.mxu0 0.0
        %2827 = vmatprep.subr.mxu0 0.0
        %2828 = vmatpush1.msra.mxu0 0.0
        %2829 = vmatprep.subr.mxu0 0.0
        %2830 = vmatpush1.msra.mxu0 0.0
        %2831 = vmatprep.subr.mxu0 0.0
        %2832 = vmatpush1.msra.mxu0 0.0
        %2833 = vmatprep.subr.mxu0 0.0
        %2834 = vmatpush1.msra.mxu0 0.0
        %2835 = vmatprep.subr.mxu0 0.0
        %2836 = vmatpush1.msra.mxu0 0.0
        %2837 = vmatprep.subr.mxu0 0.0
        %2838 = vmatpush1.msra.mxu0 0.0
        %2839 = vmatprep.subr.mxu0 0.0
        %2840 = vmatpush1.msra.mxu0 0.0
        %2841 = vmatprep.subr.mxu0 0.0
        %2842 = vmatpush1.msra.mxu0 0.0
        %2843 = vmatprep.subr.mxu0 0.0
        %2844 = vmatpush1.msra.mxu0 0.0
        %2845 = vmatprep.subr.mxu0 0.0
        %2846 = vmatpush1.msra.mxu0 0.0
        %2847 = vmatprep.subr.mxu0 0.0
        %2848 = vmatpush1.msra.mxu0 0.0
        %2849 = vmatprep.subr.mxu0 0.0
        %2850 = vmatpush1.msra.mxu0 0.0
        %2851 = vmatprep.subr.mxu0 0.0
        %2852 = vmatpush1.msra.mxu0 0.0
        %2853 = vmatprep.subr.mxu0 0.0
        %2854 = vmatpush1.msra.mxu0 0.0
        %2855 = vmatprep.subr.mxu0 0.0
        %2856 = vmatpush1.msra.mxu0 0.0
        %2857 = vmatprep.subr.mxu0 0.0
        %2858 = vmatpush1.msra.mxu0 0.0
        %2859 = vmatprep.subr.mxu0 0.0
        %2860 = vmatpush1.msra.mxu0 0.0
        %2861 = vmatprep.subr.mxu0 0.0
        %2862 = vmatpush1.msra.mxu0 0.0
        %2863 = vmatprep.subr.mxu0 0.0
        %2864 = vmatpush1.msra.mxu0 0.0
        %2865 = vmatprep.subr.mxu0 0.0
        %2866 = vmatpush1.msra.mxu0 0.0
        %2867 = vmatprep.mubr.f32.mxu0 0.0
        %2868 = vmatmul.mubr.f32.gmra.mrb[0].mxu0 %v2801
        %v2869 = vpop.f32.mrb[0].mxu0
        %v2870 = vadd.f32 0.0, %v2869
        %v2871 = vpop.f32.mrb[0].mxu0
        %2872 = vdwg.mxu0
        %2874 = vrot.lane.b32.xlu0 %v2870, 64
        %v2875 = vpop.permute.xlu0 %2874
        %v2877 = vadd.f32 %v2797, %v2875
        %v2878 = vxor.u32 %v2877, 2147483648
        %v2879 = vmul.f32 %v2878, 1.442695
        %v2880 = vpow.pop %v2879
        %v2881 = vadd.f32 %v2880, 1.0
        %v2882 = vrcp.pop %v2881
        %v2883 = vmul.f32 1.0, %v2882
        %v2884 = vtanh.pop %v2877
        %v2885 = vmul.f32 %v2883, %v2796
        %2887 = vrot.lane.b32.xlu0 %v2884, 96
        %v2888 = vpop.permute.xlu0 %2887
        %v2890 = vmul.f32 %v2883, %v2888
        %2892 = vrot.lane.b32.xlu0 %v2890, 16
        %v2893 = vpop.permute.xlu0 %2892
        %v2895 = vadd.f32 %v2885, %v2893
        %v2896 = vtanh.pop %v2895
        %2898 = vrot.lane.b32.xlu0 %v2896, 32
        %v2899 = vpop.permute.xlu0 %2898
        %v2901 = vmul.f32 %v2883, %v2899
        %v2902 = vsel %vm1217, %v2901, 0.0
        %2904 = vrot.lane.b32.xlu0 %v2902, 32
        %v2905 = vpop.permute.xlu0 %2904
        %2907 = vst.msk [vmem:[#allocation3] sm:$0x1] %vm2117, %v2905
        %v2908 = vld [vmem:[#allocation3] sm:$0xff]
        %v2909 = vld [vmem:[%s622] sm:$0x1]
        %v2911 = vlaneseq
        %v2912 = vshrl.u32 %v2911, 7
        %v2913 = vsub.s32 0, %v2912
        %v2914 = vrot.slane %v2909, %v2913
        %v2916 = vadd.f32 %v2908, %v2914
        %2917 = vst.msk [vmem:[%s603] sm:$0xff] %vm658, %v2916
        %v2918 = vld [vmem:[%s12] sm:$0xff]
        %v2919 = vld [vmem:[%s12 + $0x8] sm:$0xff]
        %v2920 = vld [vmem:[%s12 + $0x10] sm:$0xff]
        %v2921 = vld [vmem:[%s12 + $0x18] sm:$0xff]
        %v2922 = vld [vmem:[%s13] sm:$0x1]
        %v2924 = vlaneseq
        %v2925 = vshrl.u32 %v2924, 7
        %v2926 = vsub.s32 0, %v2925
        %v2927 = vrot.slane %v2922, %v2926
        %v2930 = vsel %vm658, %v2916, 0
        %2932 = vmatprep.subr.mxu0 0.0
        %2933 = vmatpush1.msra.mxu0 %v2918
        %2934 = vmatprep.subr.mxu0 0.0
        %2935 = vmatpush1.msra.mxu0 %v2919
        %2936 = vmatprep.subr.mxu0 0.0
        %2937 = vmatpush1.msra.mxu0 %v2920
        %2938 = vmatprep.subr.mxu0 0.0
        %2939 = vmatpush1.msra.mxu0 %v2921
        %2940 = vmatprep.subr.mxu0 0.0
        %2941 = vmatpush1.msra.mxu0 0.0
        %2942 = vmatprep.subr.mxu0 0.0
        %2943 = vmatpush1.msra.mxu0 0.0
        %2944 = vmatprep.subr.mxu0 0.0
        %2945 = vmatpush1.msra.mxu0 0.0
        %2946 = vmatprep.subr.mxu0 0.0
        %2947 = vmatpush1.msra.mxu0 0.0
        %2948 = vmatprep.subr.mxu0 0.0
        %2949 = vmatpush1.msra.mxu0 0.0
        %2950 = vmatprep.subr.mxu0 0.0
        %2951 = vmatpush1.msra.mxu0 0.0
        %2952 = vmatprep.subr.mxu0 0.0
        %2953 = vmatpush1.msra.mxu0 0.0
        %2954 = vmatprep.subr.mxu0 0.0
        %2955 = vmatpush1.msra.mxu0 0.0
        %2956 = vmatprep.subr.mxu0 0.0
        %2957 = vmatpush1.msra.mxu0 0.0
        %2958 = vmatprep.subr.mxu0 0.0
        %2959 = vmatpush1.msra.mxu0 0.0
        %2960 = vmatprep.subr.mxu0 0.0
        %2961 = vmatpush1.msra.mxu0 0.0
        %2962 = vmatprep.subr.mxu0 0.0
        %2963 = vmatpush1.msra.mxu0 0.0
        %2964 = vmatprep.subr.mxu0 0.0
        %2965 = vmatpush1.msra.mxu0 0.0
        %2966 = vmatprep.subr.mxu0 0.0
        %2967 = vmatpush1.msra.mxu0 0.0
        %2968 = vmatprep.subr.mxu0 0.0
        %2969 = vmatpush1.msra.mxu0 0.0
        %2970 = vmatprep.subr.mxu0 0.0
        %2971 = vmatpush1.msra.mxu0 0.0
        %2972 = vmatprep.subr.mxu0 0.0
        %2973 = vmatpush1.msra.mxu0 0.0
        %2974 = vmatprep.subr.mxu0 0.0
        %2975 = vmatpush1.msra.mxu0 0.0
        %2976 = vmatprep.subr.mxu0 0.0
        %2977 = vmatpush1.msra.mxu0 0.0
        %2978 = vmatprep.subr.mxu0 0.0
        %2979 = vmatpush1.msra.mxu0 0.0
        %2980 = vmatprep.subr.mxu0 0.0
        %2981 = vmatpush1.msra.mxu0 0.0
        %2982 = vmatprep.subr.mxu0 0.0
        %2983 = vmatpush1.msra.mxu0 0.0
        %2984 = vmatprep.subr.mxu0 0.0
        %2985 = vmatpush1.msra.mxu0 0.0
        %2986 = vmatprep.subr.mxu0 0.0
        %2987 = vmatpush1.msra.mxu0 0.0
        %2988 = vmatprep.subr.mxu0 0.0
        %2989 = vmatpush1.msra.mxu0 0.0
        %2990 = vmatprep.subr.mxu0 0.0
        %2991 = vmatpush1.msra.mxu0 0.0
        %2992 = vmatprep.subr.mxu0 0.0
        %2993 = vmatpush1.msra.mxu0 0.0
        %2994 = vmatprep.subr.mxu0 0.0
        %2995 = vmatpush1.msra.mxu0 0.0
        %2996 = vmatprep.mubr.f32.mxu0 0.0
        %2997 = vmatmul.mubr.f32.gmra.mrb[0].mxu0 %v2930
        %v2998 = vpop.f32.mrb[0].mxu0
        %v2999 = vadd.f32 %v2927, %v2998
        %v3000 = vpop.f32.mrb[0].mxu0
        %3001 = vdwg.mxu0
        %3002 = vst.msk [vmem:[#allocation4] sm:$0xff] %vm660, %v2999
        %v3003 = vld [vmem:[%s14] sm:$0xff]
        %v3004 = vld [vmem:[%s14 + $0x8] sm:$0xff]
        %v3005 = vld [vmem:[%s15] sm:$0x1]
        %v3006 = vld [vmem:[#allocation4] sm:$0x1]
        %v3007 = vadd.f32 %v3006, 0.0
        %v3009 = vlaneseq
        %v3010 = vshrl.u32 %v3009, 7
        %v3011 = vsub.s32 0, %v3010
        %v3012 = vrot.slane %v3005, %v3011
        %3013 = vrot.lane.b32.xlu0 %v3012, 80
        %v3014 = vpop.permute.xlu0 %3013
        %v3016 = vadd.f32 %v3007, %v3014
        %v3017 = vxor.u32 %v3016, 2147483648
        %v3018 = vmul.f32 %v3017, 1.442695
        %v3019 = vpow.pop %v3018
        %v3020 = vadd.f32 %v3019, 1.0
        %v3021 = vrcp.pop %v3020
        %v3022 = vmul.f32 1.0, %v3021
        %3023 = vrot.lane.b32.xlu0 %v3012, 48
        %v3024 = vpop.permute.xlu0 %3023
        %v3026 = vmul.f32 %v3022, %v3024
        %3028 = vrot.lane.b32.xlu0 %v3026, 32
        %v3029 = vpop.permute.xlu0 %3028
        %v3031 = vadd.f32 %v3007, %v3029
        %v3032 = vtanh.pop %v3031
        %v3033 = vsub.f32 1.0, %v3022
        %3035 = vrot.lane.b32.xlu0 %v3032, 112
        %v3036 = vpop.permute.xlu0 %3035
        %v3038 = vmul.f32 %v3033, %v3036
        %v3039 = vmul.f32 %v3022, 0.0
        %v3040 = vadd.f32 %v3038, %v3039
        %3042 = vrot.lane.b32.xlu0 %v3040, 112
        %v3043 = vpop.permute.xlu0 %3042
        %3045 = vst.msk [vmem:[#allocation5] sm:$0x1] %vm1223, %v3043
        %v3046 = vsel %vm656, %v3043, 0
        %3048 = vmatprep.subr.mxu0 0.0
        %3049 = vmatpush1.msra.mxu0 %v3003
        %3050 = vmatprep.subr.mxu0 0.0
        %3051 = vmatpush1.msra.mxu0 %v3004
        %3052 = vmatprep.subr.mxu0 0.0
        %3053 = vmatpush1.msra.mxu0 0.0
        %3054 = vmatprep.subr.mxu0 0.0
        %3055 = vmatpush1.msra.mxu0 0.0
        %3056 = vmatprep.subr.mxu0 0.0
        %3057 = vmatpush1.msra.mxu0 0.0
        %3058 = vmatprep.subr.mxu0 0.0
        %3059 = vmatpush1.msra.mxu0 0.0
        %3060 = vmatprep.subr.mxu0 0.0
        %3061 = vmatpush1.msra.mxu0 0.0
        %3062 = vmatprep.subr.mxu0 0.0
        %3063 = vmatpush1.msra.mxu0 0.0
        %3064 = vmatprep.subr.mxu0 0.0
        %3065 = vmatpush1.msra.mxu0 0.0
        %3066 = vmatprep.subr.mxu0 0.0
        %3067 = vmatpush1.msra.mxu0 0.0
        %3068 = vmatprep.subr.mxu0 0.0
        %3069 = vmatpush1.msra.mxu0 0.0
        %3070 = vmatprep.subr.mxu0 0.0
        %3071 = vmatpush1.msra.mxu0 0.0
        %3072 = vmatprep.subr.mxu0 0.0
        %3073 = vmatpush1.msra.mxu0 0.0
        %3074 = vmatprep.subr.mxu0 0.0
        %3075 = vmatpush1.msra.mxu0 0.0
        %3076 = vmatprep.subr.mxu0 0.0
        %3077 = vmatpush1.msra.mxu0 0.0
        %3078 = vmatprep.subr.mxu0 0.0
        %3079 = vmatpush1.msra.mxu0 0.0
        %3080 = vmatprep.subr.mxu0 0.0
        %3081 = vmatpush1.msra.mxu0 0.0
        %3082 = vmatprep.subr.mxu0 0.0
        %3083 = vmatpush1.msra.mxu0 0.0
        %3084 = vmatprep.subr.mxu0 0.0
        %3085 = vmatpush1.msra.mxu0 0.0
        %3086 = vmatprep.subr.mxu0 0.0
        %3087 = vmatpush1.msra.mxu0 0.0
        %3088 = vmatprep.subr.mxu0 0.0
        %3089 = vmatpush1.msra.mxu0 0.0
        %3090 = vmatprep.subr.mxu0 0.0
        %3091 = vmatpush1.msra.mxu0 0.0
        %3092 = vmatprep.subr.mxu0 0.0
        %3093 = vmatpush1.msra.mxu0 0.0
        %3094 = vmatprep.subr.mxu0 0.0
        %3095 = vmatpush1.msra.mxu0 0.0
        %3096 = vmatprep.subr.mxu0 0.0
        %3097 = vmatpush1.msra.mxu0 0.0
        %3098 = vmatprep.subr.mxu0 0.0
        %3099 = vmatpush1.msra.mxu0 0.0
        %3100 = vmatprep.subr.mxu0 0.0
        %3101 = vmatpush1.msra.mxu0 0.0
        %3102 = vmatprep.subr.mxu0 0.0
        %3103 = vmatpush1.msra.mxu0 0.0
        %3104 = vmatprep.subr.mxu0 0.0
        %3105 = vmatpush1.msra.mxu0 0.0
        %3106 = vmatprep.subr.mxu0 0.0
        %3107 = vmatpush1.msra.mxu0 0.0
        %3108 = vmatprep.subr.mxu0 0.0
        %3109 = vmatpush1.msra.mxu0 0.0
        %3110 = vmatprep.subr.mxu0 0.0
        %3111 = vmatpush1.msra.mxu0 0.0
        %3112 = vmatprep.mubr.f32.mxu0 0.0
        %3113 = vmatmul.mubr.f32.gmra.mrb[0].mxu0 %v3046
        %v3114 = vpop.f32.mrb[0].mxu0
        %v3115 = vadd.f32 %v3005, %v3114
        %v3116 = vpop.f32.mrb[0].mxu0
        %3117 = vdwg.mxu0
        %v3118 = vld [vmem:[#allocation4 + $0x1] sm:$0x1]
        %v3119 = vadd.f32 %v3118, %v3115
        %3121 = vrot.lane.b32.xlu0 %v3115, 80
        %v3122 = vpop.permute.xlu0 %3121
        %v3124 = vadd.f32 %v3119, %v3122
        %v3125 = vxor.u32 %v3124, 2147483648
        %v3126 = vmul.f32 %v3125, 1.442695
        %v3127 = vpow.pop %v3126
        %v3128 = vadd.f32 %v3127, 1.0
        %v3129 = vrcp.pop %v3128
        %v3130 = vmul.f32 1.0, %v3129
        %3131 = vrot.lane.b32.xlu0 %v3115, 48
        %v3132 = vpop.permute.xlu0 %3131
        %v3134 = vmul.f32 %v3130, %v3132
        %3136 = vrot.lane.b32.xlu0 %v3134, 32
        %v3137 = vpop.permute.xlu0 %3136
        %v3139 = vadd.f32 %v3119, %v3137
        %v3140 = vtanh.pop %v3139
        %v3141 = vsub.f32 1.0, %v3130
        %3143 = vrot.lane.b32.xlu0 %v3140, 112
        %v3144 = vpop.permute.xlu0 %3143
        %v3146 = vmul.f32 %v3141, %v3144
        %v3147 = vmul.f32 %v3130, %v3040
        %v3148 = vadd.f32 %v3146, %v3147
        %3150 = vrot.lane.b32.xlu0 %v3148, 112
        %v3151 = vpop.permute.xlu0 %3150
        %3153 = vst.msk [vmem:[#allocation5 + $0x1] sm:$0x1] %vm1223, %v3151
        %v3154 = vsel %vm656, %v3151, 0
        %3156 = vmatprep.subr.mxu0 0.0
        %3157 = vmatpush1.msra.mxu0 %v3003
        %3158 = vmatprep.subr.mxu0 0.0
        %3159 = vmatpush1.msra.mxu0 %v3004
        %3160 = vmatprep.subr.mxu0 0.0
        %3161 = vmatpush1.msra.mxu0 0.0
        %3162 = vmatprep.subr.mxu0 0.0
        %3163 = vmatpush1.msra.mxu0 0.0
        %3164 = vmatprep.subr.mxu0 0.0
        %3165 = vmatpush1.msra.mxu0 0.0
        %3166 = vmatprep.subr.mxu0 0.0
        %3167 = vmatpush1.msra.mxu0 0.0
        %3168 = vmatprep.subr.mxu0 0.0
        %3169 = vmatpush1.msra.mxu0 0.0
        %3170 = vmatprep.subr.mxu0 0.0
        %3171 = vmatpush1.msra.mxu0 0.0
        %3172 = vmatprep.subr.mxu0 0.0
        %3173 = vmatpush1.msra.mxu0 0.0
        %3174 = vmatprep.subr.mxu0 0.0
        %3175 = vmatpush1.msra.mxu0 0.0
        %3176 = vmatprep.subr.mxu0 0.0
        %3177 = vmatpush1.msra.mxu0 0.0
        %3178 = vmatprep.subr.mxu0 0.0
        %3179 = vmatpush1.msra.mxu0 0.0
        %3180 = vmatprep.subr.mxu0 0.0
        %3181 = vmatpush1.msra.mxu0 0.0
        %3182 = vmatprep.subr.mxu0 0.0
        %3183 = vmatpush1.msra.mxu0 0.0
        %3184 = vmatprep.subr.mxu0 0.0
        %3185 = vmatpush1.msra.mxu0 0.0
        %3186 = vmatprep.subr.mxu0 0.0
        %3187 = vmatpush1.msra.mxu0 0.0
        %3188 = vmatprep.subr.mxu0 0.0
        %3189 = vmatpush1.msra.mxu0 0.0
        %3190 = vmatprep.subr.mxu0 0.0
        %3191 = vmatpush1.msra.mxu0 0.0
        %3192 = vmatprep.subr.mxu0 0.0
        %3193 = vmatpush1.msra.mxu0 0.0
        %3194 = vmatprep.subr.mxu0 0.0
        %3195 = vmatpush1.msra.mxu0 0.0
        %3196 = vmatprep.subr.mxu0 0.0
        %3197 = vmatpush1.msra.mxu0 0.0
        %3198 = vmatprep.subr.mxu0 0.0
        %3199 = vmatpush1.msra.mxu0 0.0
        %3200 = vmatprep.subr.mxu0 0.0
        %3201 = vmatpush1.msra.mxu0 0.0
        %3202 = vmatprep.subr.mxu0 0.0
        %3203 = vmatpush1.msra.mxu0 0.0
        %3204 = vmatprep.subr.mxu0 0.0
        %3205 = vmatpush1.msra.mxu0 0.0
        %3206 = vmatprep.subr.mxu0 0.0
        %3207 = vmatpush1.msra.mxu0 0.0
        %3208 = vmatprep.subr.mxu0 0.0
        %3209 = vmatpush1.msra.mxu0 0.0
        %3210 = vmatprep.subr.mxu0 0.0
        %3211 = vmatpush1.msra.mxu0 0.0
        %3212 = vmatprep.subr.mxu0 0.0
        %3213 = vmatpush1.msra.mxu0 0.0
        %3214 = vmatprep.subr.mxu0 0.0
        %3215 = vmatpush1.msra.mxu0 0.0
        %3216 = vmatprep.subr.mxu0 0.0
        %3217 = vmatpush1.msra.mxu0 0.0
        %3218 = vmatprep.subr.mxu0 0.0
        %3219 = vmatpush1.msra.mxu0 0.0
        %3220 = vmatprep.mubr.f32.mxu0 0.0
        %3221 = vmatmul.mubr.f32.gmra.mrb[0].mxu0 %v3154
        %v3222 = vpop.f32.mrb[0].mxu0
        %v3223 = vadd.f32 %v3005, %v3222
        %v3224 = vpop.f32.mrb[0].mxu0
        %3225 = vdwg.mxu0
        %v3226 = vld [vmem:[#allocation4 + $0x2] sm:$0x1]
        %v3227 = vadd.f32 %v3226, %v3223
        %3229 = vrot.lane.b32.xlu0 %v3223, 80
        %v3230 = vpop.permute.xlu0 %3229
        %v3232 = vadd.f32 %v3227, %v3230
        %v3233 = vxor.u32 %v3232, 2147483648
        %v3234 = vmul.f32 %v3233, 1.442695
        %v3235 = vpow.pop %v3234
        %v3236 = vadd.f32 %v3235, 1.0
        %v3237 = vrcp.pop %v3236
        %v3238 = vmul.f32 1.0, %v3237
        %3239 = vrot.lane.b32.xlu0 %v3223, 48
        %v3240 = vpop.permute.xlu0 %3239
        %v3242 = vmul.f32 %v3238, %v3240
        %3244 = vrot.lane.b32.xlu0 %v3242, 32
        %v3245 = vpop.permute.xlu0 %3244
        %v3247 = vadd.f32 %v3227, %v3245
        %v3248 = vtanh.pop %v3247
        %v3249 = vsub.f32 1.0, %v3238
        %3251 = vrot.lane.b32.xlu0 %v3248, 112
        %v3252 = vpop.permute.xlu0 %3251
        %v3254 = vmul.f32 %v3249, %v3252
        %v3255 = vmul.f32 %v3238, %v3148
        %v3256 = vadd.f32 %v3254, %v3255
        %3258 = vrot.lane.b32.xlu0 %v3256, 112
        %v3259 = vpop.permute.xlu0 %3258
        %3261 = vst.msk [vmem:[#allocation5 + $0x2] sm:$0x1] %vm1223, %v3259
        %v3262 = vsel %vm656, %v3259, 0
        %3264 = vmatprep.subr.mxu0 0.0
        %3265 = vmatpush1.msra.mxu0 %v3003
        %3266 = vmatprep.subr.mxu0 0.0
        %3267 = vmatpush1.msra.mxu0 %v3004
        %3268 = vmatprep.subr.mxu0 0.0
        %3269 = vmatpush1.msra.mxu0 0.0
        %3270 = vmatprep.subr.mxu0 0.0
        %3271 = vmatpush1.msra.mxu0 0.0
        %3272 = vmatprep.subr.mxu0 0.0
        %3273 = vmatpush1.msra.mxu0 0.0
        %3274 = vmatprep.subr.mxu0 0.0
        %3275 = vmatpush1.msra.mxu0 0.0
        %3276 = vmatprep.subr.mxu0 0.0
        %3277 = vmatpush1.msra.mxu0 0.0
        %3278 = vmatprep.subr.mxu0 0.0
        %3279 = vmatpush1.msra.mxu0 0.0
        %3280 = vmatprep.subr.mxu0 0.0
        %3281 = vmatpush1.msra.mxu0 0.0
        %3282 = vmatprep.subr.mxu0 0.0
        %3283 = vmatpush1.msra.mxu0 0.0
        %3284 = vmatprep.subr.mxu0 0.0
        %3285 = vmatpush1.msra.mxu0 0.0
        %3286 = vmatprep.subr.mxu0 0.0
        %3287 = vmatpush1.msra.mxu0 0.0
        %3288 = vmatprep.subr.mxu0 0.0
        %3289 = vmatpush1.msra.mxu0 0.0
        %3290 = vmatprep.subr.mxu0 0.0
        %3291 = vmatpush1.msra.mxu0 0.0
        %3292 = vmatprep.subr.mxu0 0.0
        %3293 = vmatpush1.msra.mxu0 0.0
        %3294 = vmatprep.subr.mxu0 0.0
        %3295 = vmatpush1.msra.mxu0 0.0
        %3296 = vmatprep.subr.mxu0 0.0
        %3297 = vmatpush1.msra.mxu0 0.0
        %3298 = vmatprep.subr.mxu0 0.0
        %3299 = vmatpush1.msra.mxu0 0.0
        %3300 = vmatprep.subr.mxu0 0.0
        %3301 = vmatpush1.msra.mxu0 0.0
        %3302 = vmatprep.subr.mxu0 0.0
        %3303 = vmatpush1.msra.mxu0 0.0
        %3304 = vmatprep.subr.mxu0 0.0
        %3305 = vmatpush1.msra.mxu0 0.0
        %3306 = vmatprep.subr.mxu0 0.0
        %3307 = vmatpush1.msra.mxu0 0.0
        %3308 = vmatprep.subr.mxu0 0.0
        %3309 = vmatpush1.msra.mxu0 0.0
        %3310 = vmatprep.subr.mxu0 0.0
        %3311 = vmatpush1.msra.mxu0 0.0
        %3312 = vmatprep.subr.mxu0 0.0
        %3313 = vmatpush1.msra.mxu0 0.0
        %3314 = vmatprep.subr.mxu0 0.0
        %3315 = vmatpush1.msra.mxu0 0.0
        %3316 = vmatprep.subr.mxu0 0.0
        %3317 = vmatpush1.msra.mxu0 0.0
        %3318 = vmatprep.subr.mxu0 0.0
        %3319 = vmatpush1.msra.mxu0 0.0
        %3320 = vmatprep.subr.mxu0 0.0
        %3321 = vmatpush1.msra.mxu0 0.0
        %3322 = vmatprep.subr.mxu0 0.0
        %3323 = vmatpush1.msra.mxu0 0.0
        %3324 = vmatprep.subr.mxu0 0.0
        %3325 = vmatpush1.msra.mxu0 0.0
        %3326 = vmatprep.subr.mxu0 0.0
        %3327 = vmatpush1.msra.mxu0 0.0
        %3328 = vmatprep.mubr.f32.mxu0 0.0
        %3329 = vmatmul.mubr.f32.gmra.mrb[0].mxu0 %v3262
        %v3330 = vpop.f32.mrb[0].mxu0
        %v3331 = vadd.f32 %v3005, %v3330
        %v3332 = vpop.f32.mrb[0].mxu0
        %3333 = vdwg.mxu0
        %v3334 = vld [vmem:[#allocation4 + $0x3] sm:$0x1]
        %v3335 = vadd.f32 %v3334, %v3331
        %3337 = vrot.lane.b32.xlu0 %v3331, 80
        %v3338 = vpop.permute.xlu0 %3337
        %v3340 = vadd.f32 %v3335, %v3338
        %v3341 = vxor.u32 %v3340, 2147483648
        %v3342 = vmul.f32 %v3341, 1.442695
        %v3343 = vpow.pop %v3342
        %v3344 = vadd.f32 %v3343, 1.0
        %v3345 = vrcp.pop %v3344
        %v3346 = vmul.f32 1.0, %v3345
        %3347 = vrot.lane.b32.xlu0 %v3331, 48
        %v3348 = vpop.permute.xlu0 %3347
        %v3350 = vmul.f32 %v3346, %v3348
        %3352 = vrot.lane.b32.xlu0 %v3350, 32
        %v3353 = vpop.permute.xlu0 %3352
        %v3355 = vadd.f32 %v3335, %v3353
        %v3356 = vtanh.pop %v3355
        %v3357 = vsub.f32 1.0, %v3346
        %3359 = vrot.lane.b32.xlu0 %v3356, 112
        %v3360 = vpop.permute.xlu0 %3359
        %v3362 = vmul.f32 %v3357, %v3360
        %v3363 = vmul.f32 %v3346, %v3256
        %v3364 = vadd.f32 %v3362, %v3363
        %3366 = vrot.lane.b32.xlu0 %v3364, 112
        %v3367 = vpop.permute.xlu0 %3366
        %3369 = vst.msk [vmem:[#allocation5 + $0x3] sm:$0x1] %vm1223, %v3367
        %v3370 = vsel %vm656, %v3367, 0
        %3372 = vmatprep.subr.mxu0 0.0
        %3373 = vmatpush1.msra.mxu0 %v3003
        %3374 = vmatprep.subr.mxu0 0.0
        %3375 = vmatpush1.msra.mxu0 %v3004
        %3376 = vmatprep.subr.mxu0 0.0
        %3377 = vmatpush1.msra.mxu0 0.0
        %3378 = vmatprep.subr.mxu0 0.0
        %3379 = vmatpush1.msra.mxu0 0.0
        %3380 = vmatprep.subr.mxu0 0.0
        %3381 = vmatpush1.msra.mxu0 0.0
        %3382 = vmatprep.subr.mxu0 0.0
        %3383 = vmatpush1.msra.mxu0 0.0
        %3384 = vmatprep.subr.mxu0 0.0
        %3385 = vmatpush1.msra.mxu0 0.0
        %3386 = vmatprep.subr.mxu0 0.0
        %3387 = vmatpush1.msra.mxu0 0.0
        %3388 = vmatprep.subr.mxu0 0.0
        %3389 = vmatpush1.msra.mxu0 0.0
        %3390 = vmatprep.subr.mxu0 0.0
        %3391 = vmatpush1.msra.mxu0 0.0
        %3392 = vmatprep.subr.mxu0 0.0
        %3393 = vmatpush1.msra.mxu0 0.0
        %3394 = vmatprep.subr.mxu0 0.0
        %3395 = vmatpush1.msra.mxu0 0.0
        %3396 = vmatprep.subr.mxu0 0.0
        %3397 = vmatpush1.msra.mxu0 0.0
        %3398 = vmatprep.subr.mxu0 0.0
        %3399 = vmatpush1.msra.mxu0 0.0
        %3400 = vmatprep.subr.mxu0 0.0
        %3401 = vmatpush1.msra.mxu0 0.0
        %3402 = vmatprep.subr.mxu0 0.0
        %3403 = vmatpush1.msra.mxu0 0.0
        %3404 = vmatprep.subr.mxu0 0.0
        %3405 = vmatpush1.msra.mxu0 0.0
        %3406 = vmatprep.subr.mxu0 0.0
        %3407 = vmatpush1.msra.mxu0 0.0
        %3408 = vmatprep.subr.mxu0 0.0
        %3409 = vmatpush1.msra.mxu0 0.0
        %3410 = vmatprep.subr.mxu0 0.0
        %3411 = vmatpush1.msra.mxu0 0.0
        %3412 = vmatprep.subr.mxu0 0.0
        %3413 = vmatpush1.msra.mxu0 0.0
        %3414 = vmatprep.subr.mxu0 0.0
        %3415 = vmatpush1.msra.mxu0 0.0
        %3416 = vmatprep.subr.mxu0 0.0
        %3417 = vmatpush1.msra.mxu0 0.0
        %3418 = vmatprep.subr.mxu0 0.0
        %3419 = vmatpush1.msra.mxu0 0.0
        %3420 = vmatprep.subr.mxu0 0.0
        %3421 = vmatpush1.msra.mxu0 0.0
        %3422 = vmatprep.subr.mxu0 0.0
        %3423 = vmatpush1.msra.mxu0 0.0
        %3424 = vmatprep.subr.mxu0 0.0
        %3425 = vmatpush1.msra.mxu0 0.0
        %3426 = vmatprep.subr.mxu0 0.0
        %3427 = vmatpush1.msra.mxu0 0.0
        %3428 = vmatprep.subr.mxu0 0.0
        %3429 = vmatpush1.msra.mxu0 0.0
        %3430 = vmatprep.subr.mxu0 0.0
        %3431 = vmatpush1.msra.mxu0 0.0
        %3432 = vmatprep.subr.mxu0 0.0
        %3433 = vmatpush1.msra.mxu0 0.0
        %3434 = vmatprep.subr.mxu0 0.0
        %3435 = vmatpush1.msra.mxu0 0.0
        %3436 = vmatprep.mubr.f32.mxu0 0.0
        %3437 = vmatmul.mubr.f32.gmra.mrb[0].mxu0 %v3370
        %v3438 = vpop.f32.mrb[0].mxu0
        %v3439 = vadd.f32 %v3005, %v3438
        %v3440 = vpop.f32.mrb[0].mxu0
        %3441 = vdwg.mxu0
        %v3442 = vld [vmem:[#allocation4 + $0x4] sm:$0x1]
        %v3443 = vadd.f32 %v3442, %v3439
        %3445 = vrot.lane.b32.xlu0 %v3439, 80
        %v3446 = vpop.permute.xlu0 %3445
        %v3448 = vadd.f32 %v3443, %v3446
        %v3449 = vxor.u32 %v3448, 2147483648
        %v3450 = vmul.f32 %v3449, 1.442695
        %v3451 = vpow.pop %v3450
        %v3452 = vadd.f32 %v3451, 1.0
        %v3453 = vrcp.pop %v3452
        %v3454 = vmul.f32 1.0, %v3453
        %3455 = vrot.lane.b32.xlu0 %v3439, 48
        %v3456 = vpop.permute.xlu0 %3455
        %v3458 = vmul.f32 %v3454, %v3456
        %3460 = vrot.lane.b32.xlu0 %v3458, 32
        %v3461 = vpop.permute.xlu0 %3460
        %v3463 = vadd.f32 %v3443, %v3461
        %v3464 = vtanh.pop %v3463
        %v3465 = vsub.f32 1.0, %v3454
        %3467 = vrot.lane.b32.xlu0 %v3464, 112
        %v3468 = vpop.permute.xlu0 %3467
        %v3470 = vmul.f32 %v3465, %v3468
        %v3471 = vmul.f32 %v3454, %v3364
        %v3472 = vadd.f32 %v3470, %v3471
        %3474 = vrot.lane.b32.xlu0 %v3472, 112
        %v3475 = vpop.permute.xlu0 %3474
        %3477 = vst.msk [vmem:[#allocation5 + $0x4] sm:$0x1] %vm1223, %v3475
        %v3478 = vsel %vm656, %v3475, 0
        %3480 = vmatprep.subr.mxu0 0.0
        %3481 = vmatpush1.msra.mxu0 %v3003
        %3482 = vmatprep.subr.mxu0 0.0
        %3483 = vmatpush1.msra.mxu0 %v3004
        %3484 = vmatprep.subr.mxu0 0.0
        %3485 = vmatpush1.msra.mxu0 0.0
        %3486 = vmatprep.subr.mxu0 0.0
        %3487 = vmatpush1.msra.mxu0 0.0
        %3488 = vmatprep.subr.mxu0 0.0
        %3489 = vmatpush1.msra.mxu0 0.0
        %3490 = vmatprep.subr.mxu0 0.0
        %3491 = vmatpush1.msra.mxu0 0.0
        %3492 = vmatprep.subr.mxu0 0.0
        %3493 = vmatpush1.msra.mxu0 0.0
        %3494 = vmatprep.subr.mxu0 0.0
        %3495 = vmatpush1.msra.mxu0 0.0
        %3496 = vmatprep.subr.mxu0 0.0
        %3497 = vmatpush1.msra.mxu0 0.0
        %3498 = vmatprep.subr.mxu0 0.0
        %3499 = vmatpush1.msra.mxu0 0.0
        %3500 = vmatprep.subr.mxu0 0.0
        %3501 = vmatpush1.msra.mxu0 0.0
        %3502 = vmatprep.subr.mxu0 0.0
        %3503 = vmatpush1.msra.mxu0 0.0
        %3504 = vmatprep.subr.mxu0 0.0
        %3505 = vmatpush1.msra.mxu0 0.0
        %3506 = vmatprep.subr.mxu0 0.0
        %3507 = vmatpush1.msra.mxu0 0.0
        %3508 = vmatprep.subr.mxu0 0.0
        %3509 = vmatpush1.msra.mxu0 0.0
        %3510 = vmatprep.subr.mxu0 0.0
        %3511 = vmatpush1.msra.mxu0 0.0
        %3512 = vmatprep.subr.mxu0 0.0
        %3513 = vmatpush1.msra.mxu0 0.0
        %3514 = vmatprep.subr.mxu0 0.0
        %3515 = vmatpush1.msra.mxu0 0.0
        %3516 = vmatprep.subr.mxu0 0.0
        %3517 = vmatpush1.msra.mxu0 0.0
        %3518 = vmatprep.subr.mxu0 0.0
        %3519 = vmatpush1.msra.mxu0 0.0
        %3520 = vmatprep.subr.mxu0 0.0
        %3521 = vmatpush1.msra.mxu0 0.0
        %3522 = vmatprep.subr.mxu0 0.0
        %3523 = vmatpush1.msra.mxu0 0.0
        %3524 = vmatprep.subr.mxu0 0.0
        %3525 = vmatpush1.msra.mxu0 0.0
        %3526 = vmatprep.subr.mxu0 0.0
        %3527 = vmatpush1.msra.mxu0 0.0
        %3528 = vmatprep.subr.mxu0 0.0
        %3529 = vmatpush1.msra.mxu0 0.0
        %3530 = vmatprep.subr.mxu0 0.0
        %3531 = vmatpush1.msra.mxu0 0.0
        %3532 = vmatprep.subr.mxu0 0.0
        %3533 = vmatpush1.msra.mxu0 0.0
        %3534 = vmatprep.subr.mxu0 0.0
        %3535 = vmatpush1.msra.mxu0 0.0
        %3536 = vmatprep.subr.mxu0 0.0
        %3537 = vmatpush1.msra.mxu0 0.0
        %3538 = vmatprep.subr.mxu0 0.0
        %3539 = vmatpush1.msra.mxu0 0.0
        %3540 = vmatprep.subr.mxu0 0.0
        %3541 = vmatpush1.msra.mxu0 0.0
        %3542 = vmatprep.subr.mxu0 0.0
        %3543 = vmatpush1.msra.mxu0 0.0
        %3544 = vmatprep.mubr.f32.mxu0 0.0
        %3545 = vmatmul.mubr.f32.gmra.mrb[0].mxu0 %v3478
        %v3546 = vpop.f32.mrb[0].mxu0
        %v3547 = vadd.f32 %v3005, %v3546
        %v3548 = vpop.f32.mrb[0].mxu0
        %3549 = vdwg.mxu0
        %v3550 = vld [vmem:[#allocation4 + $0x5] sm:$0x1]
        %v3551 = vadd.f32 %v3550, %v3547
        %3553 = vrot.lane.b32.xlu0 %v3547, 80
        %v3554 = vpop.permute.xlu0 %3553
        %v3556 = vadd.f32 %v3551, %v3554
        %v3557 = vxor.u32 %v3556, 2147483648
        %v3558 = vmul.f32 %v3557, 1.442695
        %v3559 = vpow.pop %v3558
        %v3560 = vadd.f32 %v3559, 1.0
        %v3561 = vrcp.pop %v3560
        %v3562 = vmul.f32 1.0, %v3561
        %3563 = vrot.lane.b32.xlu0 %v3547, 48
        %v3564 = vpop.permute.xlu0 %3563
        %v3566 = vmul.f32 %v3562, %v3564
        %3568 = vrot.lane.b32.xlu0 %v3566, 32
        %v3569 = vpop.permute.xlu0 %3568
        %v3571 = vadd.f32 %v3551, %v3569
        %v3572 = vtanh.pop %v3571
        %v3573 = vsub.f32 1.0, %v3562
        %3575 = vrot.lane.b32.xlu0 %v3572, 112
        %v3576 = vpop.permute.xlu0 %3575
        %v3578 = vmul.f32 %v3573, %v3576
        %v3579 = vmul.f32 %v3562, %v3472
        %v3580 = vadd.f32 %v3578, %v3579
        %3582 = vrot.lane.b32.xlu0 %v3580, 112
        %v3583 = vpop.permute.xlu0 %3582
        %3585 = vst.msk [vmem:[#allocation5 + $0x5] sm:$0x1] %vm1223, %v3583
        %v3586 = vsel %vm656, %v3583, 0
        %3588 = vmatprep.subr.mxu0 0.0
        %3589 = vmatpush1.msra.mxu0 %v3003
        %3590 = vmatprep.subr.mxu0 0.0
        %3591 = vmatpush1.msra.mxu0 %v3004
        %3592 = vmatprep.subr.mxu0 0.0
        %3593 = vmatpush1.msra.mxu0 0.0
        %3594 = vmatprep.subr.mxu0 0.0
        %3595 = vmatpush1.msra.mxu0 0.0
        %3596 = vmatprep.subr.mxu0 0.0
        %3597 = vmatpush1.msra.mxu0 0.0
        %3598 = vmatprep.subr.mxu0 0.0
        %3599 = vmatpush1.msra.mxu0 0.0
        %3600 = vmatprep.subr.mxu0 0.0
        %3601 = vmatpush1.msra.mxu0 0.0
        %3602 = vmatprep.subr.mxu0 0.0
        %3603 = vmatpush1.msra.mxu0 0.0
        %3604 = vmatprep.subr.mxu0 0.0
        %3605 = vmatpush1.msra.mxu0 0.0
        %3606 = vmatprep.subr.mxu0 0.0
        %3607 = vmatpush1.msra.mxu0 0.0
        %3608 = vmatprep.subr.mxu0 0.0
        %3609 = vmatpush1.msra.mxu0 0.0
        %3610 = vmatprep.subr.mxu0 0.0
        %3611 = vmatpush1.msra.mxu0 0.0
        %3612 = vmatprep.subr.mxu0 0.0
        %3613 = vmatpush1.msra.mxu0 0.0
        %3614 = vmatprep.subr.mxu0 0.0
        %3615 = vmatpush1.msra.mxu0 0.0
        %3616 = vmatprep.subr.mxu0 0.0
        %3617 = vmatpush1.msra.mxu0 0.0
        %3618 = vmatprep.subr.mxu0 0.0
        %3619 = vmatpush1.msra.mxu0 0.0
        %3620 = vmatprep.subr.mxu0 0.0
        %3621 = vmatpush1.msra.mxu0 0.0
        %3622 = vmatprep.subr.mxu0 0.0
        %3623 = vmatpush1.msra.mxu0 0.0
        %3624 = vmatprep.subr.mxu0 0.0
        %3625 = vmatpush1.msra.mxu0 0.0
        %3626 = vmatprep.subr.mxu0 0.0
        %3627 = vmatpush1.msra.mxu0 0.0
        %3628 = vmatprep.subr.mxu0 0.0
        %3629 = vmatpush1.msra.mxu0 0.0
        %3630 = vmatprep.subr.mxu0 0.0
        %3631 = vmatpush1.msra.mxu0 0.0
        %3632 = vmatprep.subr.mxu0 0.0
        %3633 = vmatpush1.msra.mxu0 0.0
        %3634 = vmatprep.subr.mxu0 0.0
        %3635 = vmatpush1.msra.mxu0 0.0
        %3636 = vmatprep.subr.mxu0 0.0
        %3637 = vmatpush1.msra.mxu0 0.0
        %3638 = vmatprep.subr.mxu0 0.0
        %3639 = vmatpush1.msra.mxu0 0.0
        %3640 = vmatprep.subr.mxu0 0.0
        %3641 = vmatpush1.msra.mxu0 0.0
        %3642 = vmatprep.subr.mxu0 0.0
        %3643 = vmatpush1.msra.mxu0 0.0
        %3644 = vmatprep.subr.mxu0 0.0
        %3645 = vmatpush1.msra.mxu0 0.0
        %3646 = vmatprep.subr.mxu0 0.0
        %3647 = vmatpush1.msra.mxu0 0.0
        %3648 = vmatprep.subr.mxu0 0.0
        %3649 = vmatpush1.msra.mxu0 0.0
        %3650 = vmatprep.subr.mxu0 0.0
        %3651 = vmatpush1.msra.mxu0 0.0
        %3652 = vmatprep.mubr.f32.mxu0 0.0
        %3653 = vmatmul.mubr.f32.gmra.mrb[0].mxu0 %v3586
        %v3654 = vpop.f32.mrb[0].mxu0
        %v3655 = vadd.f32 %v3005, %v3654
        %v3656 = vpop.f32.mrb[0].mxu0
        %3657 = vdwg.mxu0
        %v3658 = vld [vmem:[#allocation4 + $0x6] sm:$0x1]
        %v3659 = vadd.f32 %v3658, %v3655
        %3661 = vrot.lane.b32.xlu0 %v3655, 80
        %v3662 = vpop.permute.xlu0 %3661
        %v3664 = vadd.f32 %v3659, %v3662
        %v3665 = vxor.u32 %v3664, 2147483648
        %v3666 = vmul.f32 %v3665, 1.442695
        %v3667 = vpow.pop %v3666
        %v3668 = vadd.f32 %v3667, 1.0
        %v3669 = vrcp.pop %v3668
        %v3670 = vmul.f32 1.0, %v3669
        %3671 = vrot.lane.b32.xlu0 %v3655, 48
        %v3672 = vpop.permute.xlu0 %3671
        %v3674 = vmul.f32 %v3670, %v3672
        %3676 = vrot.lane.b32.xlu0 %v3674, 32
        %v3677 = vpop.permute.xlu0 %3676
        %v3679 = vadd.f32 %v3659, %v3677
        %v3680 = vtanh.pop %v3679
        %v3681 = vsub.f32 1.0, %v3670
        %3683 = vrot.lane.b32.xlu0 %v3680, 112
        %v3684 = vpop.permute.xlu0 %3683
        %v3686 = vmul.f32 %v3681, %v3684
        %v3687 = vmul.f32 %v3670, %v3580
        %v3688 = vadd.f32 %v3686, %v3687
        %3690 = vrot.lane.b32.xlu0 %v3688, 112
        %v3691 = vpop.permute.xlu0 %3690
        %3693 = vst.msk [vmem:[#allocation5 + $0x6] sm:$0x1] %vm1223, %v3691
        %v3694 = vsel %vm656, %v3691, 0
        %3696 = vmatprep.subr.mxu0 0.0
        %3697 = vmatpush1.msra.mxu0 %v3003
        %3698 = vmatprep.subr.mxu0 0.0
        %3699 = vmatpush1.msra.mxu0 %v3004
        %3700 = vmatprep.subr.mxu0 0.0
        %3701 = vmatpush1.msra.mxu0 0.0
        %3702 = vmatprep.subr.mxu0 0.0
        %3703 = vmatpush1.msra.mxu0 0.0
        %3704 = vmatprep.subr.mxu0 0.0
        %3705 = vmatpush1.msra.mxu0 0.0
        %3706 = vmatprep.subr.mxu0 0.0
        %3707 = vmatpush1.msra.mxu0 0.0
        %3708 = vmatprep.subr.mxu0 0.0
        %3709 = vmatpush1.msra.mxu0 0.0
        %3710 = vmatprep.subr.mxu0 0.0
        %3711 = vmatpush1.msra.mxu0 0.0
        %3712 = vmatprep.subr.mxu0 0.0
        %3713 = vmatpush1.msra.mxu0 0.0
        %3714 = vmatprep.subr.mxu0 0.0
        %3715 = vmatpush1.msra.mxu0 0.0
        %3716 = vmatprep.subr.mxu0 0.0
        %3717 = vmatpush1.msra.mxu0 0.0
        %3718 = vmatprep.subr.mxu0 0.0
        %3719 = vmatpush1.msra.mxu0 0.0
        %3720 = vmatprep.subr.mxu0 0.0
        %3721 = vmatpush1.msra.mxu0 0.0
        %3722 = vmatprep.subr.mxu0 0.0
        %3723 = vmatpush1.msra.mxu0 0.0
        %3724 = vmatprep.subr.mxu0 0.0
        %3725 = vmatpush1.msra.mxu0 0.0
        %3726 = vmatprep.subr.mxu0 0.0
        %3727 = vmatpush1.msra.mxu0 0.0
        %3728 = vmatprep.subr.mxu0 0.0
        %3729 = vmatpush1.msra.mxu0 0.0
        %3730 = vmatprep.subr.mxu0 0.0
        %3731 = vmatpush1.msra.mxu0 0.0
        %3732 = vmatprep.subr.mxu0 0.0
        %3733 = vmatpush1.msra.mxu0 0.0
        %3734 = vmatprep.subr.mxu0 0.0
        %3735 = vmatpush1.msra.mxu0 0.0
        %3736 = vmatprep.subr.mxu0 0.0
        %3737 = vmatpush1.msra.mxu0 0.0
        %3738 = vmatprep.subr.mxu0 0.0
        %3739 = vmatpush1.msra.mxu0 0.0
        %3740 = vmatprep.subr.mxu0 0.0
        %3741 = vmatpush1.msra.mxu0 0.0
        %3742 = vmatprep.subr.mxu0 0.0
        %3743 = vmatpush1.msra.mxu0 0.0
        %3744 = vmatprep.subr.mxu0 0.0
        %3745 = vmatpush1.msra.mxu0 0.0
        %3746 = vmatprep.subr.mxu0 0.0
        %3747 = vmatpush1.msra.mxu0 0.0
        %3748 = vmatprep.subr.mxu0 0.0
        %3749 = vmatpush1.msra.mxu0 0.0
        %3750 = vmatprep.subr.mxu0 0.0
        %3751 = vmatpush1.msra.mxu0 0.0
        %3752 = vmatprep.subr.mxu0 0.0
        %3753 = vmatpush1.msra.mxu0 0.0
        %3754 = vmatprep.subr.mxu0 0.0
        %3755 = vmatpush1.msra.mxu0 0.0
        %3756 = vmatprep.subr.mxu0 0.0
        %3757 = vmatpush1.msra.mxu0 0.0
        %3758 = vmatprep.subr.mxu0 0.0
        %3759 = vmatpush1.msra.mxu0 0.0
        %3760 = vmatprep.mubr.f32.mxu0 0.0
        %3761 = vmatmul.mubr.f32.gmra.mrb[0].mxu0 %v3694
        %v3762 = vpop.f32.mrb[0].mxu0
        %v3763 = vadd.f32 %v3005, %v3762
        %v3764 = vpop.f32.mrb[0].mxu0
        %3765 = vdwg.mxu0
        %v3766 = vld [vmem:[#allocation4 + $0x7] sm:$0x1]
        %v3767 = vadd.f32 %v3766, %v3763
        %3769 = vrot.lane.b32.xlu0 %v3763, 80
        %v3770 = vpop.permute.xlu0 %3769
        %v3772 = vadd.f32 %v3767, %v3770
        %v3773 = vxor.u32 %v3772, 2147483648
        %v3774 = vmul.f32 %v3773, 1.442695
        %v3775 = vpow.pop %v3774
        %v3776 = vadd.f32 %v3775, 1.0
        %v3777 = vrcp.pop %v3776
        %v3778 = vmul.f32 1.0, %v3777
        %3779 = vrot.lane.b32.xlu0 %v3763, 48
        %v3780 = vpop.permute.xlu0 %3779
        %v3782 = vmul.f32 %v3778, %v3780
        %3784 = vrot.lane.b32.xlu0 %v3782, 32
        %v3785 = vpop.permute.xlu0 %3784
        %v3787 = vadd.f32 %v3767, %v3785
        %v3788 = vtanh.pop %v3787
        %v3789 = vsub.f32 1.0, %v3778
        %3791 = vrot.lane.b32.xlu0 %v3788, 112
        %v3792 = vpop.permute.xlu0 %3791
        %v3794 = vmul.f32 %v3789, %v3792
        %v3795 = vmul.f32 %v3778, %v3688
        %v3796 = vadd.f32 %v3794, %v3795
        %3798 = vrot.lane.b32.xlu0 %v3796, 112
        %v3799 = vpop.permute.xlu0 %3798
        %3801 = vst.msk [vmem:[#allocation5 + $0x7] sm:$0x1] %vm1223, %v3799
        %v3802 = vld [vmem:[#allocation5] sm:$0xff]
        %v3803 = vld [vmem:[%s16] sm:$0xff]
        %v3804 = vld [vmem:[%s16 + $0x8] sm:$0xff]
        %v3805 = vld [vmem:[%s17] sm:$0x1]
        %v3807 = vlaneseq
        %v3808 = vshrl.u32 %v3807, 7
        %v3809 = vsub.s32 0, %v3808
        %v3810 = vrot.slane %v3805, %v3809
        %v3813 = vsel %vm656, %v3802, 0
        %3815 = vmatprep.subr.mxu0 0.0
        %3816 = vmatpush1.msra.mxu0 %v3803
        %3817 = vmatprep.subr.mxu0 0.0
        %3818 = vmatpush1.msra.mxu0 %v3804
        %3819 = vmatprep.subr.mxu0 0.0
        %3820 = vmatpush1.msra.mxu0 0.0
        %3821 = vmatprep.subr.mxu0 0.0
        %3822 = vmatpush1.msra.mxu0 0.0
        %3823 = vmatprep.subr.mxu0 0.0
        %3824 = vmatpush1.msra.mxu0 0.0
        %3825 = vmatprep.subr.mxu0 0.0
        %3826 = vmatpush1.msra.mxu0 0.0
        %3827 = vmatprep.subr.mxu0 0.0
        %3828 = vmatpush1.msra.mxu0 0.0
        %3829 = vmatprep.subr.mxu0 0.0
        %3830 = vmatpush1.msra.mxu0 0.0
        %3831 = vmatprep.subr.mxu0 0.0
        %3832 = vmatpush1.msra.mxu0 0.0
        %3833 = vmatprep.subr.mxu0 0.0
        %3834 = vmatpush1.msra.mxu0 0.0
        %3835 = vmatprep.subr.mxu0 0.0
        %3836 = vmatpush1.msra.mxu0 0.0
        %3837 = vmatprep.subr.mxu0 0.0
        %3838 = vmatpush1.msra.mxu0 0.0
        %3839 = vmatprep.subr.mxu0 0.0
        %3840 = vmatpush1.msra.mxu0 0.0
        %3841 = vmatprep.subr.mxu0 0.0
        %3842 = vmatpush1.msra.mxu0 0.0
        %3843 = vmatprep.subr.mxu0 0.0
        %3844 = vmatpush1.msra.mxu0 0.0
        %3845 = vmatprep.subr.mxu0 0.0
        %3846 = vmatpush1.msra.mxu0 0.0
        %3847 = vmatprep.subr.mxu0 0.0
        %3848 = vmatpush1.msra.mxu0 0.0
        %3849 = vmatprep.subr.mxu0 0.0
        %3850 = vmatpush1.msra.mxu0 0.0
        %3851 = vmatprep.subr.mxu0 0.0
        %3852 = vmatpush1.msra.mxu0 0.0
        %3853 = vmatprep.subr.mxu0 0.0
        %3854 = vmatpush1.msra.mxu0 0.0
        %3855 = vmatprep.subr.mxu0 0.0
        %3856 = vmatpush1.msra.mxu0 0.0
        %3857 = vmatprep.subr.mxu0 0.0
        %3858 = vmatpush1.msra.mxu0 0.0
        %3859 = vmatprep.subr.mxu0 0.0
        %3860 = vmatpush1.msra.mxu0 0.0
        %3861 = vmatprep.subr.mxu0 0.0
        %3862 = vmatpush1.msra.mxu0 0.0
        %3863 = vmatprep.subr.mxu0 0.0
        %3864 = vmatpush1.msra.mxu0 0.0
        %3865 = vmatprep.subr.mxu0 0.0
        %3866 = vmatpush1.msra.mxu0 0.0
        %3867 = vmatprep.subr.mxu0 0.0
        %3868 = vmatpush1.msra.mxu0 0.0
        %3869 = vmatprep.subr.mxu0 0.0
        %3870 = vmatpush1.msra.mxu0 0.0
        %3871 = vmatprep.subr.mxu0 0.0
        %3872 = vmatpush1.msra.mxu0 0.0
        %3873 = vmatprep.subr.mxu0 0.0
        %3874 = vmatpush1.msra.mxu0 0.0
        %3875 = vmatprep.subr.mxu0 0.0
        %3876 = vmatpush1.msra.mxu0 0.0
        %3877 = vmatprep.subr.mxu0 0.0
        %3878 = vmatpush1.msra.mxu0 0.0
        %3879 = vmatprep.mubr.f32.mxu0 0.0
        %3880 = vmatmul.mubr.f32.gmra.mrb[0].mxu0 %v3813
        %v3881 = vpop.f32.mrb[0].mxu0
        %v3882 = vadd.f32 %v3810, %v3881
        %v3883 = vpop.f32.mrb[0].mxu0
        %3884 = vdwg.mxu0
        %vm3885 = vcmask 64512
        %3886 = vst.msk [vmem:[%s610] sm:$0xff] %vm3885, %v3882
        %s3887 = sand.u32 %s423, 1
        %s3888 = scalar_lea.sflag [#allocation9], %s3887
        %s3889 = sand.u32 %s423, 1
        %s3890 = smul.addr %s3889, 8
        %s3891 = scalar_lea.vmem [#allocation8], %s3890
        %s3892 = sand.u32 %s449, 1
        %s3893 = scalar_lea.sflag [#allocation11], %s3892
        %s3894 = sand.u32 %s449, 1
        %s3895 = smul.addr %s3894, 8
        %s3896 = scalar_lea.vmem [#allocation10], %s3895
        // Predicated region
        $region89: #{prosody_predictor_wrapper_forward.1} parent=87 // pred_check
          %p3897 = pneg %p433
        $region90: #{prosody_predictor_wrapper_forward.1} parent=87 // pred_check_branch
          %3899 = sbr.rel (%p3897) target = $region92
        $region91: #{prosody_predictor_wrapper_forward.1} parent=87 // pred_region
          %s3901 = ssub.s32 128, 128
          %3902 = vsyncadd %s3888, %s3901
          %s3903 = smul.addr %s43, 128
          %s3904 = scalar_lea.hbm %s18, %s3903
          %s3906 = sshll.u32 %s3891, 4
          %s3907 = int_to_ptr.vmem [resolvable:$true] %s3906
          %3909 = dma.vmem_to_hbm [thread:$0]  %s3907, 128, %s3904, %s3888
        $region92: #{prosody_predictor_wrapper_forward.1} parent=87 // pred_fallthru
          _
        // Predicated region
        $region93: #{prosody_predictor_wrapper_forward.1} parent=87 // pred_check
          %p3910 = pneg %p459
        $region94: #{prosody_predictor_wrapper_forward.1} parent=87 // pred_check_branch
          %3912 = sbr.rel (%p3910) target = $region96
        $region95: #{prosody_predictor_wrapper_forward.1} parent=87 // pred_region
          %s3914 = ssub.s32 128, 128
          %3915 = vsyncadd %s3893, %s3914
          %s3916 = smul.addr %s43, 128
          %s3917 = scalar_lea.hbm %s19, %s3916
          %s3919 = sshll.u32 %s3896, 4
          %s3920 = int_to_ptr.vmem [resolvable:$true] %s3919
          %3922 = dma.vmem_to_hbm [thread:$0]  %s3920, 128, %s3917, %s3893
        $region96: #{prosody_predictor_wrapper_forward.1} parent=87 // pred_fallthru
          _
      $region88: #{prosody_predictor_wrapper_forward.1} parent=5 // pred_fallthru
        _
      %p3923 = scmp.le.s32.totalorder 2, %s38
      // Predicated region
      $region97: #{prosody_predictor_wrapper_forward.1} parent=5 // pred_check
        %p3924 = pneg %p3923
      $region98: #{prosody_predictor_wrapper_forward.1} parent=5 // pred_check_branch
        %3926 = sbr.rel (%p3924) target = $region100
      $region99: #{prosody_predictor_wrapper_forward.1} parent=5 // pred_region
        %s3927 = ssub.s32 %s38, 2
        // Predicated region
        $region101: #{prosody_predictor_wrapper_forward.1} parent=99 // pred_check
          %p3928 = pneg %p439
        $region102: #{prosody_predictor_wrapper_forward.1} parent=99 // pred_check_branch
          %3930 = sbr.rel (%p3928) target = $region104
        $region103: #{prosody_predictor_wrapper_forward.1} parent=99 // pred_region
          %s3931 = sand.u32 %s424, 1
          %s3932 = scalar_lea.sflag [#allocation9], %s3931
          %s3933 = sand.u32 %s424, 1
          %s3934 = smul.addr %s3933, 8
          %s3935 = scalar_lea.vmem [#allocation8], %s3934
          %3936 = dma.done %s3932, 128
        $region104: #{prosody_predictor_wrapper_forward.1} parent=99 // pred_fallthru
          _
        // Predicated region
        $region105: #{prosody_predictor_wrapper_forward.1} parent=99 // pred_check
          %p3937 = pneg %p465
        $region106: #{prosody_predictor_wrapper_forward.1} parent=99 // pred_check_branch
          %3939 = sbr.rel (%p3937) target = $region108
        $region107: #{prosody_predictor_wrapper_forward.1} parent=99 // pred_region
          %s3940 = sand.u32 %s450, 1
          %s3941 = scalar_lea.sflag [#allocation11], %s3940
          %s3942 = sand.u32 %s450, 1
          %s3943 = smul.addr %s3942, 8
          %s3944 = scalar_lea.vmem [#allocation10], %s3943
          %3945 = dma.done %s3941, 128
        $region108: #{prosody_predictor_wrapper_forward.1} parent=99 // pred_fallthru
          _
      $region100: #{prosody_predictor_wrapper_forward.1} parent=5 // pred_fallthru
        _
    $region6: #{prosody_predictor_wrapper_forward.1} parent=1 // loop_footer
      %s42 = sadd.s32 1, %s38
    $region7: #{prosody_predictor_wrapper_forward.1} parent=1 // loop_footer_branch
      %37 = sbr.rel target = $region3
    $region8: #{prosody_predictor_wrapper_forward.1} parent=1 // loop_exit
      _
    %3946 = vsyncpa [#allocation9], 1
    %s3947 = scalar_lea.sflag [#allocation9], 1
    %3948 = vsyncpa %s3947, 1
    %3949 = vsyncpa [#allocation11], 1
    %s3950 = scalar_lea.sflag [#allocation11], 1
    %3951 = vsyncpa %s3950, 1

</llo_original>
